<compile_context>
chip_gen: v5e
topology: v5e:2x2
jax: 0.10.0
libtpu: 0.0.40
codegen_flags: <defaults>
</compile_context>

<pallas_src>
import functools

import jax
import jax.numpy as jnp
import numpy as np
from jax.experimental import pallas as pl
from jax.experimental.pallas import tpu as pltpu


# ----------------------------------------------------------------------------
# Fused MS-TCN kernel: one grid step = one sequence (batch element).
# Layout: channels on sublanes, time on lanes.
# ----------------------------------------------------------------------------
def _mstcn_kernel(x_ref, m_ref,
                  w_in1_ref, b_in1_ref, wd1_ref, bd1_ref, w11_ref, b11_ref,
                  wo1_ref, bo1_ref,
                  w_inr_ref, b_inr_ref, wdr_ref, bdr_ref, w1r_ref, b1r_ref,
                  wor_ref, bor_ref,
                  o_ref, pad_ref, *, num_layers, num_rest, max_dil):
    m = m_ref[...]                                   # (1, T) f32
    seq_t = m.shape[-1]

    # Zero the shift scratch once; only the +-max_dil halo columns must stay 0
    # (the center is overwritten every layer).
    pad_ref[...] = jnp.zeros(pad_ref.shape, pad_ref.dtype)

    def residual_layers(h, wd, bd, w1, b1):
        # h: (F, T).  wd: (3L, F, F) [3l+k = tap k of layer l], bd/b1: (L, F, 1)
        for l in range(num_layers):                  # static unroll
            d = 2 ** l                               # dilation
            # zero-padded time shifts via the scratch slab (static slices)
            pad_ref[:, max_dil:max_dil + seq_t] = h
            h_prev = pad_ref[:, max_dil - d:max_dil - d + seq_t]   # h[:, t-d]
            h_next = pad_ref[:, max_dil + d:max_dil + d + seq_t]   # h[:, t+d]
            # 3-tap dilated conv as 3 accumulating MXU matmuls
            c = (jnp.dot(wd[3 * l + 0], h_prev, preferred_element_type=jnp.float32)
                 + jnp.dot(wd[3 * l + 1], h, preferred_element_type=jnp.float32)
                 + jnp.dot(wd[3 * l + 2], h_next, preferred_element_type=jnp.float32)
                 + bd[l])
            c = jnp.maximum(c, 0.0)                  # ReLU
            c = jnp.dot(w1[l], c, preferred_element_type=jnp.float32) + b1[l]
            # nn.Dropout(): identity at inference
            h = (h + c) * m                          # residual + mask
        return h

    def stage_tail(h0, wd, bd, w1, b1, w_out, b_out):
        h = residual_layers(h0, wd, bd, w1, b1)
        return (jnp.dot(w_out, h, preferred_element_type=jnp.float32)
                + b_out) * m

    # ---- stage 1: the only K=2048 matmul; bf16 inputs, f32 accumulation ----
    h0 = jnp.dot(w_in1_ref[...], x_ref[...],
                 preferred_element_type=jnp.float32) + b_in1_ref[...]
    out = stage_tail(h0, wd1_ref[...], bd1_ref[...], w11_ref[...],
                     b11_ref[...], wo1_ref[...], bo1_ref[...])
    o_ref[0] = out                                   # direct lane-dense store

    # ---- later stages: softmax over classes (sublane axis), all in VMEM ----
    for s in range(num_rest):                        # static unroll
        z = out - jnp.max(out, axis=0, keepdims=True)
        e = jnp.exp(z)
        p = e * pl.reciprocal(jnp.sum(e, axis=0, keepdims=True), approx=True)
        h0 = (jnp.dot(w_inr_ref[s], p * m, preferred_element_type=jnp.float32)
              + b_inr_ref[s])
        out = stage_tail(h0, wdr_ref[s], bdr_ref[s], w1r_ref[s], b1r_ref[s],
                         wor_ref[s], bor_ref[s])
        o_ref[s + 1] = out


# ----------------------------------------------------------------------------
# Host wrapper: layout plumbing + one pallas_call (grid over batch).
# ----------------------------------------------------------------------------
def multi_stage_forward(x_bct, mask_bct, stage_params):
    """x: (B, dim, T), mask: (B, C, T)  ->  outputs: (num_stages, B, C, T)."""
    B, Cin, T = x_bct.shape
    S = len(stage_params)
    assert S >= 2, "this fused kernel assumes num_stages >= 2"
    F = stage_params[0][0].shape[0]
    L = stage_params[0][2].shape[0]
    C = stage_params[0][6].shape[0]
    max_dil = 2 ** (L - 1)

    # nn.Dropout2d on the input: identity at inference.
    # bf16 halves the dominant HBM->VMEM traffic (x and stage-1 weight);
    # accumulation stays f32 on the MXU.
    x = x_bct.astype(jnp.bfloat16)                   # (B, Cin, T)
    m = mask_bct[:, 0:1, :].astype(jnp.float32)      # (B, 1, T)

    def prep(p):
        w_in, b_in, wd, bd, w1, b1, w_out, b_out = p
        # (L, 3, F, F) -> (3L, F, F): index 3l+k = tap k (t-d, t, t+d) of layer l
        return (w_in, b_in, wd.reshape(L * 3, F, F), bd, w1, b1, w_out, b_out)

    p1 = prep(stage_params[0])
    p1 = (p1[0].astype(jnp.bfloat16),) + p1[1:]      # stage-1 (F, 2048) weight
    rest = [prep(p) for p in stage_params[1:]]
    rest_stacked = tuple(jnp.stack([r[i] for r in rest], axis=0)
                         for i in range(8))
    weights = list(p1) + list(rest_stacked)

    def resident(a):                                 # full-array block, DMA'd once
        n = a.ndim
        return pl.BlockSpec(a.shape, lambda b, n=n: (0,) * n)

    kernel = functools.partial(_mstcn_kernel, num_layers=L, num_rest=S - 1,
                               max_dil=max_dil)
    out = pl.pallas_call(
        kernel,
        grid=(B,),
        out_shape=jax.ShapeDtypeStruct((B, S, C, T), jnp.float32),
        in_specs=[pl.BlockSpec((None, Cin, T), lambda b: (b, 0, 0)),   # x
                  pl.BlockSpec((None, 1, T), lambda b: (b, 0, 0))]     # mask
                 + [resident(w) for w in weights],
        out_specs=pl.BlockSpec((None, S, C, T), lambda b: (b, 0, 0, 0)),
        scratch_shapes=[pltpu.VMEM((F, T + 2 * max_dil), jnp.float32)],
        compiler_params=pltpu.CompilerParams(
            dimension_semantics=("parallel",)),      # 2 TCs on v7x; no-op v5e/v6e
    )(x, m, *weights)
    # TODO(synk): for realistic video lengths also tile T (lane axis) with a
    # +-(num_stages * (2^L - 1)) receptive-field halo per tile so the bf16 x
    # block stays within the 32 MiB scoped VMEM default (v7x: 64 MiB physical).

    return jnp.transpose(out, (1, 0, 2, 3))          # (S, B, C, T)


# ----------------------------------------------------------------------------
# Deterministic parameter construction (Conv1d layout: (out_ch, in_ch[, tap])).
# ----------------------------------------------------------------------------
def make_stage_params(key, cin, num_f_maps, num_layers, cout):
    ks = jax.random.split(key, 8)
    s = 0.05
    w_in = s * jax.random.normal(ks[0], (num_f_maps, cin), jnp.float32)
    b_in = s * jax.random.normal(ks[1], (num_f_maps, 1), jnp.float32)
    wd = s * jax.random.normal(ks[2], (num_layers, 3, num_f_maps, num_f_maps),
                               jnp.float32)
    bd = s * jax.random.normal(ks[3], (num_layers, num_f_maps, 1), jnp.float32)
    w1 = s * jax.random.normal(ks[4], (num_layers, num_f_maps, num_f_maps),
                               jnp.float32)
    b1 = s * jax.random.normal(ks[5], (num_layers, num_f_maps, 1), jnp.float32)
    w_out = s * jax.random.normal(ks[6], (cout, num_f_maps), jnp.float32)
    b_out = s * jax.random.normal(ks[7], (cout, 1), jnp.float32)
    return (w_in, b_in, wd, bd, w1, b1, w_out, b_out)


# ----------------------------------------------------------------------------
# Plain-JAX f32 reference (correctness check against the fused kernel).
# ----------------------------------------------------------------------------
def ref_stage(x_bct, m_b1t, params):
    w_in, b_in, wd, bd, w1, b1, w_out, b_out = params
    T = x_bct.shape[-1]
    L = wd.shape[0]
    h = jnp.einsum("oc,bct->bot", w_in, x_bct) + b_in[None]
    for l in range(L):
        d = 2 ** l
        hp = jnp.pad(h, ((0, 0), (0, 0), (d, d)))
        c = sum(jnp.einsum("oc,bct->bot", wd[l, k], hp[:, :, k * d:k * d + T])
                for k in range(3)) + bd[l][None]
        c = jnp.maximum(c, 0.0)
        c = jnp.einsum("oc,bct->bot", w1[l], c) + b1[l][None]
        h = (h + c) * m_b1t
    return (jnp.einsum("oc,bct->bot", w_out, h) + b_out[None]) * m_b1t


def ref_forward(x_bct, mask_bct, stage_params):
    m = mask_bct[:, 0:1, :].astype(jnp.float32)
    x = x_bct.astype(jnp.float32)
    out = ref_stage(x, m, stage_params[0])
    outs = [out]
    for p in stage_params[1:]:
        out = ref_stage(jax.nn.softmax(out, axis=1) * m, m, p)
        outs.append(out)
    return jnp.stack(outs, axis=0)                   # (S, B, C, T)


# ----------------------------------------------------------------------------
if __name__ == "__main__":
    # hparams
    input_dim = 2048                       # input_type == 'video'
    num_layers = 3
    num_f_maps = 32
    num_outcome_classes = 6
    num_classes = num_outcome_classes - 2  # loss_function == 'Lcls'
    num_stages = 3

    B, T = 2, 16

    key = jax.random.PRNGKey(0)
    k_x, k_p = jax.random.split(key)

    x = jax.random.normal(k_x, (B, input_dim, T), jnp.float32)
    # mask: (B, num_classes, T); zero out the tail of the second batch element
    mask = jnp.ones((B, num_classes, T), jnp.float32)
    mask = mask.at[1, :, 12:].set(0.0)

    # Stage 1: dim -> num_classes; later stages: num_classes -> num_classes
    stage_keys = jax.random.split(k_p, num_stages)
    stage_params = [make_stage_params(stage_keys[0], input_dim, num_f_maps,
                                      num_layers, num_classes)]
    for s in range(1, num_stages):
        stage_params.append(make_stage_params(stage_keys[s], num_classes,
                                              num_f_maps, num_layers,
                                              num_classes))

    fwd = jax.jit(multi_stage_forward)
    out = jax.block_until_ready(fwd(x, mask, stage_params))

    # correctness check vs plain-f32 JAX reference; tolerance loosened for the
    # intentional bf16 stage-1 matmul + EUP approx reciprocal in the softmax.
    ref = jax.block_until_ready(ref_forward(x, mask, stage_params))
    assert out.shape == (num_stages, B, num_classes, T), out.shape
    np.testing.assert_allclose(np.asarray(out), np.asarray(ref),
                               rtol=2e-2, atol=2e-2)

    print("KERNEL_OK")
</pallas_src>

<mosaic_0001>
module attributes {stable_mosaic.version = 11 : i64} {
  func.func @_mstcn_kernel(%arg0: i32, %arg1: memref<1x2048x16xbf16, #tpu.memory_space<vmem>>, %arg2: memref<1x1x16xf32, #tpu.memory_space<vmem>>, %arg3: memref<32x2048xbf16, #tpu.memory_space<vmem>>, %arg4: memref<32x1xf32, #tpu.memory_space<vmem>>, %arg5: memref<9x32x32xf32, #tpu.memory_space<vmem>>, %arg6: memref<3x32x1xf32, #tpu.memory_space<vmem>>, %arg7: memref<3x32x32xf32, #tpu.memory_space<vmem>>, %arg8: memref<3x32x1xf32, #tpu.memory_space<vmem>>, %arg9: memref<4x32xf32, #tpu.memory_space<vmem>>, %arg10: memref<4x1xf32, #tpu.memory_space<vmem>>, %arg11: memref<2x32x4xf32, #tpu.memory_space<vmem>>, %arg12: memref<2x32x1xf32, #tpu.memory_space<vmem>>, %arg13: memref<2x9x32x32xf32, #tpu.memory_space<vmem>>, %arg14: memref<2x3x32x1xf32, #tpu.memory_space<vmem>>, %arg15: memref<2x3x32x32xf32, #tpu.memory_space<vmem>>, %arg16: memref<2x3x32x1xf32, #tpu.memory_space<vmem>>, %arg17: memref<2x4x32xf32, #tpu.memory_space<vmem>>, %arg18: memref<2x4x1xf32, #tpu.memory_space<vmem>>, %arg19: memref<1x3x4x16xf32, #tpu.memory_space<vmem>>, %arg20: memref<32x24xf32, #tpu.memory_space<vmem>>) attributes {dimension_semantics = [#tpu.dimension_semantics<parallel>], iteration_bounds = array<i64: 2>, scalar_prefetch = 0 : i64, scratch_operands = 1 : i64, tpu.core_type = #tpu.core_type<tc>, window_params = [{transform_indices = @transform_0, window_bounds = array<i64: 1, 2048, 16>}, {transform_indices = @transform_1, window_bounds = array<i64: 1, 1, 16>}, {pipeline_mode = #tpu.pipeline_mode<synchronous>, transform_indices = @transform_2, window_bounds = array<i64: 32, 2048>}, {pipeline_mode = #tpu.pipeline_mode<synchronous>, transform_indices = @transform_3, window_bounds = array<i64: 32, 1>}, {pipeline_mode = #tpu.pipeline_mode<synchronous>, transform_indices = @transform_4, window_bounds = array<i64: 9, 32, 32>}, {pipeline_mode = #tpu.pipeline_mode<synchronous>, transform_indices = @transform_5, window_bounds = array<i64: 3, 32, 1>}, {pipeline_mode = #tpu.pipeline_mode<synchronous>, transform_indices = @transform_6, window_bounds = array<i64: 3, 32, 32>}, {pipeline_mode = #tpu.pipeline_mode<synchronous>, transform_indices = @transform_7, window_bounds = array<i64: 3, 32, 1>}, {pipeline_mode = #tpu.pipeline_mode<synchronous>, transform_indices = @transform_8, window_bounds = array<i64: 4, 32>}, {pipeline_mode = #tpu.pipeline_mode<synchronous>, transform_indices = @transform_9, window_bounds = array<i64: 4, 1>}, {pipeline_mode = #tpu.pipeline_mode<synchronous>, transform_indices = @transform_10, window_bounds = array<i64: 2, 32, 4>}, {pipeline_mode = #tpu.pipeline_mode<synchronous>, transform_indices = @transform_11, window_bounds = array<i64: 2, 32, 1>}, {pipeline_mode = #tpu.pipeline_mode<synchronous>, transform_indices = @transform_12, window_bounds = array<i64: 2, 9, 32, 32>}, {pipeline_mode = #tpu.pipeline_mode<synchronous>, transform_indices = @transform_13, window_bounds = array<i64: 2, 3, 32, 1>}, {pipeline_mode = #tpu.pipeline_mode<synchronous>, transform_indices = @transform_14, window_bounds = array<i64: 2, 3, 32, 32>}, {pipeline_mode = #tpu.pipeline_mode<synchronous>, transform_indices = @transform_15, window_bounds = array<i64: 2, 3, 32, 1>}, {pipeline_mode = #tpu.pipeline_mode<synchronous>, transform_indices = @transform_16, window_bounds = array<i64: 2, 4, 32>}, {pipeline_mode = #tpu.pipeline_mode<synchronous>, transform_indices = @transform_17, window_bounds = array<i64: 2, 4, 1>}, {transform_indices = @transform_18, window_bounds = array<i64: 1, 3, 4, 16>}]} {
    %c0 = arith.constant 0 : index
    %c0_0 = arith.constant 0 : index
    %c0_1 = arith.constant 0 : index
    %0 = vector.load %arg2[%c0, %c0_0, %c0_1] : memref<1x1x16xf32, #tpu.memory_space<vmem>>, vector<1x1x16xf32>
    %1 = vector.shape_cast %0 : vector<1x1x16xf32> to vector<1x16xf32>
    %cst = arith.constant 0.000000e+00 : f32
    %2 = vector.broadcast %cst : f32 to vector<32x24xf32>
    %c0_2 = arith.constant 0 : index
    %c0_3 = arith.constant 0 : index
    %3 = vector.load %arg20[%c0_2, %c0_3] : memref<32x24xf32, #tpu.memory_space<vmem>>, vector<32x24xf32>
    tpu.vector_store %arg20[%c0_2, %c0_3], %2 {strides = array<i32>} : memref<32x24xf32, #tpu.memory_space<vmem>>, vector<32x24xf32>,
    %c0_4 = arith.constant 0 : index
    %c0_5 = arith.constant 0 : index
    %4 = vector.load %arg3[%c0_4, %c0_5] : memref<32x2048xbf16, #tpu.memory_space<vmem>>, vector<32x2048xbf16>
    %c0_6 = arith.constant 0 : index
    %c0_7 = arith.constant 0 : index
    %c0_8 = arith.constant 0 : index
    %5 = vector.load %arg1[%c0_6, %c0_7, %c0_8] : memref<1x2048x16xbf16, #tpu.memory_space<vmem>>, vector<1x2048x16xbf16>
    %6 = vector.shape_cast %5 : vector<1x2048x16xbf16> to vector<2048x16xbf16>
    %cst_9 = arith.constant dense<0.000000e+00> : vector<32x16xf32>
    %7 = tpu.matmul %4, %6, %cst_9 {dimension_numbers = #tpu.dot_dimension_numbers<[1], [0], [0], [1], [0, 0, 1, 1], [], []>} : vector<32x2048xbf16>, vector<2048x16xbf16>, vector<32x16xf32> -> vector<32x16xf32>
    %c0_10 = arith.constant 0 : index
    %c0_11 = arith.constant 0 : index
    %8 = vector.load %arg4[%c0_10, %c0_11] : memref<32x1xf32, #tpu.memory_space<vmem>>, vector<32x1xf32>
    %9 = vector.broadcast %8 : vector<32x1xf32> to vector<32x16xf32>
    %10 = arith.addf %7, %9 : vector<32x16xf32>
    %c0_12 = arith.constant 0 : index
    %c0_13 = arith.constant 0 : index
    %c0_14 = arith.constant 0 : index
    %11 = vector.load %arg5[%c0_12, %c0_13, %c0_14] : memref<9x32x32xf32, #tpu.memory_space<vmem>>, vector<9x32x32xf32>
    %c0_15 = arith.constant 0 : index
    %c0_16 = arith.constant 0 : index
    %c0_17 = arith.constant 0 : index
    %12 = vector.load %arg6[%c0_15, %c0_16, %c0_17] : memref<3x32x1xf32, #tpu.memory_space<vmem>>, vector<3x32x1xf32>
    %c0_18 = arith.constant 0 : index
    %c0_19 = arith.constant 0 : index
    %c0_20 = arith.constant 0 : index
    %13 = vector.load %arg7[%c0_18, %c0_19, %c0_20] : memref<3x32x32xf32, #tpu.memory_space<vmem>>, vector<3x32x32xf32>
    %c0_21 = arith.constant 0 : index
    %c0_22 = arith.constant 0 : index
    %c0_23 = arith.constant 0 : index
    %14 = vector.load %arg8[%c0_21, %c0_22, %c0_23] : memref<3x32x1xf32, #tpu.memory_space<vmem>>, vector<3x32x1xf32>
    %c0_24 = arith.constant 0 : index
    %c0_25 = arith.constant 0 : index
    %15 = vector.load %arg9[%c0_24, %c0_25] : memref<4x32xf32, #tpu.memory_space<vmem>>, vector<4x32xf32>
    %c0_26 = arith.constant 0 : index
    %c0_27 = arith.constant 0 : index
    %16 = vector.load %arg10[%c0_26, %c0_27] : memref<4x1xf32, #tpu.memory_space<vmem>>, vector<4x1xf32>
    %c0_28 = arith.constant 0 : index
    %c4 = arith.constant 4 : index
    %17 = vector.load %arg20[%c0_28, %c4] : memref<32x24xf32, #tpu.memory_space<vmem>>, vector<32x16xf32>
    tpu.vector_store %arg20[%c0_28, %c4], %10 {strides = array<i32>} : memref<32x24xf32, #tpu.memory_space<vmem>>, vector<32x16xf32>,
    %c0_29 = arith.constant 0 : index
    %c3 = arith.constant 3 : index
    %18 = vector.load %arg20[%c0_29, %c3] : memref<32x24xf32, #tpu.memory_space<vmem>>, vector<32x16xf32>
    %c0_30 = arith.constant 0 : index
    %c5 = arith.constant 5 : index
    %19 = vector.load %arg20[%c0_30, %c5] : memref<32x24xf32, #tpu.memory_space<vmem>>, vector<32x16xf32>
    %20 = vector.extract_strided_slice %11 {offsets = [0, 0, 0], sizes = [1, 32, 32], strides = [1, 1, 1]} : vector<9x32x32xf32> to vector<1x32x32xf32>
    %21 = vector.shape_cast %20 : vector<1x32x32xf32> to vector<32x32xf32>
    %cst_31 = arith.constant dense<0.000000e+00> : vector<32x16xf32>
    %22 = tpu.matmul %21, %18, %cst_31 {dimension_numbers = #tpu.dot_dimension_numbers<[1], [0], [0], [1], [0, 0, 1, 1], [], []>} : vector<32x32xf32>, vector<32x16xf32>, vector<32x16xf32> -> vector<32x16xf32>
    %23 = vector.extract_strided_slice %11 {offsets = [1, 0, 0], sizes = [1, 32, 32], strides = [1, 1, 1]} : vector<9x32x32xf32> to vector<1x32x32xf32>
    %24 = vector.shape_cast %23 : vector<1x32x32xf32> to vector<32x32xf32>
    %cst_32 = arith.constant dense<0.000000e+00> : vector<32x16xf32>
    %25 = tpu.matmul %24, %10, %cst_32 {dimension_numbers = #tpu.dot_dimension_numbers<[1], [0], [0], [1], [0, 0, 1, 1], [], []>} : vector<32x32xf32>, vector<32x16xf32>, vector<32x16xf32> -> vector<32x16xf32>
    %26 = arith.addf %22, %25 : vector<32x16xf32>
    %27 = vector.extract_strided_slice %11 {offsets = [2, 0, 0], sizes = [1, 32, 32], strides = [1, 1, 1]} : vector<9x32x32xf32> to vector<1x32x32xf32>
    %28 = vector.shape_cast %27 : vector<1x32x32xf32> to vector<32x32xf32>
    %cst_33 = arith.constant dense<0.000000e+00> : vector<32x16xf32>
    %29 = tpu.matmul %28, %19, %cst_33 {dimension_numbers = #tpu.dot_dimension_numbers<[1], [0], [0], [1], [0, 0, 1, 1], [], []>} : vector<32x32xf32>, vector<32x16xf32>, vector<32x16xf32> -> vector<32x16xf32>
    %30 = arith.addf %26, %29 : vector<32x16xf32>
    %31 = vector.extract_strided_slice %12 {offsets = [0, 0, 0], sizes = [1, 32, 1], strides = [1, 1, 1]} : vector<3x32x1xf32> to vector<1x32x1xf32>
    %32 = vector.shape_cast %31 : vector<1x32x1xf32> to vector<32x1xf32>
    %33 = vector.broadcast %32 : vector<32x1xf32> to vector<32x16xf32>
    %34 = arith.addf %30, %33 : vector<32x16xf32>
    %cst_34 = arith.constant 0.000000e+00 : f32
    %35 = vector.broadcast %cst_34 : f32 to vector<32x16xf32>
    %36 = arith.maximumf %34, %35 : vector<32x16xf32>
    %37 = vector.extract_strided_slice %13 {offsets = [0, 0, 0], sizes = [1, 32, 32], strides = [1, 1, 1]} : vector<3x32x32xf32> to vector<1x32x32xf32>
    %38 = vector.shape_cast %37 : vector<1x32x32xf32> to vector<32x32xf32>
    %cst_35 = arith.constant dense<0.000000e+00> : vector<32x16xf32>
    %39 = tpu.matmul %38, %36, %cst_35 {dimension_numbers = #tpu.dot_dimension_numbers<[1], [0], [0], [1], [0, 0, 1, 1], [], []>} : vector<32x32xf32>, vector<32x16xf32>, vector<32x16xf32> -> vector<32x16xf32>
    %40 = vector.extract_strided_slice %14 {offsets = [0, 0, 0], sizes = [1, 32, 1], strides = [1, 1, 1]} : vector<3x32x1xf32> to vector<1x32x1xf32>
    %41 = vector.shape_cast %40 : vector<1x32x1xf32> to vector<32x1xf32>
    %42 = vector.broadcast %41 : vector<32x1xf32> to vector<32x16xf32>
    %43 = arith.addf %39, %42 : vector<32x16xf32>
    %44 = arith.addf %10, %43 : vector<32x16xf32>
    %45 = vector.broadcast %1 : vector<1x16xf32> to vector<32x16xf32>
    %46 = arith.mulf %44, %45 : vector<32x16xf32>
    %c0_36 = arith.constant 0 : index
    %c4_37 = arith.constant 4 : index
    %47 = vector.load %arg20[%c0_36, %c4_37] : memref<32x24xf32, #tpu.memory_space<vmem>>, vector<32x16xf32>
    tpu.vector_store %arg20[%c0_36, %c4_37], %46 {strides = array<i32>} : memref<32x24xf32, #tpu.memory_space<vmem>>, vector<32x16xf32>,
    %c0_38 = arith.constant 0 : index
    %c2 = arith.constant 2 : index
    %48 = vector.load %arg20[%c0_38, %c2] : memref<32x24xf32, #tpu.memory_space<vmem>>, vector<32x16xf32>
    %c0_39 = arith.constant 0 : index
    %c6 = arith.constant 6 : index
    %49 = vector.load %arg20[%c0_39, %c6] : memref<32x24xf32, #tpu.memory_space<vmem>>, vector<32x16xf32>
    %50 = vector.extract_strided_slice %11 {offsets = [3, 0, 0], sizes = [1, 32, 32], strides = [1, 1, 1]} : vector<9x32x32xf32> to vector<1x32x32xf32>
    %51 = vector.shape_cast %50 : vector<1x32x32xf32> to vector<32x32xf32>
    %cst_40 = arith.constant dense<0.000000e+00> : vector<32x16xf32>
    %52 = tpu.matmul %51, %48, %cst_40 {dimension_numbers = #tpu.dot_dimension_numbers<[1], [0], [0], [1], [0, 0, 1, 1], [], []>} : vector<32x32xf32>, vector<32x16xf32>, vector<32x16xf32> -> vector<32x16xf32>
    %53 = vector.extract_strided_slice %11 {offsets = [4, 0, 0], sizes = [1, 32, 32], strides = [1, 1, 1]} : vector<9x32x32xf32> to vector<1x32x32xf32>
    %54 = vector.shape_cast %53 : vector<1x32x32xf32> to vector<32x32xf32>
    %cst_41 = arith.constant dense<0.000000e+00> : vector<32x16xf32>
    %55 = tpu.matmul %54, %46, %cst_41 {dimension_numbers = #tpu.dot_dimension_numbers<[1], [0], [0], [1], [0, 0, 1, 1], [], []>} : vector<32x32xf32>, vector<32x16xf32>, vector<32x16xf32> -> vector<32x16xf32>
    %56 = arith.addf %52, %55 : vector<32x16xf32>
    %57 = vector.extract_strided_slice %11 {offsets = [5, 0, 0], sizes = [1, 32, 32], strides = [1, 1, 1]} : vector<9x32x32xf32> to vector<1x32x32xf32>
    %58 = vector.shape_cast %57 : vector<1x32x32xf32> to vector<32x32xf32>
    %cst_42 = arith.constant dense<0.000000e+00> : vector<32x16xf32>
    %59 = tpu.matmul %58, %49, %cst_42 {dimension_numbers = #tpu.dot_dimension_numbers<[1], [0], [0], [1], [0, 0, 1, 1], [], []>} : vector<32x32xf32>, vector<32x16xf32>, vector<32x16xf32> -> vector<32x16xf32>
    %60 = arith.addf %56, %59 : vector<32x16xf32>
    %61 = vector.extract_strided_slice %12 {offsets = [1, 0, 0], sizes = [1, 32, 1], strides = [1, 1, 1]} : vector<3x32x1xf32> to vector<1x32x1xf32>
    %62 = vector.shape_cast %61 : vector<1x32x1xf32> to vector<32x1xf32>
    %63 = vector.broadcast %62 : vector<32x1xf32> to vector<32x16xf32>
    %64 = arith.addf %60, %63 : vector<32x16xf32>
    %cst_43 = arith.constant 0.000000e+00 : f32
    %65 = vector.broadcast %cst_43 : f32 to vector<32x16xf32>
    %66 = arith.maximumf %64, %65 : vector<32x16xf32>
    %67 = vector.extract_strided_slice %13 {offsets = [1, 0, 0], sizes = [1, 32, 32], strides = [1, 1, 1]} : vector<3x32x32xf32> to vector<1x32x32xf32>
    %68 = vector.shape_cast %67 : vector<1x32x32xf32> to vector<32x32xf32>
    %cst_44 = arith.constant dense<0.000000e+00> : vector<32x16xf32>
    %69 = tpu.matmul %68, %66, %cst_44 {dimension_numbers = #tpu.dot_dimension_numbers<[1], [0], [0], [1], [0, 0, 1, 1], [], []>} : vector<32x32xf32>, vector<32x16xf32>, vector<32x16xf32> -> vector<32x16xf32>
    %70 = vector.extract_strided_slice %14 {offsets = [1, 0, 0], sizes = [1, 32, 1], strides = [1, 1, 1]} : vector<3x32x1xf32> to vector<1x32x1xf32>
    %71 = vector.shape_cast %70 : vector<1x32x1xf32> to vector<32x1xf32>
    %72 = vector.broadcast %71 : vector<32x1xf32> to vector<32x16xf32>
    %73 = arith.addf %69, %72 : vector<32x16xf32>
    %74 = arith.addf %46, %73 : vector<32x16xf32>
    %75 = vector.broadcast %1 : vector<1x16xf32> to vector<32x16xf32>
    %76 = arith.mulf %74, %75 : vector<32x16xf32>
    %c0_45 = arith.constant 0 : index
    %c4_46 = arith.constant 4 : index
    %77 = vector.load %arg20[%c0_45, %c4_46] : memref<32x24xf32, #tpu.memory_space<vmem>>, vector<32x16xf32>
    tpu.vector_store %arg20[%c0_45, %c4_46], %76 {strides = array<i32>} : memref<32x24xf32, #tpu.memory_space<vmem>>, vector<32x16xf32>,
    %c0_47 = arith.constant 0 : index
    %c0_48 = arith.constant 0 : index
    %78 = vector.load %arg20[%c0_47, %c0_48] : memref<32x24xf32, #tpu.memory_space<vmem>>, vector<32x16xf32>
    %c0_49 = arith.constant 0 : index
    %c8 = arith.constant 8 : index
    %79 = vector.load %arg20[%c0_49, %c8] : memref<32x24xf32, #tpu.memory_space<vmem>>, vector<32x16xf32>
    %80 = vector.extract_strided_slice %11 {offsets = [6, 0, 0], sizes = [1, 32, 32], strides = [1, 1, 1]} : vector<9x32x32xf32> to vector<1x32x32xf32>
    %81 = vector.shape_cast %80 : vector<1x32x32xf32> to vector<32x32xf32>
    %cst_50 = arith.constant dense<0.000000e+00> : vector<32x16xf32>
    %82 = tpu.matmul %81, %78, %cst_50 {dimension_numbers = #tpu.dot_dimension_numbers<[1], [0], [0], [1], [0, 0, 1, 1], [], []>} : vector<32x32xf32>, vector<32x16xf32>, vector<32x16xf32> -> vector<32x16xf32>
    %83 = vector.extract_strided_slice %11 {offsets = [7, 0, 0], sizes = [1, 32, 32], strides = [1, 1, 1]} : vector<9x32x32xf32> to vector<1x32x32xf32>
    %84 = vector.shape_cast %83 : vector<1x32x32xf32> to vector<32x32xf32>
    %cst_51 = arith.constant dense<0.000000e+00> : vector<32x16xf32>
    %85 = tpu.matmul %84, %76, %cst_51 {dimension_numbers = #tpu.dot_dimension_numbers<[1], [0], [0], [1], [0, 0, 1, 1], [], []>} : vector<32x32xf32>, vector<32x16xf32>, vector<32x16xf32> -> vector<32x16xf32>
    %86 = arith.addf %82, %85 : vector<32x16xf32>
    %87 = vector.extract_strided_slice %11 {offsets = [8, 0, 0], sizes = [1, 32, 32], strides = [1, 1, 1]} : vector<9x32x32xf32> to vector<1x32x32xf32>
    %88 = vector.shape_cast %87 : vector<1x32x32xf32> to vector<32x32xf32>
    %cst_52 = arith.constant dense<0.000000e+00> : vector<32x16xf32>
    %89 = tpu.matmul %88, %79, %cst_52 {dimension_numbers = #tpu.dot_dimension_numbers<[1], [0], [0], [1], [0, 0, 1, 1], [], []>} : vector<32x32xf32>, vector<32x16xf32>, vector<32x16xf32> -> vector<32x16xf32>
    %90 = arith.addf %86, %89 : vector<32x16xf32>
    %91 = vector.extract_strided_slice %12 {offsets = [2, 0, 0], sizes = [1, 32, 1], strides = [1, 1, 1]} : vector<3x32x1xf32> to vector<1x32x1xf32>
    %92 = vector.shape_cast %91 : vector<1x32x1xf32> to vector<32x1xf32>
    %93 = vector.broadcast %92 : vector<32x1xf32> to vector<32x16xf32>
    %94 = arith.addf %90, %93 : vector<32x16xf32>
    %cst_53 = arith.constant 0.000000e+00 : f32
    %95 = vector.broadcast %cst_53 : f32 to vector<32x16xf32>
    %96 = arith.maximumf %94, %95 : vector<32x16xf32>
    %97 = vector.extract_strided_slice %13 {offsets = [2, 0, 0], sizes = [1, 32, 32], strides = [1, 1, 1]} : vector<3x32x32xf32> to vector<1x32x32xf32>
    %98 = vector.shape_cast %97 : vector<1x32x32xf32> to vector<32x32xf32>
    %cst_54 = arith.constant dense<0.000000e+00> : vector<32x16xf32>
    %99 = tpu.matmul %98, %96, %cst_54 {dimension_numbers = #tpu.dot_dimension_numbers<[1], [0], [0], [1], [0, 0, 1, 1], [], []>} : vector<32x32xf32>, vector<32x16xf32>, vector<32x16xf32> -> vector<32x16xf32>
    %100 = vector.extract_strided_slice %14 {offsets = [2, 0, 0], sizes = [1, 32, 1], strides = [1, 1, 1]} : vector<3x32x1xf32> to vector<1x32x1xf32>
    %101 = vector.shape_cast %100 : vector<1x32x1xf32> to vector<32x1xf32>
    %102 = vector.broadcast %101 : vector<32x1xf32> to vector<32x16xf32>
    %103 = arith.addf %99, %102 : vector<32x16xf32>
    %104 = arith.addf %76, %103 : vector<32x16xf32>
    %105 = vector.broadcast %1 : vector<1x16xf32> to vector<32x16xf32>
    %106 = arith.mulf %104, %105 : vector<32x16xf32>
    %cst_55 = arith.constant dense<0.000000e+00> : vector<4x16xf32>
    %107 = tpu.matmul %15, %106, %cst_55 {dimension_numbers = #tpu.dot_dimension_numbers<[1], [0], [0], [1], [0, 0, 1, 1], [], []>} : vector<4x32xf32>, vector<32x16xf32>, vector<4x16xf32> -> vector<4x16xf32>
    %108 = vector.broadcast %16 : vector<4x1xf32> to vector<4x16xf32>
    %109 = arith.addf %107, %108 : vector<4x16xf32>
    %110 = vector.broadcast %1 : vector<1x16xf32> to vector<4x16xf32>
    %111 = arith.mulf %109, %110 : vector<4x16xf32>
    %c0_56 = arith.constant 0 : index
    %c0_57 = arith.constant 0 : index
    %c0_58 = arith.constant 0 : index
    %c0_59 = arith.constant 0 : index
    %112 = vector.load %arg19[%c0_56, %c0_57, %c0_58, %c0_59] : memref<1x3x4x16xf32, #tpu.memory_space<vmem>>, vector<1x1x4x16xf32>
    %113 = vector.shape_cast %112 : vector<1x1x4x16xf32> to vector<4x16xf32>
    %114 = vector.shape_cast %111 : vector<4x16xf32> to vector<1x1x4x16xf32>
    tpu.vector_store %arg19[%c0_56, %c0_57, %c0_58, %c0_59], %114 {strides = array<i32>} : memref<1x3x4x16xf32, #tpu.memory_space<vmem>>, vector<1x1x4x16xf32>,
    %cst_60 = arith.constant dense<0xFF800000> : vector<16xf32>
    %115 = vector.multi_reduction <maximumf>, %111, %cst_60 [0] : vector<4x16xf32> to vector<16xf32>
    %116 = vector.shape_cast %115 : vector<16xf32> to vector<1x16xf32>
    %117 = vector.broadcast %116 : vector<1x16xf32> to vector<4x16xf32>
    %118 = arith.subf %111, %117 : vector<4x16xf32>
    %119 = math.exp %118 : vector<4x16xf32>
    %cst_61 = arith.constant dense<0.000000e+00> : vector<16xf32>
    %120 = vector.multi_reduction <add>, %119, %cst_61 [0] : vector<4x16xf32> to vector<16xf32>
    %121 = vector.shape_cast %120 : vector<16xf32> to vector<1x16xf32>
    %122 = tpu.reciprocal %121 {approx = true} : vector<1x16xf32> -> vector<1x16xf32>
    %123 = vector.broadcast %122 : vector<1x16xf32> to vector<4x16xf32>
    %124 = arith.mulf %119, %123 : vector<4x16xf32>
    %c0_62 = arith.constant 0 : index
    %c0_63 = arith.constant 0 : index
    %c0_64 = arith.constant 0 : index
    %125 = vector.load %arg11[%c0_62, %c0_63, %c0_64] : memref<2x32x4xf32, #tpu.memory_space<vmem>>, vector<1x32x4xf32>
    %126 = vector.shape_cast %125 : vector<1x32x4xf32> to vector<32x4xf32>
    %127 = vector.broadcast %1 : vector<1x16xf32> to vector<4x16xf32>
    %128 = arith.mulf %124, %127 : vector<4x16xf32>
    %cst_65 = arith.constant dense<0.000000e+00> : vector<32x16xf32>
    %129 = tpu.matmul %126, %128, %cst_65 {dimension_numbers = #tpu.dot_dimension_numbers<[1], [0], [0], [1], [0, 0, 1, 1], [], []>} : vector<32x4xf32>, vector<4x16xf32>, vector<32x16xf32> -> vector<32x16xf32>
    %c0_66 = arith.constant 0 : index
    %c0_67 = arith.constant 0 : index
    %c0_68 = arith.constant 0 : index
    %130 = vector.load %arg12[%c0_66, %c0_67, %c0_68] : memref<2x32x1xf32, #tpu.memory_space<vmem>>, vector<1x32x1xf32>
    %131 = vector.shape_cast %130 : vector<1x32x1xf32> to vector<32x1xf32>
    %132 = vector.broadcast %131 : vector<32x1xf32> to vector<32x16xf32>
    %133 = arith.addf %129, %132 : vector<32x16xf32>
    %c0_69 = arith.constant 0 : index
    %c0_70 = arith.constant 0 : index
    %c0_71 = arith.constant 0 : index
    %c0_72 = arith.constant 0 : index
    %134 = vector.load %arg13[%c0_69, %c0_70, %c0_71, %c0_72] : memref<2x9x32x32xf32, #tpu.memory_space<vmem>>, vector<1x9x32x32xf32>
    %135 = vector.shape_cast %134 : vector<1x9x32x32xf32> to vector<9x32x32xf32>
    %c0_73 = arith.constant 0 : index
    %c0_74 = arith.constant 0 : index
    %c0_75 = arith.constant 0 : index
    %c0_76 = arith.constant 0 : index
    %136 = vector.load %arg14[%c0_73, %c0_74, %c0_75, %c0_76] : memref<2x3x32x1xf32, #tpu.memory_space<vmem>>, vector<1x3x32x1xf32>
    %137 = vector.shape_cast %136 : vector<1x3x32x1xf32> to vector<3x32x1xf32>
    %c0_77 = arith.constant 0 : index
    %c0_78 = arith.constant 0 : index
    %c0_79 = arith.constant 0 : index
    %c0_80 = arith.constant 0 : index
    %138 = vector.load %arg15[%c0_77, %c0_78, %c0_79, %c0_80] : memref<2x3x32x32xf32, #tpu.memory_space<vmem>>, vector<1x3x32x32xf32>
    %139 = vector.shape_cast %138 : vector<1x3x32x32xf32> to vector<3x32x32xf32>
    %c0_81 = arith.constant 0 : index
    %c0_82 = arith.constant 0 : index
    %c0_83 = arith.constant 0 : index
    %c0_84 = arith.constant 0 : index
    %140 = vector.load %arg16[%c0_81, %c0_82, %c0_83, %c0_84] : memref<2x3x32x1xf32, #tpu.memory_space<vmem>>, vector<1x3x32x1xf32>
    %141 = vector.shape_cast %140 : vector<1x3x32x1xf32> to vector<3x32x1xf32>
    %c0_85 = arith.constant 0 : index
    %c0_86 = arith.constant 0 : index
    %c0_87 = arith.constant 0 : index
    %142 = vector.load %arg17[%c0_85, %c0_86, %c0_87] : memref<2x4x32xf32, #tpu.memory_space<vmem>>, vector<1x4x32xf32>
    %143 = vector.shape_cast %142 : vector<1x4x32xf32> to vector<4x32xf32>
    %c0_88 = arith.constant 0 : index
    %c0_89 = arith.constant 0 : index
    %c0_90 = arith.constant 0 : index
    %144 = vector.load %arg18[%c0_88, %c0_89, %c0_90] : memref<2x4x1xf32, #tpu.memory_space<vmem>>, vector<1x4x1xf32>
    %145 = vector.shape_cast %144 : vector<1x4x1xf32> to vector<4x1xf32>
    %c0_91 = arith.constant 0 : index
    %c4_92 = arith.constant 4 : index
    %146 = vector.load %arg20[%c0_91, %c4_92] : memref<32x24xf32, #tpu.memory_space<vmem>>, vector<32x16xf32>
    tpu.vector_store %arg20[%c0_91, %c4_92], %133 {strides = array<i32>} : memref<32x24xf32, #tpu.memory_space<vmem>>, vector<32x16xf32>,
    %c0_93 = arith.constant 0 : index
    %c3_94 = arith.constant 3 : index
    %147 = vector.load %arg20[%c0_93, %c3_94] : memref<32x24xf32, #tpu.memory_space<vmem>>, vector<32x16xf32>
    %c0_95 = arith.constant 0 : index
    %c5_96 = arith.constant 5 : index
    %148 = vector.load %arg20[%c0_95, %c5_96] : memref<32x24xf32, #tpu.memory_space<vmem>>, vector<32x16xf32>
    %149 = vector.extract_strided_slice %135 {offsets = [0, 0, 0], sizes = [1, 32, 32], strides = [1, 1, 1]} : vector<9x32x32xf32> to vector<1x32x32xf32>
    %150 = vector.shape_cast %149 : vector<1x32x32xf32> to vector<32x32xf32>
    %cst_97 = arith.constant dense<0.000000e+00> : vector<32x16xf32>
    %151 = tpu.matmul %150, %147, %cst_97 {dimension_numbers = #tpu.dot_dimension_numbers<[1], [0], [0], [1], [0, 0, 1, 1], [], []>} : vector<32x32xf32>, vector<32x16xf32>, vector<32x16xf32> -> vector<32x16xf32>
    %152 = vector.extract_strided_slice %135 {offsets = [1, 0, 0], sizes = [1, 32, 32], strides = [1, 1, 1]} : vector<9x32x32xf32> to vector<1x32x32xf32>
    %153 = vector.shape_cast %152 : vector<1x32x32xf32> to vector<32x32xf32>
    %cst_98 = arith.constant dense<0.000000e+00> : vector<32x16xf32>
    %154 = tpu.matmul %153, %133, %cst_98 {dimension_numbers = #tpu.dot_dimension_numbers<[1], [0], [0], [1], [0, 0, 1, 1], [], []>} : vector<32x32xf32>, vector<32x16xf32>, vector<32x16xf32> -> vector<32x16xf32>
    %155 = arith.addf %151, %154 : vector<32x16xf32>
    %156 = vector.extract_strided_slice %135 {offsets = [2, 0, 0], sizes = [1, 32, 32], strides = [1, 1, 1]} : vector<9x32x32xf32> to vector<1x32x32xf32>
    %157 = vector.shape_cast %156 : vector<1x32x32xf32> to vector<32x32xf32>
    %cst_99 = arith.constant dense<0.000000e+00> : vector<32x16xf32>
    %158 = tpu.matmul %157, %148, %cst_99 {dimension_numbers = #tpu.dot_dimension_numbers<[1], [0], [0], [1], [0, 0, 1, 1], [], []>} : vector<32x32xf32>, vector<32x16xf32>, vector<32x16xf32> -> vector<32x16xf32>
    %159 = arith.addf %155, %158 : vector<32x16xf32>
    %160 = vector.extract_strided_slice %137 {offsets = [0, 0, 0], sizes = [1, 32, 1], strides = [1, 1, 1]} : vector<3x32x1xf32> to vector<1x32x1xf32>
    %161 = vector.shape_cast %160 : vector<1x32x1xf32> to vector<32x1xf32>
    %162 = vector.broadcast %161 : vector<32x1xf32> to vector<32x16xf32>
    %163 = arith.addf %159, %162 : vector<32x16xf32>
    %cst_100 = arith.constant 0.000000e+00 : f32
    %164 = vector.broadcast %cst_100 : f32 to vector<32x16xf32>
    %165 = arith.maximumf %163, %164 : vector<32x16xf32>
    %166 = vector.extract_strided_slice %139 {offsets = [0, 0, 0], sizes = [1, 32, 32], strides = [1, 1, 1]} : vector<3x32x32xf32> to vector<1x32x32xf32>
    %167 = vector.shape_cast %166 : vector<1x32x32xf32> to vector<32x32xf32>
    %cst_101 = arith.constant dense<0.000000e+00> : vector<32x16xf32>
    %168 = tpu.matmul %167, %165, %cst_101 {dimension_numbers = #tpu.dot_dimension_numbers<[1], [0], [0], [1], [0, 0, 1, 1], [], []>} : vector<32x32xf32>, vector<32x16xf32>, vector<32x16xf32> -> vector<32x16xf32>
    %169 = vector.extract_strided_slice %141 {offsets = [0, 0, 0], sizes = [1, 32, 1], strides = [1, 1, 1]} : vector<3x32x1xf32> to vector<1x32x1xf32>
    %170 = vector.shape_cast %169 : vector<1x32x1xf32> to vector<32x1xf32>
    %171 = vector.broadcast %170 : vector<32x1xf32> to vector<32x16xf32>
    %172 = arith.addf %168, %171 : vector<32x16xf32>
    %173 = arith.addf %133, %172 : vector<32x16xf32>
    %174 = vector.broadcast %1 : vector<1x16xf32> to vector<32x16xf32>
    %175 = arith.mulf %173, %174 : vector<32x16xf32>
    %c0_102 = arith.constant 0 : index
    %c4_103 = arith.constant 4 : index
    %176 = vector.load %arg20[%c0_102, %c4_103] : memref<32x24xf32, #tpu.memory_space<vmem>>, vector<32x16xf32>
    tpu.vector_store %arg20[%c0_102, %c4_103], %175 {strides = array<i32>} : memref<32x24xf32, #tpu.memory_space<vmem>>, vector<32x16xf32>,
    %c0_104 = arith.constant 0 : index
    %c2_105 = arith.constant 2 : index
    %177 = vector.load %arg20[%c0_104, %c2_105] : memref<32x24xf32, #tpu.memory_space<vmem>>, vector<32x16xf32>
    %c0_106 = arith.constant 0 : index
    %c6_107 = arith.constant 6 : index
    %178 = vector.load %arg20[%c0_106, %c6_107] : memref<32x24xf32, #tpu.memory_space<vmem>>, vector<32x16xf32>
    %179 = vector.extract_strided_slice %135 {offsets = [3, 0, 0], sizes = [1, 32, 32], strides = [1, 1, 1]} : vector<9x32x32xf32> to vector<1x32x32xf32>
    %180 = vector.shape_cast %179 : vector<1x32x32xf32> to vector<32x32xf32>
    %cst_108 = arith.constant dense<0.000000e+00> : vector<32x16xf32>
    %181 = tpu.matmul %180, %177, %cst_108 {dimension_numbers = #tpu.dot_dimension_numbers<[1], [0], [0], [1], [0, 0, 1, 1], [], []>} : vector<32x32xf32>, vector<32x16xf32>, vector<32x16xf32> -> vector<32x16xf32>
    %182 = vector.extract_strided_slice %135 {offsets = [4, 0, 0], sizes = [1, 32, 32], strides = [1, 1, 1]} : vector<9x32x32xf32> to vector<1x32x32xf32>
    %183 = vector.shape_cast %182 : vector<1x32x32xf32> to vector<32x32xf32>
    %cst_109 = arith.constant dense<0.000000e+00> : vector<32x16xf32>
    %184 = tpu.matmul %183, %175, %cst_109 {dimension_numbers = #tpu.dot_dimension_numbers<[1], [0], [0], [1], [0, 0, 1, 1], [], []>} : vector<32x32xf32>, vector<32x16xf32>, vector<32x16xf32> -> vector<32x16xf32>
    %185 = arith.addf %181, %184 : vector<32x16xf32>
    %186 = vector.extract_strided_slice %135 {offsets = [5, 0, 0], sizes = [1, 32, 32], strides = [1, 1, 1]} : vector<9x32x32xf32> to vector<1x32x32xf32>
    %187 = vector.shape_cast %186 : vector<1x32x32xf32> to vector<32x32xf32>
    %cst_110 = arith.constant dense<0.000000e+00> : vector<32x16xf32>
    %188 = tpu.matmul %187, %178, %cst_110 {dimension_numbers = #tpu.dot_dimension_numbers<[1], [0], [0], [1], [0, 0, 1, 1], [], []>} : vector<32x32xf32>, vector<32x16xf32>, vector<32x16xf32> -> vector<32x16xf32>
    %189 = arith.addf %185, %188 : vector<32x16xf32>
    %190 = vector.extract_strided_slice %137 {offsets = [1, 0, 0], sizes = [1, 32, 1], strides = [1, 1, 1]} : vector<3x32x1xf32> to vector<1x32x1xf32>
    %191 = vector.shape_cast %190 : vector<1x32x1xf32> to vector<32x1xf32>
    %192 = vector.broadcast %191 : vector<32x1xf32> to vector<32x16xf32>
    %193 = arith.addf %189, %192 : vector<32x16xf32>
    %cst_111 = arith.constant 0.000000e+00 : f32
    %194 = vector.broadcast %cst_111 : f32 to vector<32x16xf32>
    %195 = arith.maximumf %193, %194 : vector<32x16xf32>
    %196 = vector.extract_strided_slice %139 {offsets = [1, 0, 0], sizes = [1, 32, 32], strides = [1, 1, 1]} : vector<3x32x32xf32> to vector<1x32x32xf32>
    %197 = vector.shape_cast %196 : vector<1x32x32xf32> to vector<32x32xf32>
    %cst_112 = arith.constant dense<0.000000e+00> : vector<32x16xf32>
    %198 = tpu.matmul %197, %195, %cst_112 {dimension_numbers = #tpu.dot_dimension_numbers<[1], [0], [0], [1], [0, 0, 1, 1], [], []>} : vector<32x32xf32>, vector<32x16xf32>, vector<32x16xf32> -> vector<32x16xf32>
    %199 = vector.extract_strided_slice %141 {offsets = [1, 0, 0], sizes = [1, 32, 1], strides = [1, 1, 1]} : vector<3x32x1xf32> to vector<1x32x1xf32>
    %200 = vector.shape_cast %199 : vector<1x32x1xf32> to vector<32x1xf32>
    %201 = vector.broadcast %200 : vector<32x1xf32> to vector<32x16xf32>
    %202 = arith.addf %198, %201 : vector<32x16xf32>
    %203 = arith.addf %175, %202 : vector<32x16xf32>
    %204 = vector.broadcast %1 : vector<1x16xf32> to vector<32x16xf32>
    %205 = arith.mulf %203, %204 : vector<32x16xf32>
    %c0_113 = arith.constant 0 : index
    %c4_114 = arith.constant 4 : index
    %206 = vector.load %arg20[%c0_113, %c4_114] : memref<32x24xf32, #tpu.memory_space<vmem>>, vector<32x16xf32>
    tpu.vector_store %arg20[%c0_113, %c4_114], %205 {strides = array<i32>} : memref<32x24xf32, #tpu.memory_space<vmem>>, vector<32x16xf32>,
    %c0_115 = arith.constant 0 : index
    %c0_116 = arith.constant 0 : index
    %207 = vector.load %arg20[%c0_115, %c0_116] : memref<32x24xf32, #tpu.memory_space<vmem>>, vector<32x16xf32>
    %c0_117 = arith.constant 0 : index
    %c8_118 = arith.constant 8 : index
    %208 = vector.load %arg20[%c0_117, %c8_118] : memref<32x24xf32, #tpu.memory_space<vmem>>, vector<32x16xf32>
    %209 = vector.extract_strided_slice %135 {offsets = [6, 0, 0], sizes = [1, 32, 32], strides = [1, 1, 1]} : vector<9x32x32xf32> to vector<1x32x32xf32>
    %210 = vector.shape_cast %209 : vector<1x32x32xf32> to vector<32x32xf32>
    %cst_119 = arith.constant dense<0.000000e+00> : vector<32x16xf32>
    %211 = tpu.matmul %210, %207, %cst_119 {dimension_numbers = #tpu.dot_dimension_numbers<[1], [0], [0], [1], [0, 0, 1, 1], [], []>} : vector<32x32xf32>, vector<32x16xf32>, vector<32x16xf32> -> vector<32x16xf32>
    %212 = vector.extract_strided_slice %135 {offsets = [7, 0, 0], sizes = [1, 32, 32], strides = [1, 1, 1]} : vector<9x32x32xf32> to vector<1x32x32xf32>
    %213 = vector.shape_cast %212 : vector<1x32x32xf32> to vector<32x32xf32>
    %cst_120 = arith.constant dense<0.000000e+00> : vector<32x16xf32>
    %214 = tpu.matmul %213, %205, %cst_120 {dimension_numbers = #tpu.dot_dimension_numbers<[1], [0], [0], [1], [0, 0, 1, 1], [], []>} : vector<32x32xf32>, vector<32x16xf32>, vector<32x16xf32> -> vector<32x16xf32>
    %215 = arith.addf %211, %214 : vector<32x16xf32>
    %216 = vector.extract_strided_slice %135 {offsets = [8, 0, 0], sizes = [1, 32, 32], strides = [1, 1, 1]} : vector<9x32x32xf32> to vector<1x32x32xf32>
    %217 = vector.shape_cast %216 : vector<1x32x32xf32> to vector<32x32xf32>
    %cst_121 = arith.constant dense<0.000000e+00> : vector<32x16xf32>
    %218 = tpu.matmul %217, %208, %cst_121 {dimension_numbers = #tpu.dot_dimension_numbers<[1], [0], [0], [1], [0, 0, 1, 1], [], []>} : vector<32x32xf32>, vector<32x16xf32>, vector<32x16xf32> -> vector<32x16xf32>
    %219 = arith.addf %215, %218 : vector<32x16xf32>
    %220 = vector.extract_strided_slice %137 {offsets = [2, 0, 0], sizes = [1, 32, 1], strides = [1, 1, 1]} : vector<3x32x1xf32> to vector<1x32x1xf32>
    %221 = vector.shape_cast %220 : vector<1x32x1xf32> to vector<32x1xf32>
    %222 = vector.broadcast %221 : vector<32x1xf32> to vector<32x16xf32>
    %223 = arith.addf %219, %222 : vector<32x16xf32>
    %cst_122 = arith.constant 0.000000e+00 : f32
    %224 = vector.broadcast %cst_122 : f32 to vector<32x16xf32>
    %225 = arith.maximumf %223, %224 : vector<32x16xf32>
    %226 = vector.extract_strided_slice %139 {offsets = [2, 0, 0], sizes = [1, 32, 32], strides = [1, 1, 1]} : vector<3x32x32xf32> to vector<1x32x32xf32>
    %227 = vector.shape_cast %226 : vector<1x32x32xf32> to vector<32x32xf32>
    %cst_123 = arith.constant dense<0.000000e+00> : vector<32x16xf32>
    %228 = tpu.matmul %227, %225, %cst_123 {dimension_numbers = #tpu.dot_dimension_numbers<[1], [0], [0], [1], [0, 0, 1, 1], [], []>} : vector<32x32xf32>, vector<32x16xf32>, vector<32x16xf32> -> vector<32x16xf32>
    %229 = vector.extract_strided_slice %141 {offsets = [2, 0, 0], sizes = [1, 32, 1], strides = [1, 1, 1]} : vector<3x32x1xf32> to vector<1x32x1xf32>
    %230 = vector.shape_cast %229 : vector<1x32x1xf32> to vector<32x1xf32>
    %231 = vector.broadcast %230 : vector<32x1xf32> to vector<32x16xf32>
    %232 = arith.addf %228, %231 : vector<32x16xf32>
    %233 = arith.addf %205, %232 : vector<32x16xf32>
    %234 = vector.broadcast %1 : vector<1x16xf32> to vector<32x16xf32>
    %235 = arith.mulf %233, %234 : vector<32x16xf32>
    %cst_124 = arith.constant dense<0.000000e+00> : vector<4x16xf32>
    %236 = tpu.matmul %143, %235, %cst_124 {dimension_numbers = #tpu.dot_dimension_numbers<[1], [0], [0], [1], [0, 0, 1, 1], [], []>} : vector<4x32xf32>, vector<32x16xf32>, vector<4x16xf32> -> vector<4x16xf32>
    %237 = vector.broadcast %145 : vector<4x1xf32> to vector<4x16xf32>
    %238 = arith.addf %236, %237 : vector<4x16xf32>
    %239 = vector.broadcast %1 : vector<1x16xf32> to vector<4x16xf32>
    %240 = arith.mulf %238, %239 : vector<4x16xf32>
    %c0_125 = arith.constant 0 : index
    %c1 = arith.constant 1 : index
    %c0_126 = arith.constant 0 : index
    %c0_127 = arith.constant 0 : index
    %241 = vector.load %arg19[%c0_125, %c1, %c0_126, %c0_127] : memref<1x3x4x16xf32, #tpu.memory_space<vmem>>, vector<1x1x4x16xf32>
    %242 = vector.shape_cast %241 : vector<1x1x4x16xf32> to vector<4x16xf32>
    %243 = vector.shape_cast %240 : vector<4x16xf32> to vector<1x1x4x16xf32>
    tpu.vector_store %arg19[%c0_125, %c1, %c0_126, %c0_127], %243 {strides = array<i32>} : memref<1x3x4x16xf32, #tpu.memory_space<vmem>>, vector<1x1x4x16xf32>,
    %cst_128 = arith.constant dense<0xFF800000> : vector<16xf32>
    %244 = vector.multi_reduction <maximumf>, %240, %cst_128 [0] : vector<4x16xf32> to vector<16xf32>
    %245 = vector.shape_cast %244 : vector<16xf32> to vector<1x16xf32>
    %246 = vector.broadcast %245 : vector<1x16xf32> to vector<4x16xf32>
    %247 = arith.subf %240, %246 : vector<4x16xf32>
    %248 = math.exp %247 : vector<4x16xf32>
    %cst_129 = arith.constant dense<0.000000e+00> : vector<16xf32>
    %249 = vector.multi_reduction <add>, %248, %cst_129 [0] : vector<4x16xf32> to vector<16xf32>
    %250 = vector.shape_cast %249 : vector<16xf32> to vector<1x16xf32>
    %251 = tpu.reciprocal %250 {approx = true} : vector<1x16xf32> -> vector<1x16xf32>
    %252 = vector.broadcast %251 : vector<1x16xf32> to vector<4x16xf32>
    %253 = arith.mulf %248, %252 : vector<4x16xf32>
    %c1_130 = arith.constant 1 : index
    %c0_131 = arith.constant 0 : index
    %c0_132 = arith.constant 0 : index
    %254 = vector.load %arg11[%c1_130, %c0_131, %c0_132] : memref<2x32x4xf32, #tpu.memory_space<vmem>>, vector<1x32x4xf32>
    %255 = vector.shape_cast %254 : vector<1x32x4xf32> to vector<32x4xf32>
    %256 = vector.broadcast %1 : vector<1x16xf32> to vector<4x16xf32>
    %257 = arith.mulf %253, %256 : vector<4x16xf32>
    %cst_133 = arith.constant dense<0.000000e+00> : vector<32x16xf32>
    %258 = tpu.matmul %255, %257, %cst_133 {dimension_numbers = #tpu.dot_dimension_numbers<[1], [0], [0], [1], [0, 0, 1, 1], [], []>} : vector<32x4xf32>, vector<4x16xf32>, vector<32x16xf32> -> vector<32x16xf32>
    %c1_134 = arith.constant 1 : index
    %c0_135 = arith.constant 0 : index
    %c0_136 = arith.constant 0 : index
    %259 = vector.load %arg12[%c1_134, %c0_135, %c0_136] : memref<2x32x1xf32, #tpu.memory_space<vmem>>, vector<1x32x1xf32>
    %260 = vector.shape_cast %259 : vector<1x32x1xf32> to vector<32x1xf32>
    %261 = vector.broadcast %260 : vector<32x1xf32> to vector<32x16xf32>
    %262 = arith.addf %258, %261 : vector<32x16xf32>
    %c1_137 = arith.constant 1 : index
    %c0_138 = arith.constant 0 : index
    %c0_139 = arith.constant 0 : index
    %c0_140 = arith.constant 0 : index
    %263 = vector.load %arg13[%c1_137, %c0_138, %c0_139, %c0_140] : memref<2x9x32x32xf32, #tpu.memory_space<vmem>>, vector<1x9x32x32xf32>
    %264 = vector.shape_cast %263 : vector<1x9x32x32xf32> to vector<9x32x32xf32>
    %c1_141 = arith.constant 1 : index
    %c0_142 = arith.constant 0 : index
    %c0_143 = arith.constant 0 : index
    %c0_144 = arith.constant 0 : index
    %265 = vector.load %arg14[%c1_141, %c0_142, %c0_143, %c0_144] : memref<2x3x32x1xf32, #tpu.memory_space<vmem>>, vector<1x3x32x1xf32>
    %266 = vector.shape_cast %265 : vector<1x3x32x1xf32> to vector<3x32x1xf32>
    %c1_145 = arith.constant 1 : index
    %c0_146 = arith.constant 0 : index
    %c0_147 = arith.constant 0 : index
    %c0_148 = arith.constant 0 : index
    %267 = vector.load %arg15[%c1_145, %c0_146, %c0_147, %c0_148] : memref<2x3x32x32xf32, #tpu.memory_space<vmem>>, vector<1x3x32x32xf32>
    %268 = vector.shape_cast %267 : vector<1x3x32x32xf32> to vector<3x32x32xf32>
    %c1_149 = arith.constant 1 : index
    %c0_150 = arith.constant 0 : index
    %c0_151 = arith.constant 0 : index
    %c0_152 = arith.constant 0 : index
    %269 = vector.load %arg16[%c1_149, %c0_150, %c0_151, %c0_152] : memref<2x3x32x1xf32, #tpu.memory_space<vmem>>, vector<1x3x32x1xf32>
    %270 = vector.shape_cast %269 : vector<1x3x32x1xf32> to vector<3x32x1xf32>
    %c1_153 = arith.constant 1 : index
    %c0_154 = arith.constant 0 : index
    %c0_155 = arith.constant 0 : index
    %271 = vector.load %arg17[%c1_153, %c0_154, %c0_155] : memref<2x4x32xf32, #tpu.memory_space<vmem>>, vector<1x4x32xf32>
    %272 = vector.shape_cast %271 : vector<1x4x32xf32> to vector<4x32xf32>
    %c1_156 = arith.constant 1 : index
    %c0_157 = arith.constant 0 : index
    %c0_158 = arith.constant 0 : index
    %273 = vector.load %arg18[%c1_156, %c0_157, %c0_158] : memref<2x4x1xf32, #tpu.memory_space<vmem>>, vector<1x4x1xf32>
    %274 = vector.shape_cast %273 : vector<1x4x1xf32> to vector<4x1xf32>
    %c0_159 = arith.constant 0 : index
    %c4_160 = arith.constant 4 : index
    %275 = vector.load %arg20[%c0_159, %c4_160] : memref<32x24xf32, #tpu.memory_space<vmem>>, vector<32x16xf32>
    tpu.vector_store %arg20[%c0_159, %c4_160], %262 {strides = array<i32>} : memref<32x24xf32, #tpu.memory_space<vmem>>, vector<32x16xf32>,
    %c0_161 = arith.constant 0 : index
    %c3_162 = arith.constant 3 : index
    %276 = vector.load %arg20[%c0_161, %c3_162] : memref<32x24xf32, #tpu.memory_space<vmem>>, vector<32x16xf32>
    %c0_163 = arith.constant 0 : index
    %c5_164 = arith.constant 5 : index
    %277 = vector.load %arg20[%c0_163, %c5_164] : memref<32x24xf32, #tpu.memory_space<vmem>>, vector<32x16xf32>
    %278 = vector.extract_strided_slice %264 {offsets = [0, 0, 0], sizes = [1, 32, 32], strides = [1, 1, 1]} : vector<9x32x32xf32> to vector<1x32x32xf32>
    %279 = vector.shape_cast %278 : vector<1x32x32xf32> to vector<32x32xf32>
    %cst_165 = arith.constant dense<0.000000e+00> : vector<32x16xf32>
    %280 = tpu.matmul %279, %276, %cst_165 {dimension_numbers = #tpu.dot_dimension_numbers<[1], [0], [0], [1], [0, 0, 1, 1], [], []>} : vector<32x32xf32>, vector<32x16xf32>, vector<32x16xf32> -> vector<32x16xf32>
    %281 = vector.extract_strided_slice %264 {offsets = [1, 0, 0], sizes = [1, 32, 32], strides = [1, 1, 1]} : vector<9x32x32xf32> to vector<1x32x32xf32>
    %282 = vector.shape_cast %281 : vector<1x32x32xf32> to vector<32x32xf32>
    %cst_166 = arith.constant dense<0.000000e+00> : vector<32x16xf32>
    %283 = tpu.matmul %282, %262, %cst_166 {dimension_numbers = #tpu.dot_dimension_numbers<[1], [0], [0], [1], [0, 0, 1, 1], [], []>} : vector<32x32xf32>, vector<32x16xf32>, vector<32x16xf32> -> vector<32x16xf32>
    %284 = arith.addf %280, %283 : vector<32x16xf32>
    %285 = vector.extract_strided_slice %264 {offsets = [2, 0, 0], sizes = [1, 32, 32], strides = [1, 1, 1]} : vector<9x32x32xf32> to vector<1x32x32xf32>
    %286 = vector.shape_cast %285 : vector<1x32x32xf32> to vector<32x32xf32>
    %cst_167 = arith.constant dense<0.000000e+00> : vector<32x16xf32>
    %287 = tpu.matmul %286, %277, %cst_167 {dimension_numbers = #tpu.dot_dimension_numbers<[1], [0], [0], [1], [0, 0, 1, 1], [], []>} : vector<32x32xf32>, vector<32x16xf32>, vector<32x16xf32> -> vector<32x16xf32>
    %288 = arith.addf %284, %287 : vector<32x16xf32>
    %289 = vector.extract_strided_slice %266 {offsets = [0, 0, 0], sizes = [1, 32, 1], strides = [1, 1, 1]} : vector<3x32x1xf32> to vector<1x32x1xf32>
    %290 = vector.shape_cast %289 : vector<1x32x1xf32> to vector<32x1xf32>
    %291 = vector.broadcast %290 : vector<32x1xf32> to vector<32x16xf32>
    %292 = arith.addf %288, %291 : vector<32x16xf32>
    %cst_168 = arith.constant 0.000000e+00 : f32
    %293 = vector.broadcast %cst_168 : f32 to vector<32x16xf32>
    %294 = arith.maximumf %292, %293 : vector<32x16xf32>
    %295 = vector.extract_strided_slice %268 {offsets = [0, 0, 0], sizes = [1, 32, 32], strides = [1, 1, 1]} : vector<3x32x32xf32> to vector<1x32x32xf32>
    %296 = vector.shape_cast %295 : vector<1x32x32xf32> to vector<32x32xf32>
    %cst_169 = arith.constant dense<0.000000e+00> : vector<32x16xf32>
    %297 = tpu.matmul %296, %294, %cst_169 {dimension_numbers = #tpu.dot_dimension_numbers<[1], [0], [0], [1], [0, 0, 1, 1], [], []>} : vector<32x32xf32>, vector<32x16xf32>, vector<32x16xf32> -> vector<32x16xf32>
    %298 = vector.extract_strided_slice %270 {offsets = [0, 0, 0], sizes = [1, 32, 1], strides = [1, 1, 1]} : vector<3x32x1xf32> to vector<1x32x1xf32>
    %299 = vector.shape_cast %298 : vector<1x32x1xf32> to vector<32x1xf32>
    %300 = vector.broadcast %299 : vector<32x1xf32> to vector<32x16xf32>
    %301 = arith.addf %297, %300 : vector<32x16xf32>
    %302 = arith.addf %262, %301 : vector<32x16xf32>
    %303 = vector.broadcast %1 : vector<1x16xf32> to vector<32x16xf32>
    %304 = arith.mulf %302, %303 : vector<32x16xf32>
    %c0_170 = arith.constant 0 : index
    %c4_171 = arith.constant 4 : index
    %305 = vector.load %arg20[%c0_170, %c4_171] : memref<32x24xf32, #tpu.memory_space<vmem>>, vector<32x16xf32>
    tpu.vector_store %arg20[%c0_170, %c4_171], %304 {strides = array<i32>} : memref<32x24xf32, #tpu.memory_space<vmem>>, vector<32x16xf32>,
    %c0_172 = arith.constant 0 : index
    %c2_173 = arith.constant 2 : index
    %306 = vector.load %arg20[%c0_172, %c2_173] : memref<32x24xf32, #tpu.memory_space<vmem>>, vector<32x16xf32>
    %c0_174 = arith.constant 0 : index
    %c6_175 = arith.constant 6 : index
    %307 = vector.load %arg20[%c0_174, %c6_175] : memref<32x24xf32, #tpu.memory_space<vmem>>, vector<32x16xf32>
    %308 = vector.extract_strided_slice %264 {offsets = [3, 0, 0], sizes = [1, 32, 32], strides = [1, 1, 1]} : vector<9x32x32xf32> to vector<1x32x32xf32>
    %309 = vector.shape_cast %308 : vector<1x32x32xf32> to vector<32x32xf32>
    %cst_176 = arith.constant dense<0.000000e+00> : vector<32x16xf32>
    %310 = tpu.matmul %309, %306, %cst_176 {dimension_numbers = #tpu.dot_dimension_numbers<[1], [0], [0], [1], [0, 0, 1, 1], [], []>} : vector<32x32xf32>, vector<32x16xf32>, vector<32x16xf32> -> vector<32x16xf32>
    %311 = vector.extract_strided_slice %264 {offsets = [4, 0, 0], sizes = [1, 32, 32], strides = [1, 1, 1]} : vector<9x32x32xf32> to vector<1x32x32xf32>
    %312 = vector.shape_cast %311 : vector<1x32x32xf32> to vector<32x32xf32>
    %cst_177 = arith.constant dense<0.000000e+00> : vector<32x16xf32>
    %313 = tpu.matmul %312, %304, %cst_177 {dimension_numbers = #tpu.dot_dimension_numbers<[1], [0], [0], [1], [0, 0, 1, 1], [], []>} : vector<32x32xf32>, vector<32x16xf32>, vector<32x16xf32> -> vector<32x16xf32>
    %314 = arith.addf %310, %313 : vector<32x16xf32>
    %315 = vector.extract_strided_slice %264 {offsets = [5, 0, 0], sizes = [1, 32, 32], strides = [1, 1, 1]} : vector<9x32x32xf32> to vector<1x32x32xf32>
    %316 = vector.shape_cast %315 : vector<1x32x32xf32> to vector<32x32xf32>
    %cst_178 = arith.constant dense<0.000000e+00> : vector<32x16xf32>
    %317 = tpu.matmul %316, %307, %cst_178 {dimension_numbers = #tpu.dot_dimension_numbers<[1], [0], [0], [1], [0, 0, 1, 1], [], []>} : vector<32x32xf32>, vector<32x16xf32>, vector<32x16xf32> -> vector<32x16xf32>
    %318 = arith.addf %314, %317 : vector<32x16xf32>
    %319 = vector.extract_strided_slice %266 {offsets = [1, 0, 0], sizes = [1, 32, 1], strides = [1, 1, 1]} : vector<3x32x1xf32> to vector<1x32x1xf32>
    %320 = vector.shape_cast %319 : vector<1x32x1xf32> to vector<32x1xf32>
    %321 = vector.broadcast %320 : vector<32x1xf32> to vector<32x16xf32>
    %322 = arith.addf %318, %321 : vector<32x16xf32>
    %cst_179 = arith.constant 0.000000e+00 : f32
    %323 = vector.broadcast %cst_179 : f32 to vector<32x16xf32>
    %324 = arith.maximumf %322, %323 : vector<32x16xf32>
    %325 = vector.extract_strided_slice %268 {offsets = [1, 0, 0], sizes = [1, 32, 32], strides = [1, 1, 1]} : vector<3x32x32xf32> to vector<1x32x32xf32>
    %326 = vector.shape_cast %325 : vector<1x32x32xf32> to vector<32x32xf32>
    %cst_180 = arith.constant dense<0.000000e+00> : vector<32x16xf32>
    %327 = tpu.matmul %326, %324, %cst_180 {dimension_numbers = #tpu.dot_dimension_numbers<[1], [0], [0], [1], [0, 0, 1, 1], [], []>} : vector<32x32xf32>, vector<32x16xf32>, vector<32x16xf32> -> vector<32x16xf32>
    %328 = vector.extract_strided_slice %270 {offsets = [1, 0, 0], sizes = [1, 32, 1], strides = [1, 1, 1]} : vector<3x32x1xf32> to vector<1x32x1xf32>
    %329 = vector.shape_cast %328 : vector<1x32x1xf32> to vector<32x1xf32>
    %330 = vector.broadcast %329 : vector<32x1xf32> to vector<32x16xf32>
    %331 = arith.addf %327, %330 : vector<32x16xf32>
    %332 = arith.addf %304, %331 : vector<32x16xf32>
    %333 = vector.broadcast %1 : vector<1x16xf32> to vector<32x16xf32>
    %334 = arith.mulf %332, %333 : vector<32x16xf32>
    %c0_181 = arith.constant 0 : index
    %c4_182 = arith.constant 4 : index
    %335 = vector.load %arg20[%c0_181, %c4_182] : memref<32x24xf32, #tpu.memory_space<vmem>>, vector<32x16xf32>
    tpu.vector_store %arg20[%c0_181, %c4_182], %334 {strides = array<i32>} : memref<32x24xf32, #tpu.memory_space<vmem>>, vector<32x16xf32>,
    %c0_183 = arith.constant 0 : index
    %c0_184 = arith.constant 0 : index
    %336 = vector.load %arg20[%c0_183, %c0_184] : memref<32x24xf32, #tpu.memory_space<vmem>>, vector<32x16xf32>
    %c0_185 = arith.constant 0 : index
    %c8_186 = arith.constant 8 : index
    %337 = vector.load %arg20[%c0_185, %c8_186] : memref<32x24xf32, #tpu.memory_space<vmem>>, vector<32x16xf32>
    %338 = vector.extract_strided_slice %264 {offsets = [6, 0, 0], sizes = [1, 32, 32], strides = [1, 1, 1]} : vector<9x32x32xf32> to vector<1x32x32xf32>
    %339 = vector.shape_cast %338 : vector<1x32x32xf32> to vector<32x32xf32>
    %cst_187 = arith.constant dense<0.000000e+00> : vector<32x16xf32>
    %340 = tpu.matmul %339, %336, %cst_187 {dimension_numbers = #tpu.dot_dimension_numbers<[1], [0], [0], [1], [0, 0, 1, 1], [], []>} : vector<32x32xf32>, vector<32x16xf32>, vector<32x16xf32> -> vector<32x16xf32>
    %341 = vector.extract_strided_slice %264 {offsets = [7, 0, 0], sizes = [1, 32, 32], strides = [1, 1, 1]} : vector<9x32x32xf32> to vector<1x32x32xf32>
    %342 = vector.shape_cast %341 : vector<1x32x32xf32> to vector<32x32xf32>
    %cst_188 = arith.constant dense<0.000000e+00> : vector<32x16xf32>
    %343 = tpu.matmul %342, %334, %cst_188 {dimension_numbers = #tpu.dot_dimension_numbers<[1], [0], [0], [1], [0, 0, 1, 1], [], []>} : vector<32x32xf32>, vector<32x16xf32>, vector<32x16xf32> -> vector<32x16xf32>
    %344 = arith.addf %340, %343 : vector<32x16xf32>
    %345 = vector.extract_strided_slice %264 {offsets = [8, 0, 0], sizes = [1, 32, 32], strides = [1, 1, 1]} : vector<9x32x32xf32> to vector<1x32x32xf32>
    %346 = vector.shape_cast %345 : vector<1x32x32xf32> to vector<32x32xf32>
    %cst_189 = arith.constant dense<0.000000e+00> : vector<32x16xf32>
    %347 = tpu.matmul %346, %337, %cst_189 {dimension_numbers = #tpu.dot_dimension_numbers<[1], [0], [0], [1], [0, 0, 1, 1], [], []>} : vector<32x32xf32>, vector<32x16xf32>, vector<32x16xf32> -> vector<32x16xf32>
    %348 = arith.addf %344, %347 : vector<32x16xf32>
    %349 = vector.extract_strided_slice %266 {offsets = [2, 0, 0], sizes = [1, 32, 1], strides = [1, 1, 1]} : vector<3x32x1xf32> to vector<1x32x1xf32>
    %350 = vector.shape_cast %349 : vector<1x32x1xf32> to vector<32x1xf32>
    %351 = vector.broadcast %350 : vector<32x1xf32> to vector<32x16xf32>
    %352 = arith.addf %348, %351 : vector<32x16xf32>
    %cst_190 = arith.constant 0.000000e+00 : f32
    %353 = vector.broadcast %cst_190 : f32 to vector<32x16xf32>
    %354 = arith.maximumf %352, %353 : vector<32x16xf32>
    %355 = vector.extract_strided_slice %268 {offsets = [2, 0, 0], sizes = [1, 32, 32], strides = [1, 1, 1]} : vector<3x32x32xf32> to vector<1x32x32xf32>
    %356 = vector.shape_cast %355 : vector<1x32x32xf32> to vector<32x32xf32>
    %cst_191 = arith.constant dense<0.000000e+00> : vector<32x16xf32>
    %357 = tpu.matmul %356, %354, %cst_191 {dimension_numbers = #tpu.dot_dimension_numbers<[1], [0], [0], [1], [0, 0, 1, 1], [], []>} : vector<32x32xf32>, vector<32x16xf32>, vector<32x16xf32> -> vector<32x16xf32>
    %358 = vector.extract_strided_slice %270 {offsets = [2, 0, 0], sizes = [1, 32, 1], strides = [1, 1, 1]} : vector<3x32x1xf32> to vector<1x32x1xf32>
    %359 = vector.shape_cast %358 : vector<1x32x1xf32> to vector<32x1xf32>
    %360 = vector.broadcast %359 : vector<32x1xf32> to vector<32x16xf32>
    %361 = arith.addf %357, %360 : vector<32x16xf32>
    %362 = arith.addf %334, %361 : vector<32x16xf32>
    %363 = vector.broadcast %1 : vector<1x16xf32> to vector<32x16xf32>
    %364 = arith.mulf %362, %363 : vector<32x16xf32>
    %cst_192 = arith.constant dense<0.000000e+00> : vector<4x16xf32>
    %365 = tpu.matmul %272, %364, %cst_192 {dimension_numbers = #tpu.dot_dimension_numbers<[1], [0], [0], [1], [0, 0, 1, 1], [], []>} : vector<4x32xf32>, vector<32x16xf32>, vector<4x16xf32> -> vector<4x16xf32>
    %366 = vector.broadcast %274 : vector<4x1xf32> to vector<4x16xf32>
    %367 = arith.addf %365, %366 : vector<4x16xf32>
    %368 = vector.broadcast %1 : vector<1x16xf32> to vector<4x16xf32>
    %369 = arith.mulf %367, %368 : vector<4x16xf32>
    %c0_193 = arith.constant 0 : index
    %c2_194 = arith.constant 2 : index
    %c0_195 = arith.constant 0 : index
    %c0_196 = arith.constant 0 : index
    %370 = vector.load %arg19[%c0_193, %c2_194, %c0_195, %c0_196] : memref<1x3x4x16xf32, #tpu.memory_space<vmem>>, vector<1x1x4x16xf32>
    %371 = vector.shape_cast %370 : vector<1x1x4x16xf32> to vector<4x16xf32>
    %372 = vector.shape_cast %369 : vector<4x16xf32> to vector<1x1x4x16xf32>
    tpu.vector_store %arg19[%c0_193, %c2_194, %c0_195, %c0_196], %372 {strides = array<i32>} : memref<1x3x4x16xf32, #tpu.memory_space<vmem>>, vector<1x1x4x16xf32>,
    return
  }
  func.func @transform_0(%arg0: i32) -> (i32, i32, i32) {
    %c0_i32 = arith.constant 0 : i32
    %c0_i32_0 = arith.constant 0 : i32
    %c0_i32_1 = arith.constant 0 : i32
    return %arg0, %c0_i32, %c0_i32_0 : i32, i32, i32
  }
  func.func @transform_1(%arg0: i32) -> (i32, i32, i32) {
    %c0_i32 = arith.constant 0 : i32
    %c0_i32_0 = arith.constant 0 : i32
    %c0_i32_1 = arith.constant 0 : i32
    return %arg0, %c0_i32, %c0_i32_0 : i32, i32, i32
  }
  func.func @transform_2(%arg0: i32) -> (i32, i32) {
    %c0_i32 = arith.constant 0 : i32
    %c0_i32_0 = arith.constant 0 : i32
    %c0_i32_1 = arith.constant 0 : i32
    return %c0_i32, %c0_i32_0 : i32, i32
  }
  func.func @transform_3(%arg0: i32) -> (i32, i32) {
    %c0_i32 = arith.constant 0 : i32
    %c0_i32_0 = arith.constant 0 : i32
    %c0_i32_1 = arith.constant 0 : i32
    return %c0_i32, %c0_i32_0 : i32, i32
  }
  func.func @transform_4(%arg0: i32) -> (i32, i32, i32) {
    %c0_i32 = arith.constant 0 : i32
    %c0_i32_0 = arith.constant 0 : i32
    %c0_i32_1 = arith.constant 0 : i32
    %c0_i32_2 = arith.constant 0 : i32
    return %c0_i32, %c0_i32_0, %c0_i32_1 : i32, i32, i32
  }
  func.func @transform_5(%arg0: i32) -> (i32, i32, i32) {
    %c0_i32 = arith.constant 0 : i32
    %c0_i32_0 = arith.constant 0 : i32
    %c0_i32_1 = arith.constant 0 : i32
    %c0_i32_2 = arith.constant 0 : i32
    return %c0_i32, %c0_i32_0, %c0_i32_1 : i32, i32, i32
  }
  func.func @transform_6(%arg0: i32) -> (i32, i32, i32) {
    %c0_i32 = arith.constant 0 : i32
    %c0_i32_0 = arith.constant 0 : i32
    %c0_i32_1 = arith.constant 0 : i32
    %c0_i32_2 = arith.constant 0 : i32
    return %c0_i32, %c0_i32_0, %c0_i32_1 : i32, i32, i32
  }
  func.func @transform_7(%arg0: i32) -> (i32, i32, i32) {
    %c0_i32 = arith.constant 0 : i32
    %c0_i32_0 = arith.constant 0 : i32
    %c0_i32_1 = arith.constant 0 : i32
    %c0_i32_2 = arith.constant 0 : i32
    return %c0_i32, %c0_i32_0, %c0_i32_1 : i32, i32, i32
  }
  func.func @transform_8(%arg0: i32) -> (i32, i32) {
    %c0_i32 = arith.constant 0 : i32
    %c0_i32_0 = arith.constant 0 : i32
    %c0_i32_1 = arith.constant 0 : i32
    return %c0_i32, %c0_i32_0 : i32, i32
  }
  func.func @transform_9(%arg0: i32) -> (i32, i32) {
    %c0_i32 = arith.constant 0 : i32
    %c0_i32_0 = arith.constant 0 : i32
    %c0_i32_1 = arith.constant 0 : i32
    return %c0_i32, %c0_i32_0 : i32, i32
  }
  func.func @transform_10(%arg0: i32) -> (i32, i32, i32) {
    %c0_i32 = arith.constant 0 : i32
    %c0_i32_0 = arith.constant 0 : i32
    %c0_i32_1 = arith.constant 0 : i32
    %c0_i32_2 = arith.constant 0 : i32
    return %c0_i32, %c0_i32_0, %c0_i32_1 : i32, i32, i32
  }
  func.func @transform_11(%arg0: i32) -> (i32, i32, i32) {
    %c0_i32 = arith.constant 0 : i32
    %c0_i32_0 = arith.constant 0 : i32
    %c0_i32_1 = arith.constant 0 : i32
    %c0_i32_2 = arith.constant 0 : i32
    return %c0_i32, %c0_i32_0, %c0_i32_1 : i32, i32, i32
  }
  func.func @transform_12(%arg0: i32) -> (i32, i32, i32, i32) {
    %c0_i32 = arith.constant 0 : i32
    %c0_i32_0 = arith.constant 0 : i32
    %c0_i32_1 = arith.constant 0 : i32
    %c0_i32_2 = arith.constant 0 : i32
    %c0_i32_3 = arith.constant 0 : i32
    return %c0_i32, %c0_i32_0, %c0_i32_1, %c0_i32_2 : i32, i32, i32, i32
  }
  func.func @transform_13(%arg0: i32) -> (i32, i32, i32, i32) {
    %c0_i32 = arith.constant 0 : i32
    %c0_i32_0 = arith.constant 0 : i32
    %c0_i32_1 = arith.constant 0 : i32
    %c0_i32_2 = arith.constant 0 : i32
    %c0_i32_3 = arith.constant 0 : i32
    return %c0_i32, %c0_i32_0, %c0_i32_1, %c0_i32_2 : i32, i32, i32, i32
  }
  func.func @transform_14(%arg0: i32) -> (i32, i32, i32, i32) {
    %c0_i32 = arith.constant 0 : i32
    %c0_i32_0 = arith.constant 0 : i32
    %c0_i32_1 = arith.constant 0 : i32
    %c0_i32_2 = arith.constant 0 : i32
    %c0_i32_3 = arith.constant 0 : i32
    return %c0_i32, %c0_i32_0, %c0_i32_1, %c0_i32_2 : i32, i32, i32, i32
  }
  func.func @transform_15(%arg0: i32) -> (i32, i32, i32, i32) {
    %c0_i32 = arith.constant 0 : i32
    %c0_i32_0 = arith.constant 0 : i32
    %c0_i32_1 = arith.constant 0 : i32
    %c0_i32_2 = arith.constant 0 : i32
    %c0_i32_3 = arith.constant 0 : i32
    return %c0_i32, %c0_i32_0, %c0_i32_1, %c0_i32_2 : i32, i32, i32, i32
  }
  func.func @transform_16(%arg0: i32) -> (i32, i32, i32) {
    %c0_i32 = arith.constant 0 : i32
    %c0_i32_0 = arith.constant 0 : i32
    %c0_i32_1 = arith.constant 0 : i32
    %c0_i32_2 = arith.constant 0 : i32
    return %c0_i32, %c0_i32_0, %c0_i32_1 : i32, i32, i32
  }
  func.func @transform_17(%arg0: i32) -> (i32, i32, i32) {
    %c0_i32 = arith.constant 0 : i32
    %c0_i32_0 = arith.constant 0 : i32
    %c0_i32_1 = arith.constant 0 : i32
    %c0_i32_2 = arith.constant 0 : i32
    return %c0_i32, %c0_i32_0, %c0_i32_1 : i32, i32, i32
  }
  func.func @transform_18(%arg0: i32) -> (i32, i32, i32, i32) {
    %c0_i32 = arith.constant 0 : i32
    %c0_i32_0 = arith.constant 0 : i32
    %c0_i32_1 = arith.constant 0 : i32
    %c0_i32_2 = arith.constant 0 : i32
    return %arg0, %c0_i32, %c0_i32_0, %c0_i32_1 : i32, i32, i32, i32
  }
}

</mosaic_0001>

<llo_original>
// kernel: multi_stage_forward.1
$region0: #{multi_stage_forward.1}
  #allocation0 [shape = 'u32[]', space=smem, size = 0x4, offset = 0x4, fixed_abs, tag = 'smem constant byte address 0x4 - core index']
  #allocation1 [shape = 'u32[72,128]{1,0:T(1,128)}', space=vmem, size = 0x9000, scoped, tag = 'internal scratch']
  #allocation2 [shape = 'f32[32,24]{1,0:T(8,128)}', space=vmem, size = 0x4000, scoped, tag = 'scratch operand']
  %s0 = inlined_call_operand.vmem [shape: bf16[2,2048,16], index: 0, kind: input, shape index: {}]
  %s1 = inlined_call_operand.vmem [shape: f32[2,1,16], index: 1, kind: input, shape index: {}]
  %s2 = inlined_call_operand.vmem [shape: bf16[32,2048], index: 2, kind: input, shape index: {}]
  %s3 = inlined_call_operand.vmem [shape: f32[32,1], index: 3, kind: input, shape index: {}]
  %s4 = inlined_call_operand.vmem [shape: f32[9,32,32], index: 4, kind: input, shape index: {}]
  %s5 = inlined_call_operand.vmem [shape: f32[3,32,1], index: 5, kind: input, shape index: {}]
  %s6 = inlined_call_operand.vmem [shape: f32[3,32,32], index: 6, kind: input, shape index: {}]
  %s7 = inlined_call_operand.vmem [shape: f32[3,32,1], index: 7, kind: input, shape index: {}]
  %s8 = inlined_call_operand.vmem [shape: f32[4,32], index: 8, kind: input, shape index: {}]
  %s9 = inlined_call_operand.vmem [shape: f32[4,1], index: 9, kind: input, shape index: {}]
  %s10 = inlined_call_operand.vmem [shape: f32[2,32,4], index: 10, kind: input, shape index: {}]
  %s11 = inlined_call_operand.vmem [shape: f32[2,32,1], index: 11, kind: input, shape index: {}]
  %s12 = inlined_call_operand.vmem [shape: f32[2,9,32,32], index: 12, kind: input, shape index: {}]
  %s13 = inlined_call_operand.vmem [shape: f32[2,3,32,1], index: 13, kind: input, shape index: {}]
  %s14 = inlined_call_operand.vmem [shape: f32[2,3,32,32], index: 14, kind: input, shape index: {}]
  %s15 = inlined_call_operand.vmem [shape: f32[2,3,32,1], index: 15, kind: input, shape index: {}]
  %s16 = inlined_call_operand.vmem [shape: f32[2,4,32], index: 16, kind: input, shape index: {}]
  %s17 = inlined_call_operand.vmem [shape: f32[2,4,1], index: 17, kind: input, shape index: {}]
  %s18 = inlined_call_operand.vmem [shape: f32[2,3,4,16], index: 18, kind: output, shape index: {}]
  %s19 = sld [smem:[#allocation0]]
  $region105: #{multi_stage_forward.1} parent=0
    _
  %s21 = ssub.s32 1, %s19
  %s22 = scalar_select 0, %s21, %s19
  loop: start=0, step=1, limit=4
  $region2: #{multi_stage_forward.1} parent=0 // loop_pre_header
    _
  $region3: #{multi_stage_forward.1} parent=0 // loop_header
    %s24 = sphi 0, %s28
    %p25 = scmp.ge.s32.totalorder %s24, 4
    %s34 = sphi 0, %s36
    %s37 = sphi 0, %s34
    %s38 = sphi 0, %s37
    %s54 = sphi 0, %s38
    %s60 = sphi 0, %s62
    %s63 = sphi 0, %s60
    %s64 = sphi 0, %s63
    %s80 = sphi 0, %s64
    %s84 = sphi 0, %s84
    %s86 = sphi 0, %s84
    %s87 = sphi 0, %s86
    %s101 = sphi 0, %s87
    %s105 = sphi 0, %s105
    %s107 = sphi 0, %s105
    %s108 = sphi 0, %s107
    %s122 = sphi 0, %s108
    %s126 = sphi 0, %s126
    %s128 = sphi 0, %s126
    %s129 = sphi 0, %s128
    %s143 = sphi 0, %s129
    %s147 = sphi 0, %s147
    %s149 = sphi 0, %s147
    %s150 = sphi 0, %s149
    %s164 = sphi 0, %s150
    %s168 = sphi 0, %s168
    %s170 = sphi 0, %s168
    %s171 = sphi 0, %s170
    %s185 = sphi 0, %s171
    %s189 = sphi 0, %s189
    %s191 = sphi 0, %s189
    %s192 = sphi 0, %s191
    %s206 = sphi 0, %s192
    %s210 = sphi 0, %s210
    %s212 = sphi 0, %s210
    %s213 = sphi 0, %s212
    %s227 = sphi 0, %s213
    %s231 = sphi 0, %s231
    %s233 = sphi 0, %s231
    %s234 = sphi 0, %s233
    %s248 = sphi 0, %s234
    %s252 = sphi 0, %s252
    %s254 = sphi 0, %s252
    %s255 = sphi 0, %s254
    %s269 = sphi 0, %s255
    %s273 = sphi 0, %s273
    %s275 = sphi 0, %s273
    %s276 = sphi 0, %s275
    %s290 = sphi 0, %s276
    %s294 = sphi 0, %s294
    %s296 = sphi 0, %s294
    %s297 = sphi 0, %s296
    %s311 = sphi 0, %s297
    %s315 = sphi 0, %s315
    %s317 = sphi 0, %s315
    %s318 = sphi 0, %s317
    %s332 = sphi 0, %s318
    %s336 = sphi 0, %s336
    %s338 = sphi 0, %s336
    %s339 = sphi 0, %s338
    %s353 = sphi 0, %s339
    %s357 = sphi 0, %s357
    %s359 = sphi 0, %s357
    %s360 = sphi 0, %s359
    %s374 = sphi 0, %s360
    %s378 = sphi 0, %s378
    %s380 = sphi 0, %s378
    %s381 = sphi 0, %s380
    %s395 = sphi 0, %s381
    %s399 = sphi 0, %s399
    %s401 = sphi 0, %s399
    %s402 = sphi 0, %s401
    %s416 = sphi 0, %s402
    %s422 = sphi 0, %s424
    %s425 = sphi 0, %s422
    %s426 = sphi 0, %s425
    %s442 = sphi 0, %s426
  $region4: #{multi_stage_forward.1} parent=0 // loop_header_branch
    %27 = sbr.rel (%p25) target = $region8
  $region5: #{multi_stage_forward.1} parent=0 // loop_body
    %s29 = ssub.s32 %s24, 1
    %s30 = ssub.s32 %s24, 2
    %s31 = sadd.s32 %s24, 1
    %s32 = ssub.s32 %s24, %s31
    %p33 = scmp.eq.s32.totalorder %s32, 0
    %s35 = sadd.s32 %s34, 1
    %s36 = scalar_select %p33, %s34, %s35
    %p39 = pneg %p33
    %p40 = scmp.eq.s32.totalorder %s24, 1
    %p41 = por %p39, %p40
    %p42 = scmp.ne.s32.totalorder %s34, %s37
    %p43 = scmp.eq.s32.totalorder %s24, 0
    %p44 = por %p42, %p43
    %p45 = scmp.ne.s32.totalorder %s34, %s37
    %p46 = scmp.eq.s32.totalorder %s29, 1
    %p47 = por %p45, %p46
    %p48 = scmp.ne.s32.totalorder %s37, %s38
    %p49 = scmp.eq.s32.totalorder %s29, 0
    %p50 = por %p48, %p49
    %p51 = scmp.ne.s32.totalorder %s37, %s38
    %p52 = scmp.eq.s32.totalorder %s30, 1
    %p53 = por %p51, %p52
    %p55 = scmp.ne.s32.totalorder %s38, %s54
    %p56 = scmp.eq.s32.totalorder %s30, 0
    %p57 = por %p55, %p56
    %s58 = ssub.s32 %s24, %s31
    %p59 = scmp.eq.s32.totalorder %s58, 0
    %s61 = sadd.s32 %s60, 1
    %s62 = scalar_select %p59, %s60, %s61
    %p65 = pneg %p59
    %p66 = scmp.eq.s32.totalorder %s24, 1
    %p67 = por %p65, %p66
    %p68 = scmp.ne.s32.totalorder %s60, %s63
    %p69 = scmp.eq.s32.totalorder %s24, 0
    %p70 = por %p68, %p69
    %p71 = scmp.ne.s32.totalorder %s60, %s63
    %p72 = scmp.eq.s32.totalorder %s29, 1
    %p73 = por %p71, %p72
    %p74 = scmp.ne.s32.totalorder %s63, %s64
    %p75 = scmp.eq.s32.totalorder %s29, 0
    %p76 = por %p74, %p75
    %p77 = scmp.ne.s32.totalorder %s63, %s64
    %p78 = scmp.eq.s32.totalorder %s30, 1
    %p79 = por %p77, %p78
    %p81 = scmp.ne.s32.totalorder %s64, %s80
    %p82 = scmp.eq.s32.totalorder %s30, 0
    %p83 = por %p81, %p82
    %s85 = sadd.s32 %s84, 1
    %p88 = scmp.eq.s32.totalorder %s24, 1
    %p89 = scmp.ne.s32.totalorder %s84, %s86
    %p90 = scmp.eq.s32.totalorder %s24, 0
    %p91 = por %p89, %p90
    %p92 = scmp.ne.s32.totalorder %s84, %s86
    %p93 = scmp.eq.s32.totalorder %s29, 1
    %p94 = por %p92, %p93
    %p95 = scmp.ne.s32.totalorder %s86, %s87
    %p96 = scmp.eq.s32.totalorder %s29, 0
    %p97 = por %p95, %p96
    %p98 = scmp.ne.s32.totalorder %s86, %s87
    %p99 = scmp.eq.s32.totalorder %s30, 1
    %p100 = por %p98, %p99
    %p102 = scmp.ne.s32.totalorder %s87, %s101
    %p103 = scmp.eq.s32.totalorder %s30, 0
    %p104 = por %p102, %p103
    %s106 = sadd.s32 %s105, 1
    %p109 = scmp.eq.s32.totalorder %s24, 1
    %p110 = scmp.ne.s32.totalorder %s105, %s107
    %p111 = scmp.eq.s32.totalorder %s24, 0
    %p112 = por %p110, %p111
    %p113 = scmp.ne.s32.totalorder %s105, %s107
    %p114 = scmp.eq.s32.totalorder %s29, 1
    %p115 = por %p113, %p114
    %p116 = scmp.ne.s32.totalorder %s107, %s108
    %p117 = scmp.eq.s32.totalorder %s29, 0
    %p118 = por %p116, %p117
    %p119 = scmp.ne.s32.totalorder %s107, %s108
    %p120 = scmp.eq.s32.totalorder %s30, 1
    %p121 = por %p119, %p120
    %p123 = scmp.ne.s32.totalorder %s108, %s122
    %p124 = scmp.eq.s32.totalorder %s30, 0
    %p125 = por %p123, %p124
    %s127 = sadd.s32 %s126, 1
    %p130 = scmp.eq.s32.totalorder %s24, 1
    %p131 = scmp.ne.s32.totalorder %s126, %s128
    %p132 = scmp.eq.s32.totalorder %s24, 0
    %p133 = por %p131, %p132
    %p134 = scmp.ne.s32.totalorder %s126, %s128
    %p135 = scmp.eq.s32.totalorder %s29, 1
    %p136 = por %p134, %p135
    %p137 = scmp.ne.s32.totalorder %s128, %s129
    %p138 = scmp.eq.s32.totalorder %s29, 0
    %p139 = por %p137, %p138
    %p140 = scmp.ne.s32.totalorder %s128, %s129
    %p141 = scmp.eq.s32.totalorder %s30, 1
    %p142 = por %p140, %p141
    %p144 = scmp.ne.s32.totalorder %s129, %s143
    %p145 = scmp.eq.s32.totalorder %s30, 0
    %p146 = por %p144, %p145
    %s148 = sadd.s32 %s147, 1
    %p151 = scmp.eq.s32.totalorder %s24, 1
    %p152 = scmp.ne.s32.totalorder %s147, %s149
    %p153 = scmp.eq.s32.totalorder %s24, 0
    %p154 = por %p152, %p153
    %p155 = scmp.ne.s32.totalorder %s147, %s149
    %p156 = scmp.eq.s32.totalorder %s29, 1
    %p157 = por %p155, %p156
    %p158 = scmp.ne.s32.totalorder %s149, %s150
    %p159 = scmp.eq.s32.totalorder %s29, 0
    %p160 = por %p158, %p159
    %p161 = scmp.ne.s32.totalorder %s149, %s150
    %p162 = scmp.eq.s32.totalorder %s30, 1
    %p163 = por %p161, %p162
    %p165 = scmp.ne.s32.totalorder %s150, %s164
    %p166 = scmp.eq.s32.totalorder %s30, 0
    %p167 = por %p165, %p166
    %s169 = sadd.s32 %s168, 1
    %p172 = scmp.eq.s32.totalorder %s24, 1
    %p173 = scmp.ne.s32.totalorder %s168, %s170
    %p174 = scmp.eq.s32.totalorder %s24, 0
    %p175 = por %p173, %p174
    %p176 = scmp.ne.s32.totalorder %s168, %s170
    %p177 = scmp.eq.s32.totalorder %s29, 1
    %p178 = por %p176, %p177
    %p179 = scmp.ne.s32.totalorder %s170, %s171
    %p180 = scmp.eq.s32.totalorder %s29, 0
    %p181 = por %p179, %p180
    %p182 = scmp.ne.s32.totalorder %s170, %s171
    %p183 = scmp.eq.s32.totalorder %s30, 1
    %p184 = por %p182, %p183
    %p186 = scmp.ne.s32.totalorder %s171, %s185
    %p187 = scmp.eq.s32.totalorder %s30, 0
    %p188 = por %p186, %p187
    %s190 = sadd.s32 %s189, 1
    %p193 = scmp.eq.s32.totalorder %s24, 1
    %p194 = scmp.ne.s32.totalorder %s189, %s191
    %p195 = scmp.eq.s32.totalorder %s24, 0
    %p196 = por %p194, %p195
    %p197 = scmp.ne.s32.totalorder %s189, %s191
    %p198 = scmp.eq.s32.totalorder %s29, 1
    %p199 = por %p197, %p198
    %p200 = scmp.ne.s32.totalorder %s191, %s192
    %p201 = scmp.eq.s32.totalorder %s29, 0
    %p202 = por %p200, %p201
    %p203 = scmp.ne.s32.totalorder %s191, %s192
    %p204 = scmp.eq.s32.totalorder %s30, 1
    %p205 = por %p203, %p204
    %p207 = scmp.ne.s32.totalorder %s192, %s206
    %p208 = scmp.eq.s32.totalorder %s30, 0
    %p209 = por %p207, %p208
    %s211 = sadd.s32 %s210, 1
    %p214 = scmp.eq.s32.totalorder %s24, 1
    %p215 = scmp.ne.s32.totalorder %s210, %s212
    %p216 = scmp.eq.s32.totalorder %s24, 0
    %p217 = por %p215, %p216
    %p218 = scmp.ne.s32.totalorder %s210, %s212
    %p219 = scmp.eq.s32.totalorder %s29, 1
    %p220 = por %p218, %p219
    %p221 = scmp.ne.s32.totalorder %s212, %s213
    %p222 = scmp.eq.s32.totalorder %s29, 0
    %p223 = por %p221, %p222
    %p224 = scmp.ne.s32.totalorder %s212, %s213
    %p225 = scmp.eq.s32.totalorder %s30, 1
    %p226 = por %p224, %p225
    %p228 = scmp.ne.s32.totalorder %s213, %s227
    %p229 = scmp.eq.s32.totalorder %s30, 0
    %p230 = por %p228, %p229
    %s232 = sadd.s32 %s231, 1
    %p235 = scmp.eq.s32.totalorder %s24, 1
    %p236 = scmp.ne.s32.totalorder %s231, %s233
    %p237 = scmp.eq.s32.totalorder %s24, 0
    %p238 = por %p236, %p237
    %p239 = scmp.ne.s32.totalorder %s231, %s233
    %p240 = scmp.eq.s32.totalorder %s29, 1
    %p241 = por %p239, %p240
    %p242 = scmp.ne.s32.totalorder %s233, %s234
    %p243 = scmp.eq.s32.totalorder %s29, 0
    %p244 = por %p242, %p243
    %p245 = scmp.ne.s32.totalorder %s233, %s234
    %p246 = scmp.eq.s32.totalorder %s30, 1
    %p247 = por %p245, %p246
    %p249 = scmp.ne.s32.totalorder %s234, %s248
    %p250 = scmp.eq.s32.totalorder %s30, 0
    %p251 = por %p249, %p250
    %s253 = sadd.s32 %s252, 1
    %p256 = scmp.eq.s32.totalorder %s24, 1
    %p257 = scmp.ne.s32.totalorder %s252, %s254
    %p258 = scmp.eq.s32.totalorder %s24, 0
    %p259 = por %p257, %p258
    %p260 = scmp.ne.s32.totalorder %s252, %s254
    %p261 = scmp.eq.s32.totalorder %s29, 1
    %p262 = por %p260, %p261
    %p263 = scmp.ne.s32.totalorder %s254, %s255
    %p264 = scmp.eq.s32.totalorder %s29, 0
    %p265 = por %p263, %p264
    %p266 = scmp.ne.s32.totalorder %s254, %s255
    %p267 = scmp.eq.s32.totalorder %s30, 1
    %p268 = por %p266, %p267
    %p270 = scmp.ne.s32.totalorder %s255, %s269
    %p271 = scmp.eq.s32.totalorder %s30, 0
    %p272 = por %p270, %p271
    %s274 = sadd.s32 %s273, 1
    %p277 = scmp.eq.s32.totalorder %s24, 1
    %p278 = scmp.ne.s32.totalorder %s273, %s275
    %p279 = scmp.eq.s32.totalorder %s24, 0
    %p280 = por %p278, %p279
    %p281 = scmp.ne.s32.totalorder %s273, %s275
    %p282 = scmp.eq.s32.totalorder %s29, 1
    %p283 = por %p281, %p282
    %p284 = scmp.ne.s32.totalorder %s275, %s276
    %p285 = scmp.eq.s32.totalorder %s29, 0
    %p286 = por %p284, %p285
    %p287 = scmp.ne.s32.totalorder %s275, %s276
    %p288 = scmp.eq.s32.totalorder %s30, 1
    %p289 = por %p287, %p288
    %p291 = scmp.ne.s32.totalorder %s276, %s290
    %p292 = scmp.eq.s32.totalorder %s30, 0
    %p293 = por %p291, %p292
    %s295 = sadd.s32 %s294, 1
    %p298 = scmp.eq.s32.totalorder %s24, 1
    %p299 = scmp.ne.s32.totalorder %s294, %s296
    %p300 = scmp.eq.s32.totalorder %s24, 0
    %p301 = por %p299, %p300
    %p302 = scmp.ne.s32.totalorder %s294, %s296
    %p303 = scmp.eq.s32.totalorder %s29, 1
    %p304 = por %p302, %p303
    %p305 = scmp.ne.s32.totalorder %s296, %s297
    %p306 = scmp.eq.s32.totalorder %s29, 0
    %p307 = por %p305, %p306
    %p308 = scmp.ne.s32.totalorder %s296, %s297
    %p309 = scmp.eq.s32.totalorder %s30, 1
    %p310 = por %p308, %p309
    %p312 = scmp.ne.s32.totalorder %s297, %s311
    %p313 = scmp.eq.s32.totalorder %s30, 0
    %p314 = por %p312, %p313
    %s316 = sadd.s32 %s315, 1
    %p319 = scmp.eq.s32.totalorder %s24, 1
    %p320 = scmp.ne.s32.totalorder %s315, %s317
    %p321 = scmp.eq.s32.totalorder %s24, 0
    %p322 = por %p320, %p321
    %p323 = scmp.ne.s32.totalorder %s315, %s317
    %p324 = scmp.eq.s32.totalorder %s29, 1
    %p325 = por %p323, %p324
    %p326 = scmp.ne.s32.totalorder %s317, %s318
    %p327 = scmp.eq.s32.totalorder %s29, 0
    %p328 = por %p326, %p327
    %p329 = scmp.ne.s32.totalorder %s317, %s318
    %p330 = scmp.eq.s32.totalorder %s30, 1
    %p331 = por %p329, %p330
    %p333 = scmp.ne.s32.totalorder %s318, %s332
    %p334 = scmp.eq.s32.totalorder %s30, 0
    %p335 = por %p333, %p334
    %s337 = sadd.s32 %s336, 1
    %p340 = scmp.eq.s32.totalorder %s24, 1
    %p341 = scmp.ne.s32.totalorder %s336, %s338
    %p342 = scmp.eq.s32.totalorder %s24, 0
    %p343 = por %p341, %p342
    %p344 = scmp.ne.s32.totalorder %s336, %s338
    %p345 = scmp.eq.s32.totalorder %s29, 1
    %p346 = por %p344, %p345
    %p347 = scmp.ne.s32.totalorder %s338, %s339
    %p348 = scmp.eq.s32.totalorder %s29, 0
    %p349 = por %p347, %p348
    %p350 = scmp.ne.s32.totalorder %s338, %s339
    %p351 = scmp.eq.s32.totalorder %s30, 1
    %p352 = por %p350, %p351
    %p354 = scmp.ne.s32.totalorder %s339, %s353
    %p355 = scmp.eq.s32.totalorder %s30, 0
    %p356 = por %p354, %p355
    %s358 = sadd.s32 %s357, 1
    %p361 = scmp.eq.s32.totalorder %s24, 1
    %p362 = scmp.ne.s32.totalorder %s357, %s359
    %p363 = scmp.eq.s32.totalorder %s24, 0
    %p364 = por %p362, %p363
    %p365 = scmp.ne.s32.totalorder %s357, %s359
    %p366 = scmp.eq.s32.totalorder %s29, 1
    %p367 = por %p365, %p366
    %p368 = scmp.ne.s32.totalorder %s359, %s360
    %p369 = scmp.eq.s32.totalorder %s29, 0
    %p370 = por %p368, %p369
    %p371 = scmp.ne.s32.totalorder %s359, %s360
    %p372 = scmp.eq.s32.totalorder %s30, 1
    %p373 = por %p371, %p372
    %p375 = scmp.ne.s32.totalorder %s360, %s374
    %p376 = scmp.eq.s32.totalorder %s30, 0
    %p377 = por %p375, %p376
    %s379 = sadd.s32 %s378, 1
    %p382 = scmp.eq.s32.totalorder %s24, 1
    %p383 = scmp.ne.s32.totalorder %s378, %s380
    %p384 = scmp.eq.s32.totalorder %s24, 0
    %p385 = por %p383, %p384
    %p386 = scmp.ne.s32.totalorder %s378, %s380
    %p387 = scmp.eq.s32.totalorder %s29, 1
    %p388 = por %p386, %p387
    %p389 = scmp.ne.s32.totalorder %s380, %s381
    %p390 = scmp.eq.s32.totalorder %s29, 0
    %p391 = por %p389, %p390
    %p392 = scmp.ne.s32.totalorder %s380, %s381
    %p393 = scmp.eq.s32.totalorder %s30, 1
    %p394 = por %p392, %p393
    %p396 = scmp.ne.s32.totalorder %s381, %s395
    %p397 = scmp.eq.s32.totalorder %s30, 0
    %p398 = por %p396, %p397
    %s400 = sadd.s32 %s399, 1
    %p403 = scmp.eq.s32.totalorder %s24, 1
    %p404 = scmp.ne.s32.totalorder %s399, %s401
    %p405 = scmp.eq.s32.totalorder %s24, 0
    %p406 = por %p404, %p405
    %p407 = scmp.ne.s32.totalorder %s399, %s401
    %p408 = scmp.eq.s32.totalorder %s29, 1
    %p409 = por %p407, %p408
    %p410 = scmp.ne.s32.totalorder %s401, %s402
    %p411 = scmp.eq.s32.totalorder %s29, 0
    %p412 = por %p410, %p411
    %p413 = scmp.ne.s32.totalorder %s401, %s402
    %p414 = scmp.eq.s32.totalorder %s30, 1
    %p415 = por %p413, %p414
    %p417 = scmp.ne.s32.totalorder %s402, %s416
    %p418 = scmp.eq.s32.totalorder %s30, 0
    %p419 = por %p417, %p418
    %s420 = ssub.s32 %s24, %s31
    %p421 = scmp.eq.s32.totalorder %s420, 0
    %s423 = sadd.s32 %s422, 1
    %s424 = scalar_select %p421, %s422, %s423
    %p427 = pneg %p421
    %p428 = scmp.eq.s32.totalorder %s24, 1
    %p429 = por %p427, %p428
    %p430 = scmp.ne.s32.totalorder %s422, %s425
    %p431 = scmp.eq.s32.totalorder %s24, 0
    %p432 = por %p430, %p431
    %p433 = scmp.ne.s32.totalorder %s422, %s425
    %p434 = scmp.eq.s32.totalorder %s29, 1
    %p435 = por %p433, %p434
    %p436 = scmp.ne.s32.totalorder %s425, %s426
    %p437 = scmp.eq.s32.totalorder %s29, 0
    %p438 = por %p436, %p437
    %p439 = scmp.ne.s32.totalorder %s425, %s426
    %p440 = scmp.eq.s32.totalorder %s30, 1
    %p441 = por %p439, %p440
    %p443 = scmp.ne.s32.totalorder %s426, %s442
    %p444 = scmp.eq.s32.totalorder %s30, 0
    %p445 = por %p443, %p444
    %p446 = scmp.le.s32.totalorder 1, %s24
    %p447 = scmp.lt.s32.totalorder %s24, 3
    %p448 = pnand %p446, %p447
    %p449 = pneg %p448
    // Predicated region
    $region9: #{multi_stage_forward.1} parent=5 // pred_check
      _
    $region10: #{multi_stage_forward.1} parent=5 // pred_check_branch
      %451 = sbr.rel (%p448) target = $region12
    $region11: #{multi_stage_forward.1} parent=5 // pred_region
      %s452 = ssub.s32 %s24, 1
      // Predicated region
      $region13: #{multi_stage_forward.1} parent=11 // pred_check
        %p453 = pneg %p97
      $region14: #{multi_stage_forward.1} parent=11 // pred_check_branch
        %455 = sbr.rel (%p453) target = $region16
      $region15: #{multi_stage_forward.1} parent=11 // pred_region
        _
      $region16: #{multi_stage_forward.1} parent=11 // pred_fallthru
        _
      // Predicated region
      $region17: #{multi_stage_forward.1} parent=11 // pred_check
        %p456 = pneg %p118
      $region18: #{multi_stage_forward.1} parent=11 // pred_check_branch
        %458 = sbr.rel (%p456) target = $region20
      $region19: #{multi_stage_forward.1} parent=11 // pred_region
        _
      $region20: #{multi_stage_forward.1} parent=11 // pred_fallthru
        _
      // Predicated region
      $region21: #{multi_stage_forward.1} parent=11 // pred_check
        %p459 = pneg %p139
      $region22: #{multi_stage_forward.1} parent=11 // pred_check_branch
        %461 = sbr.rel (%p459) target = $region24
      $region23: #{multi_stage_forward.1} parent=11 // pred_region
        _
      $region24: #{multi_stage_forward.1} parent=11 // pred_fallthru
        _
      // Predicated region
      $region25: #{multi_stage_forward.1} parent=11 // pred_check
        %p462 = pneg %p160
      $region26: #{multi_stage_forward.1} parent=11 // pred_check_branch
        %464 = sbr.rel (%p462) target = $region28
      $region27: #{multi_stage_forward.1} parent=11 // pred_region
        _
      $region28: #{multi_stage_forward.1} parent=11 // pred_fallthru
        _
      // Predicated region
      $region29: #{multi_stage_forward.1} parent=11 // pred_check
        %p465 = pneg %p181
      $region30: #{multi_stage_forward.1} parent=11 // pred_check_branch
        %467 = sbr.rel (%p465) target = $region32
      $region31: #{multi_stage_forward.1} parent=11 // pred_region
        _
      $region32: #{multi_stage_forward.1} parent=11 // pred_fallthru
        _
      // Predicated region
      $region33: #{multi_stage_forward.1} parent=11 // pred_check
        %p468 = pneg %p202
      $region34: #{multi_stage_forward.1} parent=11 // pred_check_branch
        %470 = sbr.rel (%p468) target = $region36
      $region35: #{multi_stage_forward.1} parent=11 // pred_region
        _
      $region36: #{multi_stage_forward.1} parent=11 // pred_fallthru
        _
      // Predicated region
      $region37: #{multi_stage_forward.1} parent=11 // pred_check
        %p471 = pneg %p223
      $region38: #{multi_stage_forward.1} parent=11 // pred_check_branch
        %473 = sbr.rel (%p471) target = $region40
      $region39: #{multi_stage_forward.1} parent=11 // pred_region
        _
      $region40: #{multi_stage_forward.1} parent=11 // pred_fallthru
        _
      // Predicated region
      $region41: #{multi_stage_forward.1} parent=11 // pred_check
        %p474 = pneg %p244
      $region42: #{multi_stage_forward.1} parent=11 // pred_check_branch
        %476 = sbr.rel (%p474) target = $region44
      $region43: #{multi_stage_forward.1} parent=11 // pred_region
        _
      $region44: #{multi_stage_forward.1} parent=11 // pred_fallthru
        _
      // Predicated region
      $region45: #{multi_stage_forward.1} parent=11 // pred_check
        %p477 = pneg %p265
      $region46: #{multi_stage_forward.1} parent=11 // pred_check_branch
        %479 = sbr.rel (%p477) target = $region48
      $region47: #{multi_stage_forward.1} parent=11 // pred_region
        _
      $region48: #{multi_stage_forward.1} parent=11 // pred_fallthru
        _
      // Predicated region
      $region49: #{multi_stage_forward.1} parent=11 // pred_check
        %p480 = pneg %p286
      $region50: #{multi_stage_forward.1} parent=11 // pred_check_branch
        %482 = sbr.rel (%p480) target = $region52
      $region51: #{multi_stage_forward.1} parent=11 // pred_region
        _
      $region52: #{multi_stage_forward.1} parent=11 // pred_fallthru
        _
      // Predicated region
      $region53: #{multi_stage_forward.1} parent=11 // pred_check
        %p483 = pneg %p307
      $region54: #{multi_stage_forward.1} parent=11 // pred_check_branch
        %485 = sbr.rel (%p483) target = $region56
      $region55: #{multi_stage_forward.1} parent=11 // pred_region
        _
      $region56: #{multi_stage_forward.1} parent=11 // pred_fallthru
        _
      // Predicated region
      $region57: #{multi_stage_forward.1} parent=11 // pred_check
        %p486 = pneg %p328
      $region58: #{multi_stage_forward.1} parent=11 // pred_check_branch
        %488 = sbr.rel (%p486) target = $region60
      $region59: #{multi_stage_forward.1} parent=11 // pred_region
        _
      $region60: #{multi_stage_forward.1} parent=11 // pred_fallthru
        _
      // Predicated region
      $region61: #{multi_stage_forward.1} parent=11 // pred_check
        %p489 = pneg %p349
      $region62: #{multi_stage_forward.1} parent=11 // pred_check_branch
        %491 = sbr.rel (%p489) target = $region64
      $region63: #{multi_stage_forward.1} parent=11 // pred_region
        _
      $region64: #{multi_stage_forward.1} parent=11 // pred_fallthru
        _
      // Predicated region
      $region65: #{multi_stage_forward.1} parent=11 // pred_check
        %p492 = pneg %p370
      $region66: #{multi_stage_forward.1} parent=11 // pred_check_branch
        %494 = sbr.rel (%p492) target = $region68
      $region67: #{multi_stage_forward.1} parent=11 // pred_region
        _
      $region68: #{multi_stage_forward.1} parent=11 // pred_fallthru
        _
      // Predicated region
      $region69: #{multi_stage_forward.1} parent=11 // pred_check
        %p495 = pneg %p391
      $region70: #{multi_stage_forward.1} parent=11 // pred_check_branch
        %497 = sbr.rel (%p495) target = $region72
      $region71: #{multi_stage_forward.1} parent=11 // pred_region
        _
      $region72: #{multi_stage_forward.1} parent=11 // pred_fallthru
        _
      // Predicated region
      $region73: #{multi_stage_forward.1} parent=11 // pred_check
        %p498 = pneg %p412
      $region74: #{multi_stage_forward.1} parent=11 // pred_check_branch
        %500 = sbr.rel (%p498) target = $region76
      $region75: #{multi_stage_forward.1} parent=11 // pred_region
        _
      $region76: #{multi_stage_forward.1} parent=11 // pred_fallthru
        _
    $region12: #{multi_stage_forward.1} parent=5 // pred_fallthru
      _
    %p501 = scmp.lt.s32.totalorder %s24, 2
    // Predicated region
    $region77: #{multi_stage_forward.1} parent=5 // pred_check
      %p502 = pneg %p501
    $region78: #{multi_stage_forward.1} parent=5 // pred_check_branch
      %504 = sbr.rel (%p502) target = $region80
    $region79: #{multi_stage_forward.1} parent=5 // pred_region
      // Predicated region
      $region81: #{multi_stage_forward.1} parent=79 // pred_check
        %p505 = pneg %p44
      $region82: #{multi_stage_forward.1} parent=79 // pred_check_branch
        %507 = sbr.rel (%p505) target = $region84
      $region83: #{multi_stage_forward.1} parent=79 // pred_region
        %p508 = scmp.lt.s32.totalorder %s24, 1
        %s509 = scalar_select %p508, %s24, 1
        %s510 = smul.addr %s509, 256
        %s511 = smul.addr %s510, 4
        %s512 = scalar_lea.vmem %s0, %s511
      $region84: #{multi_stage_forward.1} parent=79 // pred_fallthru
        _
      // Predicated region
      $region85: #{multi_stage_forward.1} parent=79 // pred_check
        %p513 = pneg %p70
      $region86: #{multi_stage_forward.1} parent=79 // pred_check_branch
        %515 = sbr.rel (%p513) target = $region88
      $region87: #{multi_stage_forward.1} parent=79 // pred_region
        %p516 = scmp.lt.s32.totalorder %s24, 1
        %s517 = scalar_select %p516, %s24, 1
        %s518 = scalar_lea.vmem %s1, %s517
      $region88: #{multi_stage_forward.1} parent=79 // pred_fallthru
        _
    $region80: #{multi_stage_forward.1} parent=5 // pred_fallthru
      _
    %p519 = scmp.le.s32.totalorder 1, %s24
    %p520 = scmp.lt.s32.totalorder %s24, 3
    %p521 = pnand %p519, %p520
    %p522 = pneg %p521
    // Predicated region
    $region89: #{multi_stage_forward.1} parent=5 // pred_check
      _
    $region90: #{multi_stage_forward.1} parent=5 // pred_check_branch
      %524 = sbr.rel (%p521) target = $region92
    $region91: #{multi_stage_forward.1} parent=5 // pred_region
      %s525 = ssub.s32 %s24, 1
      %p526 = scmp.lt.s32.totalorder %s29, 1
      %s527 = scalar_select %p526, %s29, 1
      %s528 = smul.addr %s527, 256
      %s529 = smul.addr %s528, 4
      %s530 = scalar_lea.vmem %s0, %s529
      %p531 = pneg %p50
      %p532 = pneg %p47
      %p533 = scmp.lt.s32.totalorder %s29, 1
      %s534 = scalar_select %p533, %s29, 1
      %s535 = scalar_lea.vmem %s1, %s534
      %p536 = pneg %p76
      %p537 = pneg %p73
      %p538 = pneg %p97
      %p539 = pneg %p94
      %p540 = pneg %p118
      %p541 = pneg %p115
      %p542 = pneg %p139
      %p543 = pneg %p136
      %p544 = pneg %p160
      %p545 = pneg %p157
      %p546 = pneg %p181
      %p547 = pneg %p178
      %p548 = pneg %p202
      %p549 = pneg %p199
      %p550 = pneg %p223
      %p551 = pneg %p220
      %p552 = pneg %p244
      %p553 = pneg %p241
      %p554 = pneg %p265
      %p555 = pneg %p262
      %p556 = pneg %p286
      %p557 = pneg %p283
      %p558 = pneg %p307
      %p559 = pneg %p304
      %p560 = pneg %p328
      %p561 = pneg %p325
      %p562 = pneg %p349
      %p563 = pneg %p346
      %p564 = pneg %p370
      %p565 = pneg %p367
      %p566 = pneg %p391
      %p567 = pneg %p388
      %p568 = pneg %p412
      %p569 = pneg %p409
      %p570 = pneg %p438
      %p571 = pneg %p435
      %p572 = scmp.lt.s32.totalorder %s29, 1
      %s573 = scalar_select %p572, %s29, 1
      %s574 = smul.addr %s573, 3
      %s575 = smul.addr %s574, 4
      %s576 = scalar_lea.vmem %s18, %s575
      %p577 = scmp.lt.s32.totalorder %s29, 1
      %s578 = scalar_select %p577, %s29, 1
      %s579 = smul.addr %s578, 256
      %s580 = smul.addr %s579, 4
      %s581 = scalar_lea.vmem %s0, %s580
      %p582 = scmp.lt.s32.totalorder %s29, 1
      %s583 = scalar_select %p582, %s29, 1
      %s584 = scalar_lea.vmem %s1, %s583
      %p585 = scmp.lt.s32.totalorder %s29, 1
      %s586 = scalar_select %p585, %s29, 1
      %s587 = smul.addr %s586, 3
      %s588 = smul.addr %s587, 4
      %s589 = scalar_lea.vmem %s18, %s588
      %v590 = vld [vmem:[%s584] sm:$0x1]
      %vm591 = vcmask 195584
      %592 = vst.msk [vmem:[#allocation2] sm:$0xff] %vm591, 0.0
      %593 = vst.msk [vmem:[#allocation2 + $0x8] sm:$0xff] %vm591, 0.0
      %594 = vst.msk [vmem:[#allocation2 + $0x10] sm:$0xff] %vm591, 0.0
      %595 = vst.msk [vmem:[#allocation2 + $0x18] sm:$0xff] %vm591, 0.0
      %v596 = vld [vmem:[%s2] sm:$0xff]
      %v597 = vld [vmem:[%s2 + $0x8] sm:$0xff]
      %v598 = vld [vmem:[%s2 + $0x10] sm:$0xff]
      %v599 = vld [vmem:[%s2 + $0x18] sm:$0xff]
      %v600 = vld [vmem:[%s2 + $0x20] sm:$0xff]
      %v601 = vld [vmem:[%s2 + $0x28] sm:$0xff]
      %v602 = vld [vmem:[%s2 + $0x30] sm:$0xff]
      %v603 = vld [vmem:[%s2 + $0x38] sm:$0xff]
      %v604 = vld [vmem:[%s2 + $0x40] sm:$0xff]
      %v605 = vld [vmem:[%s2 + $0x48] sm:$0xff]
      %v606 = vld [vmem:[%s2 + $0x50] sm:$0xff]
      %v607 = vld [vmem:[%s2 + $0x58] sm:$0xff]
      %v608 = vld [vmem:[%s2 + $0x60] sm:$0xff]
      %v609 = vld [vmem:[%s2 + $0x68] sm:$0xff]
      %v610 = vld [vmem:[%s2 + $0x70] sm:$0xff]
      %v611 = vld [vmem:[%s2 + $0x78] sm:$0xff]
      %v612 = vld [vmem:[%s2 + $0x80] sm:$0xff]
      %v613 = vld [vmem:[%s2 + $0x88] sm:$0xff]
      %v614 = vld [vmem:[%s2 + $0x90] sm:$0xff]
      %v615 = vld [vmem:[%s2 + $0x98] sm:$0xff]
      %v616 = vld [vmem:[%s2 + $0xa0] sm:$0xff]
      %v617 = vld [vmem:[%s2 + $0xa8] sm:$0xff]
      %v618 = vld [vmem:[%s2 + $0xb0] sm:$0xff]
      %v619 = vld [vmem:[%s2 + $0xb8] sm:$0xff]
      %v620 = vld [vmem:[%s2 + $0xc0] sm:$0xff]
      %v621 = vld [vmem:[%s2 + $0xc8] sm:$0xff]
      %v622 = vld [vmem:[%s2 + $0xd0] sm:$0xff]
      %v623 = vld [vmem:[%s2 + $0xd8] sm:$0xff]
      %v624 = vld [vmem:[%s2 + $0xe0] sm:$0xff]
      %v625 = vld [vmem:[%s2 + $0xe8] sm:$0xff]
      %v626 = vld [vmem:[%s2 + $0xf0] sm:$0xff]
      %v627 = vld [vmem:[%s2 + $0xf8] sm:$0xff]
      %v628 = vld [vmem:[%s581] sm:$0xf]
      %v629 = vld [vmem:[%s581 + $0x4] sm:$0xf]
      %v630 = vld [vmem:[%s581 + $0x8] sm:$0xf]
      %v631 = vld [vmem:[%s581 + $0xc] sm:$0xf]
      %v632 = vld [vmem:[%s581 + $0x10] sm:$0xf]
      %v633 = vld [vmem:[%s581 + $0x14] sm:$0xf]
      %v634 = vld [vmem:[%s581 + $0x18] sm:$0xf]
      %v635 = vld [vmem:[%s581 + $0x1c] sm:$0xf]
      %v636 = vld [vmem:[%s581 + $0x20] sm:$0xf]
      %v637 = vld [vmem:[%s581 + $0x24] sm:$0xf]
      %v638 = vld [vmem:[%s581 + $0x28] sm:$0xf]
      %v639 = vld [vmem:[%s581 + $0x2c] sm:$0xf]
      %v640 = vld [vmem:[%s581 + $0x30] sm:$0xf]
      %v641 = vld [vmem:[%s581 + $0x34] sm:$0xf]
      %v642 = vld [vmem:[%s581 + $0x38] sm:$0xf]
      %v643 = vld [vmem:[%s581 + $0x3c] sm:$0xf]
      %v644 = vld [vmem:[%s581 + $0x40] sm:$0xf]
      %v645 = vld [vmem:[%s581 + $0x44] sm:$0xf]
      %v646 = vld [vmem:[%s581 + $0x48] sm:$0xf]
      %v647 = vld [vmem:[%s581 + $0x4c] sm:$0xf]
      %v648 = vld [vmem:[%s581 + $0x50] sm:$0xf]
      %v649 = vld [vmem:[%s581 + $0x54] sm:$0xf]
      %v650 = vld [vmem:[%s581 + $0x58] sm:$0xf]
      %v651 = vld [vmem:[%s581 + $0x5c] sm:$0xf]
      %v652 = vld [vmem:[%s581 + $0x60] sm:$0xf]
      %v653 = vld [vmem:[%s581 + $0x64] sm:$0xf]
      %v654 = vld [vmem:[%s581 + $0x68] sm:$0xf]
      %v655 = vld [vmem:[%s581 + $0x6c] sm:$0xf]
      %v656 = vld [vmem:[%s581 + $0x70] sm:$0xf]
      %v657 = vld [vmem:[%s581 + $0x74] sm:$0xf]
      %v658 = vld [vmem:[%s581 + $0x78] sm:$0xf]
      %v659 = vld [vmem:[%s581 + $0x7c] sm:$0xf]
      %v660 = vld [vmem:[%s581 + $0x80] sm:$0xf]
      %v661 = vld [vmem:[%s581 + $0x84] sm:$0xf]
      %v662 = vld [vmem:[%s581 + $0x88] sm:$0xf]
      %v663 = vld [vmem:[%s581 + $0x8c] sm:$0xf]
      %v664 = vld [vmem:[%s581 + $0x90] sm:$0xf]
      %v665 = vld [vmem:[%s581 + $0x94] sm:$0xf]
      %v666 = vld [vmem:[%s581 + $0x98] sm:$0xf]
      %v667 = vld [vmem:[%s581 + $0x9c] sm:$0xf]
      %v668 = vld [vmem:[%s581 + $0xa0] sm:$0xf]
      %v669 = vld [vmem:[%s581 + $0xa4] sm:$0xf]
      %v670 = vld [vmem:[%s581 + $0xa8] sm:$0xf]
      %v671 = vld [vmem:[%s581 + $0xac] sm:$0xf]
      %v672 = vld [vmem:[%s581 + $0xb0] sm:$0xf]
      %v673 = vld [vmem:[%s581 + $0xb4] sm:$0xf]
      %v674 = vld [vmem:[%s581 + $0xb8] sm:$0xf]
      %v675 = vld [vmem:[%s581 + $0xbc] sm:$0xf]
      %v676 = vld [vmem:[%s581 + $0xc0] sm:$0xf]
      %v677 = vld [vmem:[%s581 + $0xc4] sm:$0xf]
      %v678 = vld [vmem:[%s581 + $0xc8] sm:$0xf]
      %v679 = vld [vmem:[%s581 + $0xcc] sm:$0xf]
      %v680 = vld [vmem:[%s581 + $0xd0] sm:$0xf]
      %v681 = vld [vmem:[%s581 + $0xd4] sm:$0xf]
      %v682 = vld [vmem:[%s581 + $0xd8] sm:$0xf]
      %v683 = vld [vmem:[%s581 + $0xdc] sm:$0xf]
      %v684 = vld [vmem:[%s581 + $0xe0] sm:$0xf]
      %v685 = vld [vmem:[%s581 + $0xe4] sm:$0xf]
      %v686 = vld [vmem:[%s581 + $0xe8] sm:$0xf]
      %v687 = vld [vmem:[%s581 + $0xec] sm:$0xf]
      %v688 = vld [vmem:[%s581 + $0xf0] sm:$0xf]
      %v689 = vld [vmem:[%s581 + $0xf4] sm:$0xf]
      %v690 = vld [vmem:[%s581 + $0xf8] sm:$0xf]
      %v691 = vld [vmem:[%s581 + $0xfc] sm:$0xf]
      %v692 = vld [vmem:[%s581 + $0x100] sm:$0xf]
      %v693 = vld [vmem:[%s581 + $0x104] sm:$0xf]
      %v694 = vld [vmem:[%s581 + $0x108] sm:$0xf]
      %v695 = vld [vmem:[%s581 + $0x10c] sm:$0xf]
      %v696 = vld [vmem:[%s581 + $0x110] sm:$0xf]
      %v697 = vld [vmem:[%s581 + $0x114] sm:$0xf]
      %v698 = vld [vmem:[%s581 + $0x118] sm:$0xf]
      %v699 = vld [vmem:[%s581 + $0x11c] sm:$0xf]
      %v700 = vld [vmem:[%s581 + $0x120] sm:$0xf]
      %v701 = vld [vmem:[%s581 + $0x124] sm:$0xf]
      %v702 = vld [vmem:[%s581 + $0x128] sm:$0xf]
      %v703 = vld [vmem:[%s581 + $0x12c] sm:$0xf]
      %v704 = vld [vmem:[%s581 + $0x130] sm:$0xf]
      %v705 = vld [vmem:[%s581 + $0x134] sm:$0xf]
      %v706 = vld [vmem:[%s581 + $0x138] sm:$0xf]
      %v707 = vld [vmem:[%s581 + $0x13c] sm:$0xf]
      %v708 = vld [vmem:[%s581 + $0x140] sm:$0xf]
      %v709 = vld [vmem:[%s581 + $0x144] sm:$0xf]
      %v710 = vld [vmem:[%s581 + $0x148] sm:$0xf]
      %v711 = vld [vmem:[%s581 + $0x14c] sm:$0xf]
      %v712 = vld [vmem:[%s581 + $0x150] sm:$0xf]
      %v713 = vld [vmem:[%s581 + $0x154] sm:$0xf]
      %v714 = vld [vmem:[%s581 + $0x158] sm:$0xf]
      %v715 = vld [vmem:[%s581 + $0x15c] sm:$0xf]
      %v716 = vld [vmem:[%s581 + $0x160] sm:$0xf]
      %v717 = vld [vmem:[%s581 + $0x164] sm:$0xf]
      %v718 = vld [vmem:[%s581 + $0x168] sm:$0xf]
      %v719 = vld [vmem:[%s581 + $0x16c] sm:$0xf]
      %v720 = vld [vmem:[%s581 + $0x170] sm:$0xf]
      %v721 = vld [vmem:[%s581 + $0x174] sm:$0xf]
      %v722 = vld [vmem:[%s581 + $0x178] sm:$0xf]
      %v723 = vld [vmem:[%s581 + $0x17c] sm:$0xf]
      %v724 = vld [vmem:[%s581 + $0x180] sm:$0xf]
      %v725 = vld [vmem:[%s581 + $0x184] sm:$0xf]
      %v726 = vld [vmem:[%s581 + $0x188] sm:$0xf]
      %v727 = vld [vmem:[%s581 + $0x18c] sm:$0xf]
      %v728 = vld [vmem:[%s581 + $0x190] sm:$0xf]
      %v729 = vld [vmem:[%s581 + $0x194] sm:$0xf]
      %v730 = vld [vmem:[%s581 + $0x198] sm:$0xf]
      %v731 = vld [vmem:[%s581 + $0x19c] sm:$0xf]
      %v732 = vld [vmem:[%s581 + $0x1a0] sm:$0xf]
      %v733 = vld [vmem:[%s581 + $0x1a4] sm:$0xf]
      %v734 = vld [vmem:[%s581 + $0x1a8] sm:$0xf]
      %v735 = vld [vmem:[%s581 + $0x1ac] sm:$0xf]
      %v736 = vld [vmem:[%s581 + $0x1b0] sm:$0xf]
      %v737 = vld [vmem:[%s581 + $0x1b4] sm:$0xf]
      %v738 = vld [vmem:[%s581 + $0x1b8] sm:$0xf]
      %v739 = vld [vmem:[%s581 + $0x1bc] sm:$0xf]
      %v740 = vld [vmem:[%s581 + $0x1c0] sm:$0xf]
      %v741 = vld [vmem:[%s581 + $0x1c4] sm:$0xf]
      %v742 = vld [vmem:[%s581 + $0x1c8] sm:$0xf]
      %v743 = vld [vmem:[%s581 + $0x1cc] sm:$0xf]
      %v744 = vld [vmem:[%s581 + $0x1d0] sm:$0xf]
      %v745 = vld [vmem:[%s581 + $0x1d4] sm:$0xf]
      %v746 = vld [vmem:[%s581 + $0x1d8] sm:$0xf]
      %v747 = vld [vmem:[%s581 + $0x1dc] sm:$0xf]
      %v748 = vld [vmem:[%s581 + $0x1e0] sm:$0xf]
      %v749 = vld [vmem:[%s581 + $0x1e4] sm:$0xf]
      %v750 = vld [vmem:[%s581 + $0x1e8] sm:$0xf]
      %v751 = vld [vmem:[%s581 + $0x1ec] sm:$0xf]
      %v752 = vld [vmem:[%s581 + $0x1f0] sm:$0xf]
      %v753 = vld [vmem:[%s581 + $0x1f4] sm:$0xf]
      %v754 = vld [vmem:[%s581 + $0x1f8] sm:$0xf]
      %v755 = vld [vmem:[%s581 + $0x1fc] sm:$0xf]
      %v756 = vld [vmem:[%s581 + $0x200] sm:$0xf]
      %v757 = vld [vmem:[%s581 + $0x204] sm:$0xf]
      %v758 = vld [vmem:[%s581 + $0x208] sm:$0xf]
      %v759 = vld [vmem:[%s581 + $0x20c] sm:$0xf]
      %v760 = vld [vmem:[%s581 + $0x210] sm:$0xf]
      %v761 = vld [vmem:[%s581 + $0x214] sm:$0xf]
      %v762 = vld [vmem:[%s581 + $0x218] sm:$0xf]
      %v763 = vld [vmem:[%s581 + $0x21c] sm:$0xf]
      %v764 = vld [vmem:[%s581 + $0x220] sm:$0xf]
      %v765 = vld [vmem:[%s581 + $0x224] sm:$0xf]
      %v766 = vld [vmem:[%s581 + $0x228] sm:$0xf]
      %v767 = vld [vmem:[%s581 + $0x22c] sm:$0xf]
      %v768 = vld [vmem:[%s581 + $0x230] sm:$0xf]
      %v769 = vld [vmem:[%s581 + $0x234] sm:$0xf]
      %v770 = vld [vmem:[%s581 + $0x238] sm:$0xf]
      %v771 = vld [vmem:[%s581 + $0x23c] sm:$0xf]
      %v772 = vld [vmem:[%s581 + $0x240] sm:$0xf]
      %v773 = vld [vmem:[%s581 + $0x244] sm:$0xf]
      %v774 = vld [vmem:[%s581 + $0x248] sm:$0xf]
      %v775 = vld [vmem:[%s581 + $0x24c] sm:$0xf]
      %v776 = vld [vmem:[%s581 + $0x250] sm:$0xf]
      %v777 = vld [vmem:[%s581 + $0x254] sm:$0xf]
      %v778 = vld [vmem:[%s581 + $0x258] sm:$0xf]
      %v779 = vld [vmem:[%s581 + $0x25c] sm:$0xf]
      %v780 = vld [vmem:[%s581 + $0x260] sm:$0xf]
      %v781 = vld [vmem:[%s581 + $0x264] sm:$0xf]
      %v782 = vld [vmem:[%s581 + $0x268] sm:$0xf]
      %v783 = vld [vmem:[%s581 + $0x26c] sm:$0xf]
      %v784 = vld [vmem:[%s581 + $0x270] sm:$0xf]
      %v785 = vld [vmem:[%s581 + $0x274] sm:$0xf]
      %v786 = vld [vmem:[%s581 + $0x278] sm:$0xf]
      %v787 = vld [vmem:[%s581 + $0x27c] sm:$0xf]
      %v788 = vld [vmem:[%s581 + $0x280] sm:$0xf]
      %v789 = vld [vmem:[%s581 + $0x284] sm:$0xf]
      %v790 = vld [vmem:[%s581 + $0x288] sm:$0xf]
      %v791 = vld [vmem:[%s581 + $0x28c] sm:$0xf]
      %v792 = vld [vmem:[%s581 + $0x290] sm:$0xf]
      %v793 = vld [vmem:[%s581 + $0x294] sm:$0xf]
      %v794 = vld [vmem:[%s581 + $0x298] sm:$0xf]
      %v795 = vld [vmem:[%s581 + $0x29c] sm:$0xf]
      %v796 = vld [vmem:[%s581 + $0x2a0] sm:$0xf]
      %v797 = vld [vmem:[%s581 + $0x2a4] sm:$0xf]
      %v798 = vld [vmem:[%s581 + $0x2a8] sm:$0xf]
      %v799 = vld [vmem:[%s581 + $0x2ac] sm:$0xf]
      %v800 = vld [vmem:[%s581 + $0x2b0] sm:$0xf]
      %v801 = vld [vmem:[%s581 + $0x2b4] sm:$0xf]
      %v802 = vld [vmem:[%s581 + $0x2b8] sm:$0xf]
      %v803 = vld [vmem:[%s581 + $0x2bc] sm:$0xf]
      %v804 = vld [vmem:[%s581 + $0x2c0] sm:$0xf]
      %v805 = vld [vmem:[%s581 + $0x2c4] sm:$0xf]
      %v806 = vld [vmem:[%s581 + $0x2c8] sm:$0xf]
      %v807 = vld [vmem:[%s581 + $0x2cc] sm:$0xf]
      %v808 = vld [vmem:[%s581 + $0x2d0] sm:$0xf]
      %v809 = vld [vmem:[%s581 + $0x2d4] sm:$0xf]
      %v810 = vld [vmem:[%s581 + $0x2d8] sm:$0xf]
      %v811 = vld [vmem:[%s581 + $0x2dc] sm:$0xf]
      %v812 = vld [vmem:[%s581 + $0x2e0] sm:$0xf]
      %v813 = vld [vmem:[%s581 + $0x2e4] sm:$0xf]
      %v814 = vld [vmem:[%s581 + $0x2e8] sm:$0xf]
      %v815 = vld [vmem:[%s581 + $0x2ec] sm:$0xf]
      %v816 = vld [vmem:[%s581 + $0x2f0] sm:$0xf]
      %v817 = vld [vmem:[%s581 + $0x2f4] sm:$0xf]
      %v818 = vld [vmem:[%s581 + $0x2f8] sm:$0xf]
      %v819 = vld [vmem:[%s581 + $0x2fc] sm:$0xf]
      %v820 = vld [vmem:[%s581 + $0x300] sm:$0xf]
      %v821 = vld [vmem:[%s581 + $0x304] sm:$0xf]
      %v822 = vld [vmem:[%s581 + $0x308] sm:$0xf]
      %v823 = vld [vmem:[%s581 + $0x30c] sm:$0xf]
      %v824 = vld [vmem:[%s581 + $0x310] sm:$0xf]
      %v825 = vld [vmem:[%s581 + $0x314] sm:$0xf]
      %v826 = vld [vmem:[%s581 + $0x318] sm:$0xf]
      %v827 = vld [vmem:[%s581 + $0x31c] sm:$0xf]
      %v828 = vld [vmem:[%s581 + $0x320] sm:$0xf]
      %v829 = vld [vmem:[%s581 + $0x324] sm:$0xf]
      %v830 = vld [vmem:[%s581 + $0x328] sm:$0xf]
      %v831 = vld [vmem:[%s581 + $0x32c] sm:$0xf]
      %v832 = vld [vmem:[%s581 + $0x330] sm:$0xf]
      %v833 = vld [vmem:[%s581 + $0x334] sm:$0xf]
      %v834 = vld [vmem:[%s581 + $0x338] sm:$0xf]
      %v835 = vld [vmem:[%s581 + $0x33c] sm:$0xf]
      %v836 = vld [vmem:[%s581 + $0x340] sm:$0xf]
      %v837 = vld [vmem:[%s581 + $0x344] sm:$0xf]
      %v838 = vld [vmem:[%s581 + $0x348] sm:$0xf]
      %v839 = vld [vmem:[%s581 + $0x34c] sm:$0xf]
      %v840 = vld [vmem:[%s581 + $0x350] sm:$0xf]
      %v841 = vld [vmem:[%s581 + $0x354] sm:$0xf]
      %v842 = vld [vmem:[%s581 + $0x358] sm:$0xf]
      %v843 = vld [vmem:[%s581 + $0x35c] sm:$0xf]
      %v844 = vld [vmem:[%s581 + $0x360] sm:$0xf]
      %v845 = vld [vmem:[%s581 + $0x364] sm:$0xf]
      %v846 = vld [vmem:[%s581 + $0x368] sm:$0xf]
      %v847 = vld [vmem:[%s581 + $0x36c] sm:$0xf]
      %v848 = vld [vmem:[%s581 + $0x370] sm:$0xf]
      %v849 = vld [vmem:[%s581 + $0x374] sm:$0xf]
      %v850 = vld [vmem:[%s581 + $0x378] sm:$0xf]
      %v851 = vld [vmem:[%s581 + $0x37c] sm:$0xf]
      %v852 = vld [vmem:[%s581 + $0x380] sm:$0xf]
      %v853 = vld [vmem:[%s581 + $0x384] sm:$0xf]
      %v854 = vld [vmem:[%s581 + $0x388] sm:$0xf]
      %v855 = vld [vmem:[%s581 + $0x38c] sm:$0xf]
      %v856 = vld [vmem:[%s581 + $0x390] sm:$0xf]
      %v857 = vld [vmem:[%s581 + $0x394] sm:$0xf]
      %v858 = vld [vmem:[%s581 + $0x398] sm:$0xf]
      %v859 = vld [vmem:[%s581 + $0x39c] sm:$0xf]
      %v860 = vld [vmem:[%s581 + $0x3a0] sm:$0xf]
      %v861 = vld [vmem:[%s581 + $0x3a4] sm:$0xf]
      %v862 = vld [vmem:[%s581 + $0x3a8] sm:$0xf]
      %v863 = vld [vmem:[%s581 + $0x3ac] sm:$0xf]
      %v864 = vld [vmem:[%s581 + $0x3b0] sm:$0xf]
      %v865 = vld [vmem:[%s581 + $0x3b4] sm:$0xf]
      %v866 = vld [vmem:[%s581 + $0x3b8] sm:$0xf]
      %v867 = vld [vmem:[%s581 + $0x3bc] sm:$0xf]
      %v868 = vld [vmem:[%s581 + $0x3c0] sm:$0xf]
      %v869 = vld [vmem:[%s581 + $0x3c4] sm:$0xf]
      %v870 = vld [vmem:[%s581 + $0x3c8] sm:$0xf]
      %v871 = vld [vmem:[%s581 + $0x3cc] sm:$0xf]
      %v872 = vld [vmem:[%s581 + $0x3d0] sm:$0xf]
      %v873 = vld [vmem:[%s581 + $0x3d4] sm:$0xf]
      %v874 = vld [vmem:[%s581 + $0x3d8] sm:$0xf]
      %v875 = vld [vmem:[%s581 + $0x3dc] sm:$0xf]
      %v876 = vld [vmem:[%s581 + $0x3e0] sm:$0xf]
      %v877 = vld [vmem:[%s581 + $0x3e4] sm:$0xf]
      %v878 = vld [vmem:[%s581 + $0x3e8] sm:$0xf]
      %v879 = vld [vmem:[%s581 + $0x3ec] sm:$0xf]
      %v880 = vld [vmem:[%s581 + $0x3f0] sm:$0xf]
      %v881 = vld [vmem:[%s581 + $0x3f4] sm:$0xf]
      %v882 = vld [vmem:[%s581 + $0x3f8] sm:$0xf]
      %v883 = vld [vmem:[%s581 + $0x3fc] sm:$0xf]
      %v884 = vld [vmem:[%s3] sm:$0xff]
      %v885 = vld [vmem:[%s3 + $0x8] sm:$0xff]
      %v886 = vld [vmem:[%s3 + $0x10] sm:$0xff]
      %v887 = vld [vmem:[%s3 + $0x18] sm:$0xff]
      %889 = vset.pattern.permute.xlu0 0
      %890 = vperm.xlu0 %889, %v884
      %v891 = vpop.permute.xlu0 %890
      %894 = vset.pattern.permute.xlu0 0
      %895 = vperm.xlu0 %894, %v885
      %v896 = vpop.permute.xlu0 %895
      %899 = vset.pattern.permute.xlu0 0
      %900 = vperm.xlu0 %899, %v886
      %v901 = vpop.permute.xlu0 %900
      %904 = vset.pattern.permute.xlu0 0
      %905 = vperm.xlu0 %904, %v887
      %v906 = vpop.permute.xlu0 %905
      %v940 = vunpack.c.l.b16 %v596
      %v941 = vunpack.c.h.b16 %v596
      %v942 = vunpack.c.l.b16 %v597
      %v943 = vunpack.c.h.b16 %v597
      %v944 = vunpack.c.l.b16 %v598
      %v945 = vunpack.c.h.b16 %v598
      %v946 = vunpack.c.l.b16 %v599
      %v947 = vunpack.c.h.b16 %v599
      %v948 = vunpack.c.l.b16 %v600
      %v949 = vunpack.c.h.b16 %v600
      %v950 = vunpack.c.l.b16 %v601
      %v951 = vunpack.c.h.b16 %v601
      %v952 = vunpack.c.l.b16 %v602
      %v953 = vunpack.c.h.b16 %v602
      %v954 = vunpack.c.l.b16 %v603
      %v955 = vunpack.c.h.b16 %v603
      %v956 = vunpack.c.l.b16 %v604
      %v957 = vunpack.c.h.b16 %v604
      %v958 = vunpack.c.l.b16 %v605
      %v959 = vunpack.c.h.b16 %v605
      %v960 = vunpack.c.l.b16 %v606
      %v961 = vunpack.c.h.b16 %v606
      %v962 = vunpack.c.l.b16 %v607
      %v963 = vunpack.c.h.b16 %v607
      %v964 = vunpack.c.l.b16 %v608
      %v965 = vunpack.c.h.b16 %v608
      %v966 = vunpack.c.l.b16 %v609
      %v967 = vunpack.c.h.b16 %v609
      %v968 = vunpack.c.l.b16 %v610
      %v969 = vunpack.c.h.b16 %v610
      %v970 = vunpack.c.l.b16 %v611
      %v971 = vunpack.c.h.b16 %v611
      %v972 = vunpack.c.l.b16 %v612
      %v973 = vunpack.c.h.b16 %v612
      %v974 = vunpack.c.l.b16 %v613
      %v975 = vunpack.c.h.b16 %v613
      %v976 = vunpack.c.l.b16 %v614
      %v977 = vunpack.c.h.b16 %v614
      %v978 = vunpack.c.l.b16 %v615
      %v979 = vunpack.c.h.b16 %v615
      %v980 = vunpack.c.l.b16 %v616
      %v981 = vunpack.c.h.b16 %v616
      %v982 = vunpack.c.l.b16 %v617
      %v983 = vunpack.c.h.b16 %v617
      %v984 = vunpack.c.l.b16 %v618
      %v985 = vunpack.c.h.b16 %v618
      %v986 = vunpack.c.l.b16 %v619
      %v987 = vunpack.c.h.b16 %v619
      %v988 = vunpack.c.l.b16 %v620
      %v989 = vunpack.c.h.b16 %v620
      %v990 = vunpack.c.l.b16 %v621
      %v991 = vunpack.c.h.b16 %v621
      %v992 = vunpack.c.l.b16 %v622
      %v993 = vunpack.c.h.b16 %v622
      %v994 = vunpack.c.l.b16 %v623
      %v995 = vunpack.c.h.b16 %v623
      %v996 = vunpack.c.l.b16 %v624
      %v997 = vunpack.c.h.b16 %v624
      %v998 = vunpack.c.l.b16 %v625
      %v999 = vunpack.c.h.b16 %v625
      %v1000 = vunpack.c.l.b16 %v626
      %v1001 = vunpack.c.h.b16 %v626
      %v1002 = vunpack.c.l.b16 %v627
      %v1003 = vunpack.c.h.b16 %v627
      %v1004 = vpack.c.b16 %v956, %v940
      %v1005 = vpack.c.b16 %v957, %v941
      %v1006 = vpack.c.b16 %v958, %v942
      %v1007 = vpack.c.b16 %v959, %v943
      %v1008 = vpack.c.b16 %v960, %v944
      %v1009 = vpack.c.b16 %v961, %v945
      %v1010 = vpack.c.b16 %v962, %v946
      %v1011 = vpack.c.b16 %v963, %v947
      %v1012 = vpack.c.b16 %v964, %v948
      %v1013 = vpack.c.b16 %v965, %v949
      %v1014 = vpack.c.b16 %v966, %v950
      %v1015 = vpack.c.b16 %v967, %v951
      %v1016 = vpack.c.b16 %v968, %v952
      %v1017 = vpack.c.b16 %v969, %v953
      %v1018 = vpack.c.b16 %v970, %v954
      %v1019 = vpack.c.b16 %v971, %v955
      %v1020 = vpack.c.b16 %v988, %v972
      %v1021 = vpack.c.b16 %v989, %v973
      %v1022 = vpack.c.b16 %v990, %v974
      %v1023 = vpack.c.b16 %v991, %v975
      %v1024 = vpack.c.b16 %v992, %v976
      %v1025 = vpack.c.b16 %v993, %v977
      %v1026 = vpack.c.b16 %v994, %v978
      %v1027 = vpack.c.b16 %v995, %v979
      %v1028 = vpack.c.b16 %v996, %v980
      %v1029 = vpack.c.b16 %v997, %v981
      %v1030 = vpack.c.b16 %v998, %v982
      %v1031 = vpack.c.b16 %v999, %v983
      %v1032 = vpack.c.b16 %v1000, %v984
      %v1033 = vpack.c.b16 %v1001, %v985
      %v1034 = vpack.c.b16 %v1002, %v986
      %v1035 = vpack.c.b16 %v1003, %v987
      %v1324 = vunpack.c.l.b16 %v628
      %v1325 = vunpack.c.l.b16 %v629
      %v1326 = vunpack.c.l.b16 %v630
      %v1327 = vunpack.c.l.b16 %v631
      %v1328 = vunpack.c.l.b16 %v632
      %v1329 = vunpack.c.l.b16 %v633
      %v1330 = vunpack.c.l.b16 %v634
      %v1331 = vunpack.c.l.b16 %v635
      %v1332 = vunpack.c.l.b16 %v636
      %v1333 = vunpack.c.l.b16 %v637
      %v1334 = vunpack.c.l.b16 %v638
      %v1335 = vunpack.c.l.b16 %v639
      %v1336 = vunpack.c.l.b16 %v640
      %v1337 = vunpack.c.l.b16 %v641
      %v1338 = vunpack.c.l.b16 %v642
      %v1339 = vunpack.c.l.b16 %v643
      %v1340 = vunpack.c.l.b16 %v644
      %v1341 = vunpack.c.l.b16 %v645
      %v1342 = vunpack.c.l.b16 %v646
      %v1343 = vunpack.c.l.b16 %v647
      %v1344 = vunpack.c.l.b16 %v648
      %v1345 = vunpack.c.l.b16 %v649
      %v1346 = vunpack.c.l.b16 %v650
      %v1347 = vunpack.c.l.b16 %v651
      %v1348 = vunpack.c.l.b16 %v652
      %v1349 = vunpack.c.l.b16 %v653
      %v1350 = vunpack.c.l.b16 %v654
      %v1351 = vunpack.c.l.b16 %v655
      %v1352 = vunpack.c.l.b16 %v656
      %v1353 = vunpack.c.l.b16 %v657
      %v1354 = vunpack.c.l.b16 %v658
      %v1355 = vunpack.c.l.b16 %v659
      %v1356 = vunpack.c.l.b16 %v660
      %v1357 = vunpack.c.l.b16 %v661
      %v1358 = vunpack.c.l.b16 %v662
      %v1359 = vunpack.c.l.b16 %v663
      %v1360 = vunpack.c.l.b16 %v664
      %v1361 = vunpack.c.l.b16 %v665
      %v1362 = vunpack.c.l.b16 %v666
      %v1363 = vunpack.c.l.b16 %v667
      %v1364 = vunpack.c.l.b16 %v668
      %v1365 = vunpack.c.l.b16 %v669
      %v1366 = vunpack.c.l.b16 %v670
      %v1367 = vunpack.c.l.b16 %v671
      %v1368 = vunpack.c.l.b16 %v672
      %v1369 = vunpack.c.l.b16 %v673
      %v1370 = vunpack.c.l.b16 %v674
      %v1371 = vunpack.c.l.b16 %v675
      %v1372 = vunpack.c.l.b16 %v676
      %v1373 = vunpack.c.l.b16 %v677
      %v1374 = vunpack.c.l.b16 %v678
      %v1375 = vunpack.c.l.b16 %v679
      %v1376 = vunpack.c.l.b16 %v680
      %v1377 = vunpack.c.l.b16 %v681
      %v1378 = vunpack.c.l.b16 %v682
      %v1379 = vunpack.c.l.b16 %v683
      %v1380 = vunpack.c.l.b16 %v684
      %v1381 = vunpack.c.l.b16 %v685
      %v1382 = vunpack.c.l.b16 %v686
      %v1383 = vunpack.c.l.b16 %v687
      %v1384 = vunpack.c.l.b16 %v688
      %v1385 = vunpack.c.l.b16 %v689
      %v1386 = vunpack.c.l.b16 %v690
      %v1387 = vunpack.c.l.b16 %v691
      %v1388 = vunpack.c.l.b16 %v692
      %v1389 = vunpack.c.l.b16 %v693
      %v1390 = vunpack.c.l.b16 %v694
      %v1391 = vunpack.c.l.b16 %v695
      %v1392 = vunpack.c.l.b16 %v696
      %v1393 = vunpack.c.l.b16 %v697
      %v1394 = vunpack.c.l.b16 %v698
      %v1395 = vunpack.c.l.b16 %v699
      %v1396 = vunpack.c.l.b16 %v700
      %v1397 = vunpack.c.l.b16 %v701
      %v1398 = vunpack.c.l.b16 %v702
      %v1399 = vunpack.c.l.b16 %v703
      %v1400 = vunpack.c.l.b16 %v704
      %v1401 = vunpack.c.l.b16 %v705
      %v1402 = vunpack.c.l.b16 %v706
      %v1403 = vunpack.c.l.b16 %v707
      %v1404 = vunpack.c.l.b16 %v708
      %v1405 = vunpack.c.l.b16 %v709
      %v1406 = vunpack.c.l.b16 %v710
      %v1407 = vunpack.c.l.b16 %v711
      %v1408 = vunpack.c.l.b16 %v712
      %v1409 = vunpack.c.l.b16 %v713
      %v1410 = vunpack.c.l.b16 %v714
      %v1411 = vunpack.c.l.b16 %v715
      %v1412 = vunpack.c.l.b16 %v716
      %v1413 = vunpack.c.l.b16 %v717
      %v1414 = vunpack.c.l.b16 %v718
      %v1415 = vunpack.c.l.b16 %v719
      %v1416 = vunpack.c.l.b16 %v720
      %v1417 = vunpack.c.l.b16 %v721
      %v1418 = vunpack.c.l.b16 %v722
      %v1419 = vunpack.c.l.b16 %v723
      %v1420 = vunpack.c.l.b16 %v724
      %v1421 = vunpack.c.l.b16 %v725
      %v1422 = vunpack.c.l.b16 %v726
      %v1423 = vunpack.c.l.b16 %v727
      %v1424 = vunpack.c.l.b16 %v728
      %v1425 = vunpack.c.l.b16 %v729
      %v1426 = vunpack.c.l.b16 %v730
      %v1427 = vunpack.c.l.b16 %v731
      %v1428 = vunpack.c.l.b16 %v732
      %v1429 = vunpack.c.l.b16 %v733
      %v1430 = vunpack.c.l.b16 %v734
      %v1431 = vunpack.c.l.b16 %v735
      %v1432 = vunpack.c.l.b16 %v736
      %v1433 = vunpack.c.l.b16 %v737
      %v1434 = vunpack.c.l.b16 %v738
      %v1435 = vunpack.c.l.b16 %v739
      %v1436 = vunpack.c.l.b16 %v740
      %v1437 = vunpack.c.l.b16 %v741
      %v1438 = vunpack.c.l.b16 %v742
      %v1439 = vunpack.c.l.b16 %v743
      %v1440 = vunpack.c.l.b16 %v744
      %v1441 = vunpack.c.l.b16 %v745
      %v1442 = vunpack.c.l.b16 %v746
      %v1443 = vunpack.c.l.b16 %v747
      %v1444 = vunpack.c.l.b16 %v748
      %v1445 = vunpack.c.l.b16 %v749
      %v1446 = vunpack.c.l.b16 %v750
      %v1447 = vunpack.c.l.b16 %v751
      %v1448 = vunpack.c.l.b16 %v752
      %v1449 = vunpack.c.l.b16 %v753
      %v1450 = vunpack.c.l.b16 %v754
      %v1451 = vunpack.c.l.b16 %v755
      %v1452 = vunpack.c.l.b16 %v756
      %v1453 = vunpack.c.l.b16 %v757
      %v1454 = vunpack.c.l.b16 %v758
      %v1455 = vunpack.c.l.b16 %v759
      %v1456 = vunpack.c.l.b16 %v760
      %v1457 = vunpack.c.l.b16 %v761
      %v1458 = vunpack.c.l.b16 %v762
      %v1459 = vunpack.c.l.b16 %v763
      %v1460 = vunpack.c.l.b16 %v764
      %v1461 = vunpack.c.l.b16 %v765
      %v1462 = vunpack.c.l.b16 %v766
      %v1463 = vunpack.c.l.b16 %v767
      %v1464 = vunpack.c.l.b16 %v768
      %v1465 = vunpack.c.l.b16 %v769
      %v1466 = vunpack.c.l.b16 %v770
      %v1467 = vunpack.c.l.b16 %v771
      %v1468 = vunpack.c.l.b16 %v772
      %v1469 = vunpack.c.l.b16 %v773
      %v1470 = vunpack.c.l.b16 %v774
      %v1471 = vunpack.c.l.b16 %v775
      %v1472 = vunpack.c.l.b16 %v776
      %v1473 = vunpack.c.l.b16 %v777
      %v1474 = vunpack.c.l.b16 %v778
      %v1475 = vunpack.c.l.b16 %v779
      %v1476 = vunpack.c.l.b16 %v780
      %v1477 = vunpack.c.l.b16 %v781
      %v1478 = vunpack.c.l.b16 %v782
      %v1479 = vunpack.c.l.b16 %v783
      %v1480 = vunpack.c.l.b16 %v784
      %v1481 = vunpack.c.l.b16 %v785
      %v1482 = vunpack.c.l.b16 %v786
      %v1483 = vunpack.c.l.b16 %v787
      %v1484 = vunpack.c.l.b16 %v788
      %v1485 = vunpack.c.l.b16 %v789
      %v1486 = vunpack.c.l.b16 %v790
      %v1487 = vunpack.c.l.b16 %v791
      %v1488 = vunpack.c.l.b16 %v792
      %v1489 = vunpack.c.l.b16 %v793
      %v1490 = vunpack.c.l.b16 %v794
      %v1491 = vunpack.c.l.b16 %v795
      %v1492 = vunpack.c.l.b16 %v796
      %v1493 = vunpack.c.l.b16 %v797
      %v1494 = vunpack.c.l.b16 %v798
      %v1495 = vunpack.c.l.b16 %v799
      %v1496 = vunpack.c.l.b16 %v800
      %v1497 = vunpack.c.l.b16 %v801
      %v1498 = vunpack.c.l.b16 %v802
      %v1499 = vunpack.c.l.b16 %v803
      %v1500 = vunpack.c.l.b16 %v804
      %v1501 = vunpack.c.l.b16 %v805
      %v1502 = vunpack.c.l.b16 %v806
      %v1503 = vunpack.c.l.b16 %v807
      %v1504 = vunpack.c.l.b16 %v808
      %v1505 = vunpack.c.l.b16 %v809
      %v1506 = vunpack.c.l.b16 %v810
      %v1507 = vunpack.c.l.b16 %v811
      %v1508 = vunpack.c.l.b16 %v812
      %v1509 = vunpack.c.l.b16 %v813
      %v1510 = vunpack.c.l.b16 %v814
      %v1511 = vunpack.c.l.b16 %v815
      %v1512 = vunpack.c.l.b16 %v816
      %v1513 = vunpack.c.l.b16 %v817
      %v1514 = vunpack.c.l.b16 %v818
      %v1515 = vunpack.c.l.b16 %v819
      %v1516 = vunpack.c.l.b16 %v820
      %v1517 = vunpack.c.l.b16 %v821
      %v1518 = vunpack.c.l.b16 %v822
      %v1519 = vunpack.c.l.b16 %v823
      %v1520 = vunpack.c.l.b16 %v824
      %v1521 = vunpack.c.l.b16 %v825
      %v1522 = vunpack.c.l.b16 %v826
      %v1523 = vunpack.c.l.b16 %v827
      %v1524 = vunpack.c.l.b16 %v828
      %v1525 = vunpack.c.l.b16 %v829
      %v1526 = vunpack.c.l.b16 %v830
      %v1527 = vunpack.c.l.b16 %v831
      %v1528 = vunpack.c.l.b16 %v832
      %v1529 = vunpack.c.l.b16 %v833
      %v1530 = vunpack.c.l.b16 %v834
      %v1531 = vunpack.c.l.b16 %v835
      %v1532 = vunpack.c.l.b16 %v836
      %v1533 = vunpack.c.l.b16 %v837
      %v1534 = vunpack.c.l.b16 %v838
      %v1535 = vunpack.c.l.b16 %v839
      %v1536 = vunpack.c.l.b16 %v840
      %v1537 = vunpack.c.l.b16 %v841
      %v1538 = vunpack.c.l.b16 %v842
      %v1539 = vunpack.c.l.b16 %v843
      %v1540 = vunpack.c.l.b16 %v844
      %v1541 = vunpack.c.l.b16 %v845
      %v1542 = vunpack.c.l.b16 %v846
      %v1543 = vunpack.c.l.b16 %v847
      %v1544 = vunpack.c.l.b16 %v848
      %v1545 = vunpack.c.l.b16 %v849
      %v1546 = vunpack.c.l.b16 %v850
      %v1547 = vunpack.c.l.b16 %v851
      %v1548 = vunpack.c.l.b16 %v852
      %v1549 = vunpack.c.l.b16 %v853
      %v1550 = vunpack.c.l.b16 %v854
      %v1551 = vunpack.c.l.b16 %v855
      %v1552 = vunpack.c.l.b16 %v856
      %v1553 = vunpack.c.l.b16 %v857
      %v1554 = vunpack.c.l.b16 %v858
      %v1555 = vunpack.c.l.b16 %v859
      %v1556 = vunpack.c.l.b16 %v860
      %v1557 = vunpack.c.l.b16 %v861
      %v1558 = vunpack.c.l.b16 %v862
      %v1559 = vunpack.c.l.b16 %v863
      %v1560 = vunpack.c.l.b16 %v864
      %v1561 = vunpack.c.l.b16 %v865
      %v1562 = vunpack.c.l.b16 %v866
      %v1563 = vunpack.c.l.b16 %v867
      %v1564 = vunpack.c.l.b16 %v868
      %v1565 = vunpack.c.l.b16 %v869
      %v1566 = vunpack.c.l.b16 %v870
      %v1567 = vunpack.c.l.b16 %v871
      %v1568 = vunpack.c.l.b16 %v872
      %v1569 = vunpack.c.l.b16 %v873
      %v1570 = vunpack.c.l.b16 %v874
      %v1571 = vunpack.c.l.b16 %v875
      %v1572 = vunpack.c.l.b16 %v876
      %v1573 = vunpack.c.l.b16 %v877
      %v1574 = vunpack.c.l.b16 %v878
      %v1575 = vunpack.c.l.b16 %v879
      %v1576 = vunpack.c.l.b16 %v880
      %v1577 = vunpack.c.l.b16 %v881
      %v1578 = vunpack.c.l.b16 %v882
      %v1579 = vunpack.c.l.b16 %v883
      %v1580 = vpack.c.b16 %v1325, %v1324
      %v1581 = vpack.c.b16 %v1327, %v1326
      %v1582 = vpack.c.b16 %v1329, %v1328
      %v1583 = vpack.c.b16 %v1331, %v1330
      %v1584 = vpack.c.b16 %v1333, %v1332
      %v1585 = vpack.c.b16 %v1335, %v1334
      %v1586 = vpack.c.b16 %v1337, %v1336
      %v1587 = vpack.c.b16 %v1339, %v1338
      %v1588 = vpack.c.b16 %v1341, %v1340
      %v1589 = vpack.c.b16 %v1343, %v1342
      %v1590 = vpack.c.b16 %v1345, %v1344
      %v1591 = vpack.c.b16 %v1347, %v1346
      %v1592 = vpack.c.b16 %v1349, %v1348
      %v1593 = vpack.c.b16 %v1351, %v1350
      %v1594 = vpack.c.b16 %v1353, %v1352
      %v1595 = vpack.c.b16 %v1355, %v1354
      %v1596 = vpack.c.b16 %v1357, %v1356
      %v1597 = vpack.c.b16 %v1359, %v1358
      %v1598 = vpack.c.b16 %v1361, %v1360
      %v1599 = vpack.c.b16 %v1363, %v1362
      %v1600 = vpack.c.b16 %v1365, %v1364
      %v1601 = vpack.c.b16 %v1367, %v1366
      %v1602 = vpack.c.b16 %v1369, %v1368
      %v1603 = vpack.c.b16 %v1371, %v1370
      %v1604 = vpack.c.b16 %v1373, %v1372
      %v1605 = vpack.c.b16 %v1375, %v1374
      %v1606 = vpack.c.b16 %v1377, %v1376
      %v1607 = vpack.c.b16 %v1379, %v1378
      %v1608 = vpack.c.b16 %v1381, %v1380
      %v1609 = vpack.c.b16 %v1383, %v1382
      %v1610 = vpack.c.b16 %v1385, %v1384
      %v1611 = vpack.c.b16 %v1387, %v1386
      %v1612 = vpack.c.b16 %v1389, %v1388
      %v1613 = vpack.c.b16 %v1391, %v1390
      %v1614 = vpack.c.b16 %v1393, %v1392
      %v1615 = vpack.c.b16 %v1395, %v1394
      %v1616 = vpack.c.b16 %v1397, %v1396
      %v1617 = vpack.c.b16 %v1399, %v1398
      %v1618 = vpack.c.b16 %v1401, %v1400
      %v1619 = vpack.c.b16 %v1403, %v1402
      %v1620 = vpack.c.b16 %v1405, %v1404
      %v1621 = vpack.c.b16 %v1407, %v1406
      %v1622 = vpack.c.b16 %v1409, %v1408
      %v1623 = vpack.c.b16 %v1411, %v1410
      %v1624 = vpack.c.b16 %v1413, %v1412
      %v1625 = vpack.c.b16 %v1415, %v1414
      %v1626 = vpack.c.b16 %v1417, %v1416
      %v1627 = vpack.c.b16 %v1419, %v1418
      %v1628 = vpack.c.b16 %v1421, %v1420
      %v1629 = vpack.c.b16 %v1423, %v1422
      %v1630 = vpack.c.b16 %v1425, %v1424
      %v1631 = vpack.c.b16 %v1427, %v1426
      %v1632 = vpack.c.b16 %v1429, %v1428
      %v1633 = vpack.c.b16 %v1431, %v1430
      %v1634 = vpack.c.b16 %v1433, %v1432
      %v1635 = vpack.c.b16 %v1435, %v1434
      %v1636 = vpack.c.b16 %v1437, %v1436
      %v1637 = vpack.c.b16 %v1439, %v1438
      %v1638 = vpack.c.b16 %v1441, %v1440
      %v1639 = vpack.c.b16 %v1443, %v1442
      %v1640 = vpack.c.b16 %v1445, %v1444
      %v1641 = vpack.c.b16 %v1447, %v1446
      %v1642 = vpack.c.b16 %v1449, %v1448
      %v1643 = vpack.c.b16 %v1451, %v1450
      %v1644 = vpack.c.b16 %v1453, %v1452
      %v1645 = vpack.c.b16 %v1455, %v1454
      %v1646 = vpack.c.b16 %v1457, %v1456
      %v1647 = vpack.c.b16 %v1459, %v1458
      %v1648 = vpack.c.b16 %v1461, %v1460
      %v1649 = vpack.c.b16 %v1463, %v1462
      %v1650 = vpack.c.b16 %v1465, %v1464
      %v1651 = vpack.c.b16 %v1467, %v1466
      %v1652 = vpack.c.b16 %v1469, %v1468
      %v1653 = vpack.c.b16 %v1471, %v1470
      %v1654 = vpack.c.b16 %v1473, %v1472
      %v1655 = vpack.c.b16 %v1475, %v1474
      %v1656 = vpack.c.b16 %v1477, %v1476
      %v1657 = vpack.c.b16 %v1479, %v1478
      %v1658 = vpack.c.b16 %v1481, %v1480
      %v1659 = vpack.c.b16 %v1483, %v1482
      %v1660 = vpack.c.b16 %v1485, %v1484
      %v1661 = vpack.c.b16 %v1487, %v1486
      %v1662 = vpack.c.b16 %v1489, %v1488
      %v1663 = vpack.c.b16 %v1491, %v1490
      %v1664 = vpack.c.b16 %v1493, %v1492
      %v1665 = vpack.c.b16 %v1495, %v1494
      %v1666 = vpack.c.b16 %v1497, %v1496
      %v1667 = vpack.c.b16 %v1499, %v1498
      %v1668 = vpack.c.b16 %v1501, %v1500
      %v1669 = vpack.c.b16 %v1503, %v1502
      %v1670 = vpack.c.b16 %v1505, %v1504
      %v1671 = vpack.c.b16 %v1507, %v1506
      %v1672 = vpack.c.b16 %v1509, %v1508
      %v1673 = vpack.c.b16 %v1511, %v1510
      %v1674 = vpack.c.b16 %v1513, %v1512
      %v1675 = vpack.c.b16 %v1515, %v1514
      %v1676 = vpack.c.b16 %v1517, %v1516
      %v1677 = vpack.c.b16 %v1519, %v1518
      %v1678 = vpack.c.b16 %v1521, %v1520
      %v1679 = vpack.c.b16 %v1523, %v1522
      %v1680 = vpack.c.b16 %v1525, %v1524
      %v1681 = vpack.c.b16 %v1527, %v1526
      %v1682 = vpack.c.b16 %v1529, %v1528
      %v1683 = vpack.c.b16 %v1531, %v1530
      %v1684 = vpack.c.b16 %v1533, %v1532
      %v1685 = vpack.c.b16 %v1535, %v1534
      %v1686 = vpack.c.b16 %v1537, %v1536
      %v1687 = vpack.c.b16 %v1539, %v1538
      %v1688 = vpack.c.b16 %v1541, %v1540
      %v1689 = vpack.c.b16 %v1543, %v1542
      %v1690 = vpack.c.b16 %v1545, %v1544
      %v1691 = vpack.c.b16 %v1547, %v1546
      %v1692 = vpack.c.b16 %v1549, %v1548
      %v1693 = vpack.c.b16 %v1551, %v1550
      %v1694 = vpack.c.b16 %v1553, %v1552
      %v1695 = vpack.c.b16 %v1555, %v1554
      %v1696 = vpack.c.b16 %v1557, %v1556
      %v1697 = vpack.c.b16 %v1559, %v1558
      %v1698 = vpack.c.b16 %v1561, %v1560
      %v1699 = vpack.c.b16 %v1563, %v1562
      %v1700 = vpack.c.b16 %v1565, %v1564
      %v1701 = vpack.c.b16 %v1567, %v1566
      %v1702 = vpack.c.b16 %v1569, %v1568
      %v1703 = vpack.c.b16 %v1571, %v1570
      %v1704 = vpack.c.b16 %v1573, %v1572
      %v1705 = vpack.c.b16 %v1575, %v1574
      %v1706 = vpack.c.b16 %v1577, %v1576
      %v1707 = vpack.c.b16 %v1579, %v1578
      %1836 = vmatpush.bf16.msra.mxu0 %v1587
      %1837 = vmatpush.bf16.msra.mxu0 %v1586
      %1838 = vmatpush.bf16.msra.mxu0 %v1585
      %1839 = vmatpush.bf16.msra.mxu0 %v1584
      %1840 = vmatpush.bf16.msra.mxu0 %v1583
      %1841 = vmatpush.bf16.msra.mxu0 %v1582
      %1842 = vmatpush.bf16.msra.mxu0 %v1581
      %1843 = vmatpush.bf16.msra.mxu0 %v1580
      %1844 = vmatmul.bf16.gmra.mxu0 %v1004
      %v1845 = vpop.f32.mrf.mxu0
      %v1846 = vadd.f32 %v891, %v1845
      %v1847 = vpop.f32.mrf.mxu0
      %v1848 = vadd.f32 %v896, %v1847
      %1849 = vmatmul.bf16.gmra.mxu0 %v1020
      %v1850 = vpop.f32.mrf.mxu0
      %v1851 = vadd.f32 %v901, %v1850
      %v1852 = vpop.f32.mrf.mxu0
      %v1853 = vadd.f32 %v906, %v1852
      %1854 = vdwg.mxu0
      %1855 = vmatpush.bf16.msra.mxu0 %v1595
      %1856 = vmatpush.bf16.msra.mxu0 %v1594
      %1857 = vmatpush.bf16.msra.mxu0 %v1593
      %1858 = vmatpush.bf16.msra.mxu0 %v1592
      %1859 = vmatpush.bf16.msra.mxu0 %v1591
      %1860 = vmatpush.bf16.msra.mxu0 %v1590
      %1861 = vmatpush.bf16.msra.mxu0 %v1589
      %1862 = vmatpush.bf16.msra.mxu0 %v1588
      %1863 = vmatmul.bf16.gmra.mxu0 %v1005
      %v1864 = vpop.f32.mrf.mxu0
      %v1865 = vadd.f32 %v1846, %v1864
      %v1866 = vpop.f32.mrf.mxu0
      %v1867 = vadd.f32 %v1848, %v1866
      %1868 = vmatmul.bf16.gmra.mxu0 %v1021
      %v1869 = vpop.f32.mrf.mxu0
      %v1870 = vadd.f32 %v1851, %v1869
      %v1871 = vpop.f32.mrf.mxu0
      %v1872 = vadd.f32 %v1853, %v1871
      %1873 = vdwg.mxu0
      %1874 = vmatpush.bf16.msra.mxu0 %v1603
      %1875 = vmatpush.bf16.msra.mxu0 %v1602
      %1876 = vmatpush.bf16.msra.mxu0 %v1601
      %1877 = vmatpush.bf16.msra.mxu0 %v1600
      %1878 = vmatpush.bf16.msra.mxu0 %v1599
      %1879 = vmatpush.bf16.msra.mxu0 %v1598
      %1880 = vmatpush.bf16.msra.mxu0 %v1597
      %1881 = vmatpush.bf16.msra.mxu0 %v1596
      %1882 = vmatmul.bf16.gmra.mxu0 %v1006
      %v1883 = vpop.f32.mrf.mxu0
      %v1884 = vadd.f32 %v1865, %v1883
      %v1885 = vpop.f32.mrf.mxu0
      %v1886 = vadd.f32 %v1867, %v1885
      %1887 = vmatmul.bf16.gmra.mxu0 %v1022
      %v1888 = vpop.f32.mrf.mxu0
      %v1889 = vadd.f32 %v1870, %v1888
      %v1890 = vpop.f32.mrf.mxu0
      %v1891 = vadd.f32 %v1872, %v1890
      %1892 = vdwg.mxu0
      %1893 = vmatpush.bf16.msra.mxu0 %v1611
      %1894 = vmatpush.bf16.msra.mxu0 %v1610
      %1895 = vmatpush.bf16.msra.mxu0 %v1609
      %1896 = vmatpush.bf16.msra.mxu0 %v1608
      %1897 = vmatpush.bf16.msra.mxu0 %v1607
      %1898 = vmatpush.bf16.msra.mxu0 %v1606
      %1899 = vmatpush.bf16.msra.mxu0 %v1605
      %1900 = vmatpush.bf16.msra.mxu0 %v1604
      %1901 = vmatmul.bf16.gmra.mxu0 %v1007
      %v1902 = vpop.f32.mrf.mxu0
      %v1903 = vadd.f32 %v1884, %v1902
      %v1904 = vpop.f32.mrf.mxu0
      %v1905 = vadd.f32 %v1886, %v1904
      %1906 = vmatmul.bf16.gmra.mxu0 %v1023
      %v1907 = vpop.f32.mrf.mxu0
      %v1908 = vadd.f32 %v1889, %v1907
      %v1909 = vpop.f32.mrf.mxu0
      %v1910 = vadd.f32 %v1891, %v1909
      %1911 = vdwg.mxu0
      %1912 = vmatpush.bf16.msra.mxu0 %v1619
      %1913 = vmatpush.bf16.msra.mxu0 %v1618
      %1914 = vmatpush.bf16.msra.mxu0 %v1617
      %1915 = vmatpush.bf16.msra.mxu0 %v1616
      %1916 = vmatpush.bf16.msra.mxu0 %v1615
      %1917 = vmatpush.bf16.msra.mxu0 %v1614
      %1918 = vmatpush.bf16.msra.mxu0 %v1613
      %1919 = vmatpush.bf16.msra.mxu0 %v1612
      %1920 = vmatmul.bf16.gmra.mxu0 %v1008
      %v1921 = vpop.f32.mrf.mxu0
      %v1922 = vadd.f32 %v1903, %v1921
      %v1923 = vpop.f32.mrf.mxu0
      %v1924 = vadd.f32 %v1905, %v1923
      %1925 = vmatmul.bf16.gmra.mxu0 %v1024
      %v1926 = vpop.f32.mrf.mxu0
      %v1927 = vadd.f32 %v1908, %v1926
      %v1928 = vpop.f32.mrf.mxu0
      %v1929 = vadd.f32 %v1910, %v1928
      %1930 = vdwg.mxu0
      %1931 = vmatpush.bf16.msra.mxu0 %v1627
      %1932 = vmatpush.bf16.msra.mxu0 %v1626
      %1933 = vmatpush.bf16.msra.mxu0 %v1625
      %1934 = vmatpush.bf16.msra.mxu0 %v1624
      %1935 = vmatpush.bf16.msra.mxu0 %v1623
      %1936 = vmatpush.bf16.msra.mxu0 %v1622
      %1937 = vmatpush.bf16.msra.mxu0 %v1621
      %1938 = vmatpush.bf16.msra.mxu0 %v1620
      %1939 = vmatmul.bf16.gmra.mxu0 %v1009
      %v1940 = vpop.f32.mrf.mxu0
      %v1941 = vadd.f32 %v1922, %v1940
      %v1942 = vpop.f32.mrf.mxu0
      %v1943 = vadd.f32 %v1924, %v1942
      %1944 = vmatmul.bf16.gmra.mxu0 %v1025
      %v1945 = vpop.f32.mrf.mxu0
      %v1946 = vadd.f32 %v1927, %v1945
      %v1947 = vpop.f32.mrf.mxu0
      %v1948 = vadd.f32 %v1929, %v1947
      %1949 = vdwg.mxu0
      %1950 = vmatpush.bf16.msra.mxu0 %v1635
      %1951 = vmatpush.bf16.msra.mxu0 %v1634
      %1952 = vmatpush.bf16.msra.mxu0 %v1633
      %1953 = vmatpush.bf16.msra.mxu0 %v1632
      %1954 = vmatpush.bf16.msra.mxu0 %v1631
      %1955 = vmatpush.bf16.msra.mxu0 %v1630
      %1956 = vmatpush.bf16.msra.mxu0 %v1629
      %1957 = vmatpush.bf16.msra.mxu0 %v1628
      %1958 = vmatmul.bf16.gmra.mxu0 %v1010
      %v1959 = vpop.f32.mrf.mxu0
      %v1960 = vadd.f32 %v1941, %v1959
      %v1961 = vpop.f32.mrf.mxu0
      %v1962 = vadd.f32 %v1943, %v1961
      %1963 = vmatmul.bf16.gmra.mxu0 %v1026
      %v1964 = vpop.f32.mrf.mxu0
      %v1965 = vadd.f32 %v1946, %v1964
      %v1966 = vpop.f32.mrf.mxu0
      %v1967 = vadd.f32 %v1948, %v1966
      %1968 = vdwg.mxu0
      %1969 = vmatpush.bf16.msra.mxu0 %v1643
      %1970 = vmatpush.bf16.msra.mxu0 %v1642
      %1971 = vmatpush.bf16.msra.mxu0 %v1641
      %1972 = vmatpush.bf16.msra.mxu0 %v1640
      %1973 = vmatpush.bf16.msra.mxu0 %v1639
      %1974 = vmatpush.bf16.msra.mxu0 %v1638
      %1975 = vmatpush.bf16.msra.mxu0 %v1637
      %1976 = vmatpush.bf16.msra.mxu0 %v1636
      %1977 = vmatmul.bf16.gmra.mxu0 %v1011
      %v1978 = vpop.f32.mrf.mxu0
      %v1979 = vadd.f32 %v1960, %v1978
      %v1980 = vpop.f32.mrf.mxu0
      %v1981 = vadd.f32 %v1962, %v1980
      %1982 = vmatmul.bf16.gmra.mxu0 %v1027
      %v1983 = vpop.f32.mrf.mxu0
      %v1984 = vadd.f32 %v1965, %v1983
      %v1985 = vpop.f32.mrf.mxu0
      %v1986 = vadd.f32 %v1967, %v1985
      %1987 = vdwg.mxu0
      %1988 = vmatpush.bf16.msra.mxu0 %v1651
      %1989 = vmatpush.bf16.msra.mxu0 %v1650
      %1990 = vmatpush.bf16.msra.mxu0 %v1649
      %1991 = vmatpush.bf16.msra.mxu0 %v1648
      %1992 = vmatpush.bf16.msra.mxu0 %v1647
      %1993 = vmatpush.bf16.msra.mxu0 %v1646
      %1994 = vmatpush.bf16.msra.mxu0 %v1645
      %1995 = vmatpush.bf16.msra.mxu0 %v1644
      %1996 = vmatmul.bf16.gmra.mxu0 %v1012
      %v1997 = vpop.f32.mrf.mxu0
      %v1998 = vadd.f32 %v1979, %v1997
      %v1999 = vpop.f32.mrf.mxu0
      %v2000 = vadd.f32 %v1981, %v1999
      %2001 = vmatmul.bf16.gmra.mxu0 %v1028
      %v2002 = vpop.f32.mrf.mxu0
      %v2003 = vadd.f32 %v1984, %v2002
      %v2004 = vpop.f32.mrf.mxu0
      %v2005 = vadd.f32 %v1986, %v2004
      %2006 = vdwg.mxu0
      %2007 = vmatpush.bf16.msra.mxu0 %v1659
      %2008 = vmatpush.bf16.msra.mxu0 %v1658
      %2009 = vmatpush.bf16.msra.mxu0 %v1657
      %2010 = vmatpush.bf16.msra.mxu0 %v1656
      %2011 = vmatpush.bf16.msra.mxu0 %v1655
      %2012 = vmatpush.bf16.msra.mxu0 %v1654
      %2013 = vmatpush.bf16.msra.mxu0 %v1653
      %2014 = vmatpush.bf16.msra.mxu0 %v1652
      %2015 = vmatmul.bf16.gmra.mxu0 %v1013
      %v2016 = vpop.f32.mrf.mxu0
      %v2017 = vadd.f32 %v1998, %v2016
      %v2018 = vpop.f32.mrf.mxu0
      %v2019 = vadd.f32 %v2000, %v2018
      %2020 = vmatmul.bf16.gmra.mxu0 %v1029
      %v2021 = vpop.f32.mrf.mxu0
      %v2022 = vadd.f32 %v2003, %v2021
      %v2023 = vpop.f32.mrf.mxu0
      %v2024 = vadd.f32 %v2005, %v2023
      %2025 = vdwg.mxu0
      %2026 = vmatpush.bf16.msra.mxu0 %v1667
      %2027 = vmatpush.bf16.msra.mxu0 %v1666
      %2028 = vmatpush.bf16.msra.mxu0 %v1665
      %2029 = vmatpush.bf16.msra.mxu0 %v1664
      %2030 = vmatpush.bf16.msra.mxu0 %v1663
      %2031 = vmatpush.bf16.msra.mxu0 %v1662
      %2032 = vmatpush.bf16.msra.mxu0 %v1661
      %2033 = vmatpush.bf16.msra.mxu0 %v1660
      %2034 = vmatmul.bf16.gmra.mxu0 %v1014
      %v2035 = vpop.f32.mrf.mxu0
      %v2036 = vadd.f32 %v2017, %v2035
      %v2037 = vpop.f32.mrf.mxu0
      %v2038 = vadd.f32 %v2019, %v2037
      %2039 = vmatmul.bf16.gmra.mxu0 %v1030
      %v2040 = vpop.f32.mrf.mxu0
      %v2041 = vadd.f32 %v2022, %v2040
      %v2042 = vpop.f32.mrf.mxu0
      %v2043 = vadd.f32 %v2024, %v2042
      %2044 = vdwg.mxu0
      %2045 = vmatpush.bf16.msra.mxu0 %v1675
      %2046 = vmatpush.bf16.msra.mxu0 %v1674
      %2047 = vmatpush.bf16.msra.mxu0 %v1673
      %2048 = vmatpush.bf16.msra.mxu0 %v1672
      %2049 = vmatpush.bf16.msra.mxu0 %v1671
      %2050 = vmatpush.bf16.msra.mxu0 %v1670
      %2051 = vmatpush.bf16.msra.mxu0 %v1669
      %2052 = vmatpush.bf16.msra.mxu0 %v1668
      %2053 = vmatmul.bf16.gmra.mxu0 %v1015
      %v2054 = vpop.f32.mrf.mxu0
      %v2055 = vadd.f32 %v2036, %v2054
      %v2056 = vpop.f32.mrf.mxu0
      %v2057 = vadd.f32 %v2038, %v2056
      %2058 = vmatmul.bf16.gmra.mxu0 %v1031
      %v2059 = vpop.f32.mrf.mxu0
      %v2060 = vadd.f32 %v2041, %v2059
      %v2061 = vpop.f32.mrf.mxu0
      %v2062 = vadd.f32 %v2043, %v2061
      %2063 = vdwg.mxu0
      %2064 = vmatpush.bf16.msra.mxu0 %v1683
      %2065 = vmatpush.bf16.msra.mxu0 %v1682
      %2066 = vmatpush.bf16.msra.mxu0 %v1681
      %2067 = vmatpush.bf16.msra.mxu0 %v1680
      %2068 = vmatpush.bf16.msra.mxu0 %v1679
      %2069 = vmatpush.bf16.msra.mxu0 %v1678
      %2070 = vmatpush.bf16.msra.mxu0 %v1677
      %2071 = vmatpush.bf16.msra.mxu0 %v1676
      %2072 = vmatmul.bf16.gmra.mxu0 %v1016
      %v2073 = vpop.f32.mrf.mxu0
      %v2074 = vadd.f32 %v2055, %v2073
      %v2075 = vpop.f32.mrf.mxu0
      %v2076 = vadd.f32 %v2057, %v2075
      %2077 = vmatmul.bf16.gmra.mxu0 %v1032
      %v2078 = vpop.f32.mrf.mxu0
      %v2079 = vadd.f32 %v2060, %v2078
      %v2080 = vpop.f32.mrf.mxu0
      %v2081 = vadd.f32 %v2062, %v2080
      %2082 = vdwg.mxu0
      %2083 = vmatpush.bf16.msra.mxu0 %v1691
      %2084 = vmatpush.bf16.msra.mxu0 %v1690
      %2085 = vmatpush.bf16.msra.mxu0 %v1689
      %2086 = vmatpush.bf16.msra.mxu0 %v1688
      %2087 = vmatpush.bf16.msra.mxu0 %v1687
      %2088 = vmatpush.bf16.msra.mxu0 %v1686
      %2089 = vmatpush.bf16.msra.mxu0 %v1685
      %2090 = vmatpush.bf16.msra.mxu0 %v1684
      %2091 = vmatmul.bf16.gmra.mxu0 %v1017
      %v2092 = vpop.f32.mrf.mxu0
      %v2093 = vadd.f32 %v2074, %v2092
      %v2094 = vpop.f32.mrf.mxu0
      %v2095 = vadd.f32 %v2076, %v2094
      %2096 = vmatmul.bf16.gmra.mxu0 %v1033
      %v2097 = vpop.f32.mrf.mxu0
      %v2098 = vadd.f32 %v2079, %v2097
      %v2099 = vpop.f32.mrf.mxu0
      %v2100 = vadd.f32 %v2081, %v2099
      %2101 = vdwg.mxu0
      %2102 = vmatpush.bf16.msra.mxu0 %v1699
      %2103 = vmatpush.bf16.msra.mxu0 %v1698
      %2104 = vmatpush.bf16.msra.mxu0 %v1697
      %2105 = vmatpush.bf16.msra.mxu0 %v1696
      %2106 = vmatpush.bf16.msra.mxu0 %v1695
      %2107 = vmatpush.bf16.msra.mxu0 %v1694
      %2108 = vmatpush.bf16.msra.mxu0 %v1693
      %2109 = vmatpush.bf16.msra.mxu0 %v1692
      %2110 = vmatmul.bf16.gmra.mxu0 %v1018
      %v2111 = vpop.f32.mrf.mxu0
      %v2112 = vadd.f32 %v2093, %v2111
      %v2113 = vpop.f32.mrf.mxu0
      %v2114 = vadd.f32 %v2095, %v2113
      %2115 = vmatmul.bf16.gmra.mxu0 %v1034
      %v2116 = vpop.f32.mrf.mxu0
      %v2117 = vadd.f32 %v2098, %v2116
      %v2118 = vpop.f32.mrf.mxu0
      %v2119 = vadd.f32 %v2100, %v2118
      %2120 = vdwg.mxu0
      %2121 = vmatpush.bf16.msra.mxu0 %v1707
      %2122 = vmatpush.bf16.msra.mxu0 %v1706
      %2123 = vmatpush.bf16.msra.mxu0 %v1705
      %2124 = vmatpush.bf16.msra.mxu0 %v1704
      %2125 = vmatpush.bf16.msra.mxu0 %v1703
      %2126 = vmatpush.bf16.msra.mxu0 %v1702
      %2127 = vmatpush.bf16.msra.mxu0 %v1701
      %2128 = vmatpush.bf16.msra.mxu0 %v1700
      %2129 = vmatmul.bf16.gmra.mxu0 %v1019
      %v2130 = vpop.f32.mrf.mxu0
      %v2131 = vadd.f32 %v2112, %v2130
      %v2132 = vpop.f32.mrf.mxu0
      %v2133 = vadd.f32 %v2114, %v2132
      %2134 = vmatmul.bf16.gmra.mxu0 %v1035
      %v2135 = vpop.f32.mrf.mxu0
      %v2136 = vadd.f32 %v2117, %v2135
      %v2137 = vpop.f32.mrf.mxu0
      %v2138 = vadd.f32 %v2119, %v2137
      %2139 = vdwg.mxu0
      %v2140 = vld [vmem:[%s4] sm:$0xff]
      %v2141 = vld [vmem:[%s4 + $0x8] sm:$0xff]
      %v2142 = vld [vmem:[%s4 + $0x10] sm:$0xff]
      %v2143 = vld [vmem:[%s4 + $0x18] sm:$0xff]
      %v2144 = vld [vmem:[%s4 + $0x20] sm:$0xff]
      %v2145 = vld [vmem:[%s4 + $0x28] sm:$0xff]
      %v2146 = vld [vmem:[%s4 + $0x30] sm:$0xff]
      %v2147 = vld [vmem:[%s4 + $0x38] sm:$0xff]
      %v2148 = vld [vmem:[%s4 + $0x40] sm:$0xff]
      %v2149 = vld [vmem:[%s4 + $0x48] sm:$0xff]
      %v2150 = vld [vmem:[%s4 + $0x50] sm:$0xff]
      %v2151 = vld [vmem:[%s4 + $0x58] sm:$0xff]
      %v2152 = vld [vmem:[%s4 + $0x60] sm:$0xff]
      %v2153 = vld [vmem:[%s4 + $0x68] sm:$0xff]
      %v2154 = vld [vmem:[%s4 + $0x70] sm:$0xff]
      %v2155 = vld [vmem:[%s4 + $0x78] sm:$0xff]
      %v2156 = vld [vmem:[%s4 + $0x80] sm:$0xff]
      %v2157 = vld [vmem:[%s4 + $0x88] sm:$0xff]
      %v2158 = vld [vmem:[%s4 + $0x90] sm:$0xff]
      %v2159 = vld [vmem:[%s4 + $0x98] sm:$0xff]
      %v2160 = vld [vmem:[%s4 + $0xa0] sm:$0xff]
      %v2161 = vld [vmem:[%s4 + $0xa8] sm:$0xff]
      %v2162 = vld [vmem:[%s4 + $0xb0] sm:$0xff]
      %v2163 = vld [vmem:[%s4 + $0xb8] sm:$0xff]
      %v2164 = vld [vmem:[%s4 + $0xc0] sm:$0xff]
      %v2165 = vld [vmem:[%s4 + $0xc8] sm:$0xff]
      %v2166 = vld [vmem:[%s4 + $0xd0] sm:$0xff]
      %v2167 = vld [vmem:[%s4 + $0xd8] sm:$0xff]
      %v2168 = vld [vmem:[%s4 + $0xe0] sm:$0xff]
      %v2169 = vld [vmem:[%s4 + $0xe8] sm:$0xff]
      %v2170 = vld [vmem:[%s4 + $0xf0] sm:$0xff]
      %v2171 = vld [vmem:[%s4 + $0xf8] sm:$0xff]
      %v2172 = vld [vmem:[%s4 + $0x100] sm:$0xff]
      %v2173 = vld [vmem:[%s4 + $0x108] sm:$0xff]
      %v2174 = vld [vmem:[%s4 + $0x110] sm:$0xff]
      %v2175 = vld [vmem:[%s4 + $0x118] sm:$0xff]
      %v2176 = vld [vmem:[%s5] sm:$0xff]
      %v2177 = vld [vmem:[%s5 + $0x8] sm:$0xff]
      %v2178 = vld [vmem:[%s5 + $0x10] sm:$0xff]
      %v2179 = vld [vmem:[%s5 + $0x18] sm:$0xff]
      %v2180 = vld [vmem:[%s5 + $0x20] sm:$0xff]
      %v2181 = vld [vmem:[%s5 + $0x28] sm:$0xff]
      %v2182 = vld [vmem:[%s5 + $0x30] sm:$0xff]
      %v2183 = vld [vmem:[%s5 + $0x38] sm:$0xff]
      %v2184 = vld [vmem:[%s5 + $0x40] sm:$0xff]
      %v2185 = vld [vmem:[%s5 + $0x48] sm:$0xff]
      %v2186 = vld [vmem:[%s5 + $0x50] sm:$0xff]
      %v2187 = vld [vmem:[%s5 + $0x58] sm:$0xff]
      %v2188 = vld [vmem:[%s6] sm:$0xff]
      %v2189 = vld [vmem:[%s6 + $0x8] sm:$0xff]
      %v2190 = vld [vmem:[%s6 + $0x10] sm:$0xff]
      %v2191 = vld [vmem:[%s6 + $0x18] sm:$0xff]
      %v2192 = vld [vmem:[%s6 + $0x20] sm:$0xff]
      %v2193 = vld [vmem:[%s6 + $0x28] sm:$0xff]
      %v2194 = vld [vmem:[%s6 + $0x30] sm:$0xff]
      %v2195 = vld [vmem:[%s6 + $0x38] sm:$0xff]
      %v2196 = vld [vmem:[%s6 + $0x40] sm:$0xff]
      %v2197 = vld [vmem:[%s6 + $0x48] sm:$0xff]
      %v2198 = vld [vmem:[%s6 + $0x50] sm:$0xff]
      %v2199 = vld [vmem:[%s6 + $0x58] sm:$0xff]
      %v2200 = vld [vmem:[%s7] sm:$0xff]
      %v2201 = vld [vmem:[%s7 + $0x8] sm:$0xff]
      %v2202 = vld [vmem:[%s7 + $0x10] sm:$0xff]
      %v2203 = vld [vmem:[%s7 + $0x18] sm:$0xff]
      %v2204 = vld [vmem:[%s7 + $0x20] sm:$0xff]
      %v2205 = vld [vmem:[%s7 + $0x28] sm:$0xff]
      %v2206 = vld [vmem:[%s7 + $0x30] sm:$0xff]
      %v2207 = vld [vmem:[%s7 + $0x38] sm:$0xff]
      %v2208 = vld [vmem:[%s7 + $0x40] sm:$0xff]
      %v2209 = vld [vmem:[%s7 + $0x48] sm:$0xff]
      %v2210 = vld [vmem:[%s7 + $0x50] sm:$0xff]
      %v2211 = vld [vmem:[%s7 + $0x58] sm:$0xff]
      %v2212 = vld [vmem:[%s8] sm:$0xf]
      %v2213 = vld [vmem:[%s9] sm:$0xf]
      %2218 = vrot.lane.b32.xlu0 %v2131, 4
      %v2219 = vpop.permute.xlu0 %2218
      %2220 = vrot.lane.b32.xlu0 %v2133, 4
      %v2221 = vpop.permute.xlu0 %2220
      %2222 = vrot.lane.b32.xlu0 %v2136, 4
      %v2223 = vpop.permute.xlu0 %2222
      %2224 = vrot.lane.b32.xlu0 %v2138, 4
      %v2225 = vpop.permute.xlu0 %2224
      %vm2230 = vcmask 162848
      %2231 = vst.msk [vmem:[#allocation2] sm:$0xff] %vm2230, %v2219
      %2232 = vst.msk [vmem:[#allocation2 + $0x8] sm:$0xff] %vm2230, %v2221
      %2233 = vst.msk [vmem:[#allocation2 + $0x10] sm:$0xff] %vm2230, %v2223
      %2234 = vst.msk [vmem:[#allocation2 + $0x18] sm:$0xff] %vm2230, %v2225
      %v2235 = vld [vmem:[#allocation2] sm:$0xff]
      %v2236 = vld [vmem:[#allocation2 + $0x8] sm:$0xff]
      %v2237 = vld [vmem:[#allocation2 + $0x10] sm:$0xff]
      %v2238 = vld [vmem:[#allocation2 + $0x18] sm:$0xff]
      %vm2239 = vcmask 261120
      %v2241 = vsel %vm2239, %v2144, 0
      %v2244 = vsel %vm2239, %v2145, 0
      %v2247 = vsel %vm2239, %v2146, 0
      %v2250 = vsel %vm2239, %v2147, 0
      %2252 = vmatpush.msra.mxu0 0.0
      %2253 = vmatpush.msra.mxu0 0.0
      %2254 = vmatpush.msra.mxu0 0.0
      %2255 = vmatpush.msra.mxu0 0.0
      %2256 = vmatpush.msra.mxu0 0.0
      %2257 = vmatpush.msra.mxu0 0.0
      %2258 = vmatpush.msra.mxu0 0.0
      %2259 = vmatpush.msra.mxu0 0.0
      %2260 = vmatpush.msra.mxu0 0.0
      %2261 = vmatpush.msra.mxu0 0.0
      %2262 = vmatpush.msra.mxu0 0.0
      %2263 = vmatpush.msra.mxu0 0.0
      %2264 = vmatpush.msra.mxu0 %v2138
      %2265 = vmatpush.msra.mxu0 %v2136
      %2266 = vmatpush.msra.mxu0 %v2133
      %2267 = vmatpush.msra.mxu0 %v2131
      %2268 = vmatmul.f32.gmra.mxu0 %v2241
      %v2269 = vpop.f32.mrf.mxu0
      %v2270 = vadd.f32 0.0, %v2269
      %2271 = vmatmul.f32.gmra.mxu0 %v2244
      %v2272 = vpop.f32.mrf.mxu0
      %v2273 = vadd.f32 0.0, %v2272
      %2274 = vmatmul.f32.gmra.mxu0 %v2247
      %v2275 = vpop.f32.mrf.mxu0
      %v2276 = vadd.f32 0.0, %v2275
      %2277 = vmatmul.f32.gmra.mxu0 %v2250
      %v2278 = vpop.f32.mrf.mxu0
      %v2279 = vadd.f32 0.0, %v2278
      %2280 = vdwg.mxu0
      %2285 = vrot.lane.b32.xlu0 %v2235, 125
      %v2286 = vpop.permute.xlu0 %2285
      %2287 = vrot.lane.b32.xlu0 %v2236, 125
      %v2288 = vpop.permute.xlu0 %2287
      %2289 = vrot.lane.b32.xlu0 %v2237, 125
      %v2290 = vpop.permute.xlu0 %2289
      %2291 = vrot.lane.b32.xlu0 %v2238, 125
      %v2292 = vpop.permute.xlu0 %2291
      %v2298 = vsel %vm2239, %v2140, 0
      %v2301 = vsel %vm2239, %v2141, 0
      %v2304 = vsel %vm2239, %v2142, 0
      %v2307 = vsel %vm2239, %v2143, 0
      %2309 = vmatpush.msra.mxu0 0.0
      %2310 = vmatpush.msra.mxu0 0.0
      %2311 = vmatpush.msra.mxu0 0.0
      %2312 = vmatpush.msra.mxu0 0.0
      %2313 = vmatpush.msra.mxu0 0.0
      %2314 = vmatpush.msra.mxu0 0.0
      %2315 = vmatpush.msra.mxu0 0.0
      %2316 = vmatpush.msra.mxu0 0.0
      %2317 = vmatpush.msra.mxu0 0.0
      %2318 = vmatpush.msra.mxu0 0.0
      %2319 = vmatpush.msra.mxu0 0.0
      %2320 = vmatpush.msra.mxu0 0.0
      %2321 = vmatpush.msra.mxu0 %v2292
      %2322 = vmatpush.msra.mxu0 %v2290
      %2323 = vmatpush.msra.mxu0 %v2288
      %2324 = vmatpush.msra.mxu0 %v2286
      %2325 = vmatmul.f32.gmra.mxu0 %v2298
      %v2326 = vpop.f32.mrf.mxu0
      %v2327 = vadd.f32 %v2270, %v2326
      %2328 = vmatmul.f32.gmra.mxu0 %v2301
      %v2329 = vpop.f32.mrf.mxu0
      %v2330 = vadd.f32 %v2273, %v2329
      %2331 = vmatmul.f32.gmra.mxu0 %v2304
      %v2332 = vpop.f32.mrf.mxu0
      %v2333 = vadd.f32 %v2276, %v2332
      %2334 = vmatmul.f32.gmra.mxu0 %v2307
      %v2335 = vpop.f32.mrf.mxu0
      %v2336 = vadd.f32 %v2279, %v2335
      %2337 = vdwg.mxu0
      %2338 = vrot.lane.b32.xlu0 %v2235, 123
      %v2339 = vpop.permute.xlu0 %2338
      %2340 = vrot.lane.b32.xlu0 %v2236, 123
      %v2341 = vpop.permute.xlu0 %2340
      %2342 = vrot.lane.b32.xlu0 %v2237, 123
      %v2343 = vpop.permute.xlu0 %2342
      %2344 = vrot.lane.b32.xlu0 %v2238, 123
      %v2345 = vpop.permute.xlu0 %2344
      %v2351 = vsel %vm2239, %v2148, 0
      %v2354 = vsel %vm2239, %v2149, 0
      %v2357 = vsel %vm2239, %v2150, 0
      %v2360 = vsel %vm2239, %v2151, 0
      %2362 = vmatpush.msra.mxu0 0.0
      %2363 = vmatpush.msra.mxu0 0.0
      %2364 = vmatpush.msra.mxu0 0.0
      %2365 = vmatpush.msra.mxu0 0.0
      %2366 = vmatpush.msra.mxu0 0.0
      %2367 = vmatpush.msra.mxu0 0.0
      %2368 = vmatpush.msra.mxu0 0.0
      %2369 = vmatpush.msra.mxu0 0.0
      %2370 = vmatpush.msra.mxu0 0.0
      %2371 = vmatpush.msra.mxu0 0.0
      %2372 = vmatpush.msra.mxu0 0.0
      %2373 = vmatpush.msra.mxu0 0.0
      %2374 = vmatpush.msra.mxu0 %v2345
      %2375 = vmatpush.msra.mxu0 %v2343
      %2376 = vmatpush.msra.mxu0 %v2341
      %2377 = vmatpush.msra.mxu0 %v2339
      %2378 = vmatmul.f32.gmra.mxu0 %v2351
      %v2379 = vpop.f32.mrf.mxu0
      %v2380 = vadd.f32 0.0, %v2379
      %2381 = vmatmul.f32.gmra.mxu0 %v2354
      %v2382 = vpop.f32.mrf.mxu0
      %v2383 = vadd.f32 0.0, %v2382
      %2384 = vmatmul.f32.gmra.mxu0 %v2357
      %v2385 = vpop.f32.mrf.mxu0
      %v2386 = vadd.f32 0.0, %v2385
      %2387 = vmatmul.f32.gmra.mxu0 %v2360
      %v2388 = vpop.f32.mrf.mxu0
      %v2389 = vadd.f32 0.0, %v2388
      %2390 = vdwg.mxu0
      %v2391 = vadd.f32 %v2327, %v2380
      %v2392 = vadd.f32 %v2330, %v2383
      %v2393 = vadd.f32 %v2333, %v2386
      %v2394 = vadd.f32 %v2336, %v2389
      %2396 = vset.pattern.permute.xlu0 0
      %2397 = vperm.xlu0 %2396, %v2176
      %v2398 = vpop.permute.xlu0 %2397
      %2401 = vset.pattern.permute.xlu0 0
      %2402 = vperm.xlu0 %2401, %v2177
      %v2403 = vpop.permute.xlu0 %2402
      %2406 = vset.pattern.permute.xlu0 0
      %2407 = vperm.xlu0 %2406, %v2178
      %v2408 = vpop.permute.xlu0 %2407
      %2411 = vset.pattern.permute.xlu0 0
      %2412 = vperm.xlu0 %2411, %v2179
      %v2413 = vpop.permute.xlu0 %2412
      %v2415 = vadd.f32 %v2391, %v2398
      %v2416 = vadd.f32 %v2392, %v2403
      %v2417 = vadd.f32 %v2393, %v2408
      %v2418 = vadd.f32 %v2394, %v2413
      %v2419 = vmax.f32 %v2415, 0.0
      %v2420 = vmax.f32 %v2416, 0.0
      %v2421 = vmax.f32 %v2417, 0.0
      %v2422 = vmax.f32 %v2418, 0.0
      %2424 = vset.pattern.permute.xlu0 0
      %2425 = vperm.xlu0 %2424, %v2200
      %v2426 = vpop.permute.xlu0 %2425
      %2429 = vset.pattern.permute.xlu0 0
      %2430 = vperm.xlu0 %2429, %v2201
      %v2431 = vpop.permute.xlu0 %2430
      %2434 = vset.pattern.permute.xlu0 0
      %2435 = vperm.xlu0 %2434, %v2202
      %v2436 = vpop.permute.xlu0 %2435
      %2439 = vset.pattern.permute.xlu0 0
      %2440 = vperm.xlu0 %2439, %v2203
      %v2441 = vpop.permute.xlu0 %2440
      %v2444 = vsel %vm2239, %v2188, 0
      %v2447 = vsel %vm2239, %v2189, 0
      %v2450 = vsel %vm2239, %v2190, 0
      %v2453 = vsel %vm2239, %v2191, 0
      %2455 = vmatpush.msra.mxu0 0.0
      %2456 = vmatpush.msra.mxu0 0.0
      %2457 = vmatpush.msra.mxu0 0.0
      %2458 = vmatpush.msra.mxu0 0.0
      %2459 = vmatpush.msra.mxu0 0.0
      %2460 = vmatpush.msra.mxu0 0.0
      %2461 = vmatpush.msra.mxu0 0.0
      %2462 = vmatpush.msra.mxu0 0.0
      %2463 = vmatpush.msra.mxu0 0.0
      %2464 = vmatpush.msra.mxu0 0.0
      %2465 = vmatpush.msra.mxu0 0.0
      %2466 = vmatpush.msra.mxu0 0.0
      %2467 = vmatpush.msra.mxu0 %v2422
      %2468 = vmatpush.msra.mxu0 %v2421
      %2469 = vmatpush.msra.mxu0 %v2420
      %2470 = vmatpush.msra.mxu0 %v2419
      %2471 = vmatmul.f32.gmra.mxu0 %v2444
      %v2472 = vpop.f32.mrf.mxu0
      %v2473 = vadd.f32 %v2426, %v2472
      %2474 = vmatmul.f32.gmra.mxu0 %v2447
      %v2475 = vpop.f32.mrf.mxu0
      %v2476 = vadd.f32 %v2431, %v2475
      %2477 = vmatmul.f32.gmra.mxu0 %v2450
      %v2478 = vpop.f32.mrf.mxu0
      %v2479 = vadd.f32 %v2436, %v2478
      %2480 = vmatmul.f32.gmra.mxu0 %v2453
      %v2481 = vpop.f32.mrf.mxu0
      %v2482 = vadd.f32 %v2441, %v2481
      %2483 = vdwg.mxu0
      %v2484 = vadd.f32 %v2131, %v2473
      %v2485 = vadd.f32 %v2133, %v2476
      %v2486 = vadd.f32 %v2136, %v2479
      %v2487 = vadd.f32 %v2138, %v2482
      %v2489 = vperm.slane %v590, 0
      %v2491 = vmul.f32 %v2484, %v2489
      %v2492 = vmul.f32 %v2485, %v2489
      %v2493 = vmul.f32 %v2486, %v2489
      %v2494 = vmul.f32 %v2487, %v2489
      %2499 = vrot.lane.b32.xlu0 %v2491, 4
      %v2500 = vpop.permute.xlu0 %2499
      %2501 = vrot.lane.b32.xlu0 %v2492, 4
      %v2502 = vpop.permute.xlu0 %2501
      %2503 = vrot.lane.b32.xlu0 %v2493, 4
      %v2504 = vpop.permute.xlu0 %2503
      %2505 = vrot.lane.b32.xlu0 %v2494, 4
      %v2506 = vpop.permute.xlu0 %2505
      %2511 = vst.msk [vmem:[#allocation2] sm:$0xff] %vm2230, %v2500
      %2512 = vst.msk [vmem:[#allocation2 + $0x8] sm:$0xff] %vm2230, %v2502
      %2513 = vst.msk [vmem:[#allocation2 + $0x10] sm:$0xff] %vm2230, %v2504
      %2514 = vst.msk [vmem:[#allocation2 + $0x18] sm:$0xff] %vm2230, %v2506
      %v2515 = vld [vmem:[#allocation2] sm:$0xff]
      %v2516 = vld [vmem:[#allocation2 + $0x8] sm:$0xff]
      %v2517 = vld [vmem:[#allocation2 + $0x10] sm:$0xff]
      %v2518 = vld [vmem:[#allocation2 + $0x18] sm:$0xff]
      %v2520 = vsel %vm2239, %v2156, 0
      %v2523 = vsel %vm2239, %v2157, 0
      %v2526 = vsel %vm2239, %v2158, 0
      %v2529 = vsel %vm2239, %v2159, 0
      %2531 = vmatpush.msra.mxu0 0.0
      %2532 = vmatpush.msra.mxu0 0.0
      %2533 = vmatpush.msra.mxu0 0.0
      %2534 = vmatpush.msra.mxu0 0.0
      %2535 = vmatpush.msra.mxu0 0.0
      %2536 = vmatpush.msra.mxu0 0.0
      %2537 = vmatpush.msra.mxu0 0.0
      %2538 = vmatpush.msra.mxu0 0.0
      %2539 = vmatpush.msra.mxu0 0.0
      %2540 = vmatpush.msra.mxu0 0.0
      %2541 = vmatpush.msra.mxu0 0.0
      %2542 = vmatpush.msra.mxu0 0.0
      %2543 = vmatpush.msra.mxu0 %v2494
      %2544 = vmatpush.msra.mxu0 %v2493
      %2545 = vmatpush.msra.mxu0 %v2492
      %2546 = vmatpush.msra.mxu0 %v2491
      %2547 = vmatmul.f32.gmra.mxu0 %v2520
      %v2548 = vpop.f32.mrf.mxu0
      %v2549 = vadd.f32 0.0, %v2548
      %2550 = vmatmul.f32.gmra.mxu0 %v2523
      %v2551 = vpop.f32.mrf.mxu0
      %v2552 = vadd.f32 0.0, %v2551
      %2553 = vmatmul.f32.gmra.mxu0 %v2526
      %v2554 = vpop.f32.mrf.mxu0
      %v2555 = vadd.f32 0.0, %v2554
      %2556 = vmatmul.f32.gmra.mxu0 %v2529
      %v2557 = vpop.f32.mrf.mxu0
      %v2558 = vadd.f32 0.0, %v2557
      %2559 = vdwg.mxu0
      %2564 = vrot.lane.b32.xlu0 %v2515, 126
      %v2565 = vpop.permute.xlu0 %2564
      %2566 = vrot.lane.b32.xlu0 %v2516, 126
      %v2567 = vpop.permute.xlu0 %2566
      %2568 = vrot.lane.b32.xlu0 %v2517, 126
      %v2569 = vpop.permute.xlu0 %2568
      %2570 = vrot.lane.b32.xlu0 %v2518, 126
      %v2571 = vpop.permute.xlu0 %2570
      %v2577 = vsel %vm2239, %v2152, 0
      %v2580 = vsel %vm2239, %v2153, 0
      %v2583 = vsel %vm2239, %v2154, 0
      %v2586 = vsel %vm2239, %v2155, 0
      %2588 = vmatpush.msra.mxu0 0.0
      %2589 = vmatpush.msra.mxu0 0.0
      %2590 = vmatpush.msra.mxu0 0.0
      %2591 = vmatpush.msra.mxu0 0.0
      %2592 = vmatpush.msra.mxu0 0.0
      %2593 = vmatpush.msra.mxu0 0.0
      %2594 = vmatpush.msra.mxu0 0.0
      %2595 = vmatpush.msra.mxu0 0.0
      %2596 = vmatpush.msra.mxu0 0.0
      %2597 = vmatpush.msra.mxu0 0.0
      %2598 = vmatpush.msra.mxu0 0.0
      %2599 = vmatpush.msra.mxu0 0.0
      %2600 = vmatpush.msra.mxu0 %v2571
      %2601 = vmatpush.msra.mxu0 %v2569
      %2602 = vmatpush.msra.mxu0 %v2567
      %2603 = vmatpush.msra.mxu0 %v2565
      %2604 = vmatmul.f32.gmra.mxu0 %v2577
      %v2605 = vpop.f32.mrf.mxu0
      %v2606 = vadd.f32 %v2549, %v2605
      %2607 = vmatmul.f32.gmra.mxu0 %v2580
      %v2608 = vpop.f32.mrf.mxu0
      %v2609 = vadd.f32 %v2552, %v2608
      %2610 = vmatmul.f32.gmra.mxu0 %v2583
      %v2611 = vpop.f32.mrf.mxu0
      %v2612 = vadd.f32 %v2555, %v2611
      %2613 = vmatmul.f32.gmra.mxu0 %v2586
      %v2614 = vpop.f32.mrf.mxu0
      %v2615 = vadd.f32 %v2558, %v2614
      %2616 = vdwg.mxu0
      %2617 = vrot.lane.b32.xlu0 %v2515, 122
      %v2618 = vpop.permute.xlu0 %2617
      %2619 = vrot.lane.b32.xlu0 %v2516, 122
      %v2620 = vpop.permute.xlu0 %2619
      %2621 = vrot.lane.b32.xlu0 %v2517, 122
      %v2622 = vpop.permute.xlu0 %2621
      %2623 = vrot.lane.b32.xlu0 %v2518, 122
      %v2624 = vpop.permute.xlu0 %2623
      %v2630 = vsel %vm2239, %v2160, 0
      %v2633 = vsel %vm2239, %v2161, 0
      %v2636 = vsel %vm2239, %v2162, 0
      %v2639 = vsel %vm2239, %v2163, 0
      %2641 = vmatpush.msra.mxu0 0.0
      %2642 = vmatpush.msra.mxu0 0.0
      %2643 = vmatpush.msra.mxu0 0.0
      %2644 = vmatpush.msra.mxu0 0.0
      %2645 = vmatpush.msra.mxu0 0.0
      %2646 = vmatpush.msra.mxu0 0.0
      %2647 = vmatpush.msra.mxu0 0.0
      %2648 = vmatpush.msra.mxu0 0.0
      %2649 = vmatpush.msra.mxu0 0.0
      %2650 = vmatpush.msra.mxu0 0.0
      %2651 = vmatpush.msra.mxu0 0.0
      %2652 = vmatpush.msra.mxu0 0.0
      %2653 = vmatpush.msra.mxu0 %v2624
      %2654 = vmatpush.msra.mxu0 %v2622
      %2655 = vmatpush.msra.mxu0 %v2620
      %2656 = vmatpush.msra.mxu0 %v2618
      %2657 = vmatmul.f32.gmra.mxu0 %v2630
      %v2658 = vpop.f32.mrf.mxu0
      %v2659 = vadd.f32 0.0, %v2658
      %2660 = vmatmul.f32.gmra.mxu0 %v2633
      %v2661 = vpop.f32.mrf.mxu0
      %v2662 = vadd.f32 0.0, %v2661
      %2663 = vmatmul.f32.gmra.mxu0 %v2636
      %v2664 = vpop.f32.mrf.mxu0
      %v2665 = vadd.f32 0.0, %v2664
      %2666 = vmatmul.f32.gmra.mxu0 %v2639
      %v2667 = vpop.f32.mrf.mxu0
      %v2668 = vadd.f32 0.0, %v2667
      %2669 = vdwg.mxu0
      %v2670 = vadd.f32 %v2606, %v2659
      %v2671 = vadd.f32 %v2609, %v2662
      %v2672 = vadd.f32 %v2612, %v2665
      %v2673 = vadd.f32 %v2615, %v2668
      %2675 = vset.pattern.permute.xlu0 0
      %2676 = vperm.xlu0 %2675, %v2180
      %v2677 = vpop.permute.xlu0 %2676
      %2680 = vset.pattern.permute.xlu0 0
      %2681 = vperm.xlu0 %2680, %v2181
      %v2682 = vpop.permute.xlu0 %2681
      %2685 = vset.pattern.permute.xlu0 0
      %2686 = vperm.xlu0 %2685, %v2182
      %v2687 = vpop.permute.xlu0 %2686
      %2690 = vset.pattern.permute.xlu0 0
      %2691 = vperm.xlu0 %2690, %v2183
      %v2692 = vpop.permute.xlu0 %2691
      %v2694 = vadd.f32 %v2670, %v2677
      %v2695 = vadd.f32 %v2671, %v2682
      %v2696 = vadd.f32 %v2672, %v2687
      %v2697 = vadd.f32 %v2673, %v2692
      %v2698 = vmax.f32 %v2694, 0.0
      %v2699 = vmax.f32 %v2695, 0.0
      %v2700 = vmax.f32 %v2696, 0.0
      %v2701 = vmax.f32 %v2697, 0.0
      %2703 = vset.pattern.permute.xlu0 0
      %2704 = vperm.xlu0 %2703, %v2204
      %v2705 = vpop.permute.xlu0 %2704
      %2708 = vset.pattern.permute.xlu0 0
      %2709 = vperm.xlu0 %2708, %v2205
      %v2710 = vpop.permute.xlu0 %2709
      %2713 = vset.pattern.permute.xlu0 0
      %2714 = vperm.xlu0 %2713, %v2206
      %v2715 = vpop.permute.xlu0 %2714
      %2718 = vset.pattern.permute.xlu0 0
      %2719 = vperm.xlu0 %2718, %v2207
      %v2720 = vpop.permute.xlu0 %2719
      %v2723 = vsel %vm2239, %v2192, 0
      %v2726 = vsel %vm2239, %v2193, 0
      %v2729 = vsel %vm2239, %v2194, 0
      %v2732 = vsel %vm2239, %v2195, 0
      %2734 = vmatpush.msra.mxu0 0.0
      %2735 = vmatpush.msra.mxu0 0.0
      %2736 = vmatpush.msra.mxu0 0.0
      %2737 = vmatpush.msra.mxu0 0.0
      %2738 = vmatpush.msra.mxu0 0.0
      %2739 = vmatpush.msra.mxu0 0.0
      %2740 = vmatpush.msra.mxu0 0.0
      %2741 = vmatpush.msra.mxu0 0.0
      %2742 = vmatpush.msra.mxu0 0.0
      %2743 = vmatpush.msra.mxu0 0.0
      %2744 = vmatpush.msra.mxu0 0.0
      %2745 = vmatpush.msra.mxu0 0.0
      %2746 = vmatpush.msra.mxu0 %v2701
      %2747 = vmatpush.msra.mxu0 %v2700
      %2748 = vmatpush.msra.mxu0 %v2699
      %2749 = vmatpush.msra.mxu0 %v2698
      %2750 = vmatmul.f32.gmra.mxu0 %v2723
      %v2751 = vpop.f32.mrf.mxu0
      %v2752 = vadd.f32 %v2705, %v2751
      %2753 = vmatmul.f32.gmra.mxu0 %v2726
      %v2754 = vpop.f32.mrf.mxu0
      %v2755 = vadd.f32 %v2710, %v2754
      %2756 = vmatmul.f32.gmra.mxu0 %v2729
      %v2757 = vpop.f32.mrf.mxu0
      %v2758 = vadd.f32 %v2715, %v2757
      %2759 = vmatmul.f32.gmra.mxu0 %v2732
      %v2760 = vpop.f32.mrf.mxu0
      %v2761 = vadd.f32 %v2720, %v2760
      %2762 = vdwg.mxu0
      %v2763 = vadd.f32 %v2491, %v2752
      %v2764 = vadd.f32 %v2492, %v2755
      %v2765 = vadd.f32 %v2493, %v2758
      %v2766 = vadd.f32 %v2494, %v2761
      %v2767 = vmul.f32 %v2763, %v2489
      %v2768 = vmul.f32 %v2764, %v2489
      %v2769 = vmul.f32 %v2765, %v2489
      %v2770 = vmul.f32 %v2766, %v2489
      %2775 = vrot.lane.b32.xlu0 %v2767, 4
      %v2776 = vpop.permute.xlu0 %2775
      %2777 = vrot.lane.b32.xlu0 %v2768, 4
      %v2778 = vpop.permute.xlu0 %2777
      %2779 = vrot.lane.b32.xlu0 %v2769, 4
      %v2780 = vpop.permute.xlu0 %2779
      %2781 = vrot.lane.b32.xlu0 %v2770, 4
      %v2782 = vpop.permute.xlu0 %2781
      %2787 = vst.msk [vmem:[#allocation2] sm:$0xff] %vm2230, %v2776
      %2788 = vst.msk [vmem:[#allocation2 + $0x8] sm:$0xff] %vm2230, %v2778
      %2789 = vst.msk [vmem:[#allocation2 + $0x10] sm:$0xff] %vm2230, %v2780
      %2790 = vst.msk [vmem:[#allocation2 + $0x18] sm:$0xff] %vm2230, %v2782
      %v2791 = vld [vmem:[#allocation2] sm:$0xff]
      %v2792 = vld [vmem:[#allocation2 + $0x8] sm:$0xff]
      %v2793 = vld [vmem:[#allocation2 + $0x10] sm:$0xff]
      %v2794 = vld [vmem:[#allocation2 + $0x18] sm:$0xff]
      %v2796 = vsel %vm2239, %v2168, 0
      %v2799 = vsel %vm2239, %v2169, 0
      %v2802 = vsel %vm2239, %v2170, 0
      %v2805 = vsel %vm2239, %v2171, 0
      %2807 = vmatpush.msra.mxu0 0.0
      %2808 = vmatpush.msra.mxu0 0.0
      %2809 = vmatpush.msra.mxu0 0.0
      %2810 = vmatpush.msra.mxu0 0.0
      %2811 = vmatpush.msra.mxu0 0.0
      %2812 = vmatpush.msra.mxu0 0.0
      %2813 = vmatpush.msra.mxu0 0.0
      %2814 = vmatpush.msra.mxu0 0.0
      %2815 = vmatpush.msra.mxu0 0.0
      %2816 = vmatpush.msra.mxu0 0.0
      %2817 = vmatpush.msra.mxu0 0.0
      %2818 = vmatpush.msra.mxu0 0.0
      %2819 = vmatpush.msra.mxu0 %v2770
      %2820 = vmatpush.msra.mxu0 %v2769
      %2821 = vmatpush.msra.mxu0 %v2768
      %2822 = vmatpush.msra.mxu0 %v2767
      %2823 = vmatmul.f32.gmra.mxu0 %v2796
      %v2824 = vpop.f32.mrf.mxu0
      %v2825 = vadd.f32 0.0, %v2824
      %2826 = vmatmul.f32.gmra.mxu0 %v2799
      %v2827 = vpop.f32.mrf.mxu0
      %v2828 = vadd.f32 0.0, %v2827
      %2829 = vmatmul.f32.gmra.mxu0 %v2802
      %v2830 = vpop.f32.mrf.mxu0
      %v2831 = vadd.f32 0.0, %v2830
      %2832 = vmatmul.f32.gmra.mxu0 %v2805
      %v2833 = vpop.f32.mrf.mxu0
      %v2834 = vadd.f32 0.0, %v2833
      %2835 = vdwg.mxu0
      %v2837 = vsel %vm2239, %v2164, 0
      %v2840 = vsel %vm2239, %v2165, 0
      %v2843 = vsel %vm2239, %v2166, 0
      %v2846 = vsel %vm2239, %v2167, 0
      %2848 = vmatpush.msra.mxu0 0.0
      %2849 = vmatpush.msra.mxu0 0.0
      %2850 = vmatpush.msra.mxu0 0.0
      %2851 = vmatpush.msra.mxu0 0.0
      %2852 = vmatpush.msra.mxu0 0.0
      %2853 = vmatpush.msra.mxu0 0.0
      %2854 = vmatpush.msra.mxu0 0.0
      %2855 = vmatpush.msra.mxu0 0.0
      %2856 = vmatpush.msra.mxu0 0.0
      %2857 = vmatpush.msra.mxu0 0.0
      %2858 = vmatpush.msra.mxu0 0.0
      %2859 = vmatpush.msra.mxu0 0.0
      %2860 = vmatpush.msra.mxu0 %v2794
      %2861 = vmatpush.msra.mxu0 %v2793
      %2862 = vmatpush.msra.mxu0 %v2792
      %2863 = vmatpush.msra.mxu0 %v2791
      %2864 = vmatmul.f32.gmra.mxu0 %v2837
      %v2865 = vpop.f32.mrf.mxu0
      %v2866 = vadd.f32 %v2825, %v2865
      %2867 = vmatmul.f32.gmra.mxu0 %v2840
      %v2868 = vpop.f32.mrf.mxu0
      %v2869 = vadd.f32 %v2828, %v2868
      %2870 = vmatmul.f32.gmra.mxu0 %v2843
      %v2871 = vpop.f32.mrf.mxu0
      %v2872 = vadd.f32 %v2831, %v2871
      %2873 = vmatmul.f32.gmra.mxu0 %v2846
      %v2874 = vpop.f32.mrf.mxu0
      %v2875 = vadd.f32 %v2834, %v2874
      %2876 = vdwg.mxu0
      %2881 = vrot.lane.b32.xlu0 %v2791, 120
      %v2882 = vpop.permute.xlu0 %2881
      %2883 = vrot.lane.b32.xlu0 %v2792, 120
      %v2884 = vpop.permute.xlu0 %2883
      %2885 = vrot.lane.b32.xlu0 %v2793, 120
      %v2886 = vpop.permute.xlu0 %2885
      %2887 = vrot.lane.b32.xlu0 %v2794, 120
      %v2888 = vpop.permute.xlu0 %2887
      %v2894 = vsel %vm2239, %v2172, 0
      %v2897 = vsel %vm2239, %v2173, 0
      %v2900 = vsel %vm2239, %v2174, 0
      %v2903 = vsel %vm2239, %v2175, 0
      %2905 = vmatpush.msra.mxu0 0.0
      %2906 = vmatpush.msra.mxu0 0.0
      %2907 = vmatpush.msra.mxu0 0.0
      %2908 = vmatpush.msra.mxu0 0.0
      %2909 = vmatpush.msra.mxu0 0.0
      %2910 = vmatpush.msra.mxu0 0.0
      %2911 = vmatpush.msra.mxu0 0.0
      %2912 = vmatpush.msra.mxu0 0.0
      %2913 = vmatpush.msra.mxu0 0.0
      %2914 = vmatpush.msra.mxu0 0.0
      %2915 = vmatpush.msra.mxu0 0.0
      %2916 = vmatpush.msra.mxu0 0.0
      %2917 = vmatpush.msra.mxu0 %v2888
      %2918 = vmatpush.msra.mxu0 %v2886
      %2919 = vmatpush.msra.mxu0 %v2884
      %2920 = vmatpush.msra.mxu0 %v2882
      %2921 = vmatmul.f32.gmra.mxu0 %v2894
      %v2922 = vpop.f32.mrf.mxu0
      %v2923 = vadd.f32 0.0, %v2922
      %2924 = vmatmul.f32.gmra.mxu0 %v2897
      %v2925 = vpop.f32.mrf.mxu0
      %v2926 = vadd.f32 0.0, %v2925
      %2927 = vmatmul.f32.gmra.mxu0 %v2900
      %v2928 = vpop.f32.mrf.mxu0
      %v2929 = vadd.f32 0.0, %v2928
      %2930 = vmatmul.f32.gmra.mxu0 %v2903
      %v2931 = vpop.f32.mrf.mxu0
      %v2932 = vadd.f32 0.0, %v2931
      %2933 = vdwg.mxu0
      %v2934 = vadd.f32 %v2866, %v2923
      %v2935 = vadd.f32 %v2869, %v2926
      %v2936 = vadd.f32 %v2872, %v2929
      %v2937 = vadd.f32 %v2875, %v2932
      %2939 = vset.pattern.permute.xlu0 0
      %2940 = vperm.xlu0 %2939, %v2184
      %v2941 = vpop.permute.xlu0 %2940
      %2944 = vset.pattern.permute.xlu0 0
      %2945 = vperm.xlu0 %2944, %v2185
      %v2946 = vpop.permute.xlu0 %2945
      %2949 = vset.pattern.permute.xlu0 0
      %2950 = vperm.xlu0 %2949, %v2186
      %v2951 = vpop.permute.xlu0 %2950
      %2954 = vset.pattern.permute.xlu0 0
      %2955 = vperm.xlu0 %2954, %v2187
      %v2956 = vpop.permute.xlu0 %2955
      %v2958 = vadd.f32 %v2934, %v2941
      %v2959 = vadd.f32 %v2935, %v2946
      %v2960 = vadd.f32 %v2936, %v2951
      %v2961 = vadd.f32 %v2937, %v2956
      %v2962 = vmax.f32 %v2958, 0.0
      %v2963 = vmax.f32 %v2959, 0.0
      %v2964 = vmax.f32 %v2960, 0.0
      %v2965 = vmax.f32 %v2961, 0.0
      %2967 = vset.pattern.permute.xlu0 0
      %2968 = vperm.xlu0 %2967, %v2208
      %v2969 = vpop.permute.xlu0 %2968
      %2972 = vset.pattern.permute.xlu0 0
      %2973 = vperm.xlu0 %2972, %v2209
      %v2974 = vpop.permute.xlu0 %2973
      %2977 = vset.pattern.permute.xlu0 0
      %2978 = vperm.xlu0 %2977, %v2210
      %v2979 = vpop.permute.xlu0 %2978
      %2982 = vset.pattern.permute.xlu0 0
      %2983 = vperm.xlu0 %2982, %v2211
      %v2984 = vpop.permute.xlu0 %2983
      %v2987 = vsel %vm2239, %v2196, 0
      %v2990 = vsel %vm2239, %v2197, 0
      %v2993 = vsel %vm2239, %v2198, 0
      %v2996 = vsel %vm2239, %v2199, 0
      %2998 = vmatpush.msra.mxu0 0.0
      %2999 = vmatpush.msra.mxu0 0.0
      %3000 = vmatpush.msra.mxu0 0.0
      %3001 = vmatpush.msra.mxu0 0.0
      %3002 = vmatpush.msra.mxu0 0.0
      %3003 = vmatpush.msra.mxu0 0.0
      %3004 = vmatpush.msra.mxu0 0.0
      %3005 = vmatpush.msra.mxu0 0.0
      %3006 = vmatpush.msra.mxu0 0.0
      %3007 = vmatpush.msra.mxu0 0.0
      %3008 = vmatpush.msra.mxu0 0.0
      %3009 = vmatpush.msra.mxu0 0.0
      %3010 = vmatpush.msra.mxu0 %v2965
      %3011 = vmatpush.msra.mxu0 %v2964
      %3012 = vmatpush.msra.mxu0 %v2963
      %3013 = vmatpush.msra.mxu0 %v2962
      %3014 = vmatmul.f32.gmra.mxu0 %v2987
      %v3015 = vpop.f32.mrf.mxu0
      %v3016 = vadd.f32 %v2969, %v3015
      %3017 = vmatmul.f32.gmra.mxu0 %v2990
      %v3018 = vpop.f32.mrf.mxu0
      %v3019 = vadd.f32 %v2974, %v3018
      %3020 = vmatmul.f32.gmra.mxu0 %v2993
      %v3021 = vpop.f32.mrf.mxu0
      %v3022 = vadd.f32 %v2979, %v3021
      %3023 = vmatmul.f32.gmra.mxu0 %v2996
      %v3024 = vpop.f32.mrf.mxu0
      %v3025 = vadd.f32 %v2984, %v3024
      %3026 = vdwg.mxu0
      %v3027 = vadd.f32 %v2767, %v3016
      %v3028 = vadd.f32 %v2768, %v3019
      %v3029 = vadd.f32 %v2769, %v3022
      %v3030 = vadd.f32 %v2770, %v3025
      %v3031 = vmul.f32 %v3027, %v2489
      %v3032 = vmul.f32 %v3028, %v2489
      %v3033 = vmul.f32 %v3029, %v2489
      %v3034 = vmul.f32 %v3030, %v2489
      %3036 = vset.pattern.permute.xlu0 0
      %3037 = vperm.xlu0 %3036, %v2213
      %v3038 = vpop.permute.xlu0 %3037
      %v3041 = vsel %vm2239, %v2212, 0
      %3043 = vmatpush.msra.mxu0 0.0
      %3044 = vmatpush.msra.mxu0 0.0
      %3045 = vmatpush.msra.mxu0 0.0
      %3046 = vmatpush.msra.mxu0 0.0
      %3047 = vmatpush.msra.mxu0 0.0
      %3048 = vmatpush.msra.mxu0 0.0
      %3049 = vmatpush.msra.mxu0 0.0
      %3050 = vmatpush.msra.mxu0 0.0
      %3051 = vmatpush.msra.mxu0 0.0
      %3052 = vmatpush.msra.mxu0 0.0
      %3053 = vmatpush.msra.mxu0 0.0
      %3054 = vmatpush.msra.mxu0 0.0
      %3055 = vmatpush.msra.mxu0 %v3034
      %3056 = vmatpush.msra.mxu0 %v3033
      %3057 = vmatpush.msra.mxu0 %v3032
      %3058 = vmatpush.msra.mxu0 %v3031
      %3059 = vmatmul.f32.gmra.mxu0 %v3041
      %v3060 = vpop.f32.mrf.mxu0
      %v3061 = vadd.f32 %v3038, %v3060
      %3062 = vdwg.mxu0
      %v3063 = vmul.f32 %v3061, %v2489
      %vm3064 = vcmask 125952
      %3065 = vst.msk [vmem:[%s589] sm:$0xf] %vm3064, %v3063
      %v3066 = vsel %vm3064, %v3063, -inf
      %v3067 = vrot.slane %v3066, 4
      %v3068 = vmax.f32 %v3066, %v3067
      %v3069 = vrot.slane %v3068, 2
      %v3070 = vmax.f32 %v3068, %v3069
      %v3071 = vrot.slane %v3070, 1
      %v3072 = vmax.f32 %v3070, %v3071
      %v3073 = vsub.f32 %v3063, %v3072
      %v3074 = vmul.f32 %v3073, 1.442695
      %v3075 = vpow.pop %v3074
      %v3076 = vsel %vm3064, %v3075, 0.0
      %v3077 = vrot.slane %v3076, 4
      %v3078 = vadd.f32 %v3076, %v3077
      %v3079 = vrot.slane %v3078, 2
      %v3080 = vadd.f32 %v3078, %v3079
      %v3081 = vrot.slane %v3080, 1
      %v3082 = vadd.f32 %v3080, %v3081
      %v3083 = vrcp.pop %v3082
      %v3084 = vmul.f32 %v3075, %v3083
      %v3085 = vld [vmem:[%s10] sm:$0xff]
      %v3086 = vld [vmem:[%s10 + $0x8] sm:$0xff]
      %v3087 = vld [vmem:[%s10 + $0x10] sm:$0xff]
      %v3088 = vld [vmem:[%s10 + $0x18] sm:$0xff]
      %v3089 = vmul.f32 %v3084, %v2489
      %v3090 = vld [vmem:[%s11] sm:$0xff]
      %v3091 = vld [vmem:[%s11 + $0x8] sm:$0xff]
      %v3092 = vld [vmem:[%s11 + $0x10] sm:$0xff]
      %v3093 = vld [vmem:[%s11 + $0x18] sm:$0xff]
      %3095 = vset.pattern.permute.xlu0 0
      %3096 = vperm.xlu0 %3095, %v3090
      %v3097 = vpop.permute.xlu0 %3096
      %3100 = vset.pattern.permute.xlu0 0
      %3101 = vperm.xlu0 %3100, %v3091
      %v3102 = vpop.permute.xlu0 %3101
      %3105 = vset.pattern.permute.xlu0 0
      %3106 = vperm.xlu0 %3105, %v3092
      %v3107 = vpop.permute.xlu0 %3106
      %3110 = vset.pattern.permute.xlu0 0
      %3111 = vperm.xlu0 %3110, %v3093
      %v3112 = vpop.permute.xlu0 %3111
      %vm3114 = vcmask 31744
      %v3116 = vsel %vm3114, %v3085, 0
      %v3119 = vsel %vm3114, %v3086, 0
      %v3122 = vsel %vm3114, %v3087, 0
      %v3125 = vsel %vm3114, %v3088, 0
      %vm3127 = vcmask 1043456
      %v3129 = vsel %vm3127, %v3089, 0
      %3131 = vmatpush.msra.mxu0 0.0
      %3132 = vmatpush.msra.mxu0 0.0
      %3133 = vmatpush.msra.mxu0 0.0
      %3134 = vmatpush.msra.mxu0 0.0
      %3135 = vmatpush.msra.mxu0 0.0
      %3136 = vmatpush.msra.mxu0 0.0
      %3137 = vmatpush.msra.mxu0 0.0
      %3138 = vmatpush.msra.mxu0 0.0
      %3139 = vmatpush.msra.mxu0 0.0
      %3140 = vmatpush.msra.mxu0 0.0
      %3141 = vmatpush.msra.mxu0 0.0
      %3142 = vmatpush.msra.mxu0 0.0
      %3143 = vmatpush.msra.mxu0 0.0
      %3144 = vmatpush.msra.mxu0 0.0
      %3145 = vmatpush.msra.mxu0 0.0
      %3146 = vmatpush.msra.mxu0 %v3129
      %3147 = vmatmul.f32.gmra.mxu0 %v3116
      %v3148 = vpop.f32.mrf.mxu0
      %v3149 = vadd.f32 %v3097, %v3148
      %3150 = vmatmul.f32.gmra.mxu0 %v3119
      %v3151 = vpop.f32.mrf.mxu0
      %v3152 = vadd.f32 %v3102, %v3151
      %3153 = vmatmul.f32.gmra.mxu0 %v3122
      %v3154 = vpop.f32.mrf.mxu0
      %v3155 = vadd.f32 %v3107, %v3154
      %3156 = vmatmul.f32.gmra.mxu0 %v3125
      %v3157 = vpop.f32.mrf.mxu0
      %v3158 = vadd.f32 %v3112, %v3157
      %3159 = vdwg.mxu0
      %v3160 = vld [vmem:[%s12] sm:$0xff]
      %v3161 = vld [vmem:[%s12 + $0x8] sm:$0xff]
      %v3162 = vld [vmem:[%s12 + $0x10] sm:$0xff]
      %v3163 = vld [vmem:[%s12 + $0x18] sm:$0xff]
      %v3164 = vld [vmem:[%s12 + $0x20] sm:$0xff]
      %v3165 = vld [vmem:[%s12 + $0x28] sm:$0xff]
      %v3166 = vld [vmem:[%s12 + $0x30] sm:$0xff]
      %v3167 = vld [vmem:[%s12 + $0x38] sm:$0xff]
      %v3168 = vld [vmem:[%s12 + $0x40] sm:$0xff]
      %v3169 = vld [vmem:[%s12 + $0x48] sm:$0xff]
      %v3170 = vld [vmem:[%s12 + $0x50] sm:$0xff]
      %v3171 = vld [vmem:[%s12 + $0x58] sm:$0xff]
      %v3172 = vld [vmem:[%s12 + $0x60] sm:$0xff]
      %v3173 = vld [vmem:[%s12 + $0x68] sm:$0xff]
      %v3174 = vld [vmem:[%s12 + $0x70] sm:$0xff]
      %v3175 = vld [vmem:[%s12 + $0x78] sm:$0xff]
      %v3176 = vld [vmem:[%s12 + $0x80] sm:$0xff]
      %v3177 = vld [vmem:[%s12 + $0x88] sm:$0xff]
      %v3178 = vld [vmem:[%s12 + $0x90] sm:$0xff]
      %v3179 = vld [vmem:[%s12 + $0x98] sm:$0xff]
      %v3180 = vld [vmem:[%s12 + $0xa0] sm:$0xff]
      %v3181 = vld [vmem:[%s12 + $0xa8] sm:$0xff]
      %v3182 = vld [vmem:[%s12 + $0xb0] sm:$0xff]
      %v3183 = vld [vmem:[%s12 + $0xb8] sm:$0xff]
      %v3184 = vld [vmem:[%s12 + $0xc0] sm:$0xff]
      %v3185 = vld [vmem:[%s12 + $0xc8] sm:$0xff]
      %v3186 = vld [vmem:[%s12 + $0xd0] sm:$0xff]
      %v3187 = vld [vmem:[%s12 + $0xd8] sm:$0xff]
      %v3188 = vld [vmem:[%s12 + $0xe0] sm:$0xff]
      %v3189 = vld [vmem:[%s12 + $0xe8] sm:$0xff]
      %v3190 = vld [vmem:[%s12 + $0xf0] sm:$0xff]
      %v3191 = vld [vmem:[%s12 + $0xf8] sm:$0xff]
      %v3192 = vld [vmem:[%s12 + $0x100] sm:$0xff]
      %v3193 = vld [vmem:[%s12 + $0x108] sm:$0xff]
      %v3194 = vld [vmem:[%s12 + $0x110] sm:$0xff]
      %v3195 = vld [vmem:[%s12 + $0x118] sm:$0xff]
      %v3196 = vld [vmem:[%s13] sm:$0xff]
      %v3197 = vld [vmem:[%s13 + $0x8] sm:$0xff]
      %v3198 = vld [vmem:[%s13 + $0x10] sm:$0xff]
      %v3199 = vld [vmem:[%s13 + $0x18] sm:$0xff]
      %v3200 = vld [vmem:[%s13 + $0x20] sm:$0xff]
      %v3201 = vld [vmem:[%s13 + $0x28] sm:$0xff]
      %v3202 = vld [vmem:[%s13 + $0x30] sm:$0xff]
      %v3203 = vld [vmem:[%s13 + $0x38] sm:$0xff]
      %v3204 = vld [vmem:[%s13 + $0x40] sm:$0xff]
      %v3205 = vld [vmem:[%s13 + $0x48] sm:$0xff]
      %v3206 = vld [vmem:[%s13 + $0x50] sm:$0xff]
      %v3207 = vld [vmem:[%s13 + $0x58] sm:$0xff]
      %v3208 = vld [vmem:[%s14] sm:$0xff]
      %v3209 = vld [vmem:[%s14 + $0x8] sm:$0xff]
      %v3210 = vld [vmem:[%s14 + $0x10] sm:$0xff]
      %v3211 = vld [vmem:[%s14 + $0x18] sm:$0xff]
      %v3212 = vld [vmem:[%s14 + $0x20] sm:$0xff]
      %v3213 = vld [vmem:[%s14 + $0x28] sm:$0xff]
      %v3214 = vld [vmem:[%s14 + $0x30] sm:$0xff]
      %v3215 = vld [vmem:[%s14 + $0x38] sm:$0xff]
      %v3216 = vld [vmem:[%s14 + $0x40] sm:$0xff]
      %v3217 = vld [vmem:[%s14 + $0x48] sm:$0xff]
      %v3218 = vld [vmem:[%s14 + $0x50] sm:$0xff]
      %v3219 = vld [vmem:[%s14 + $0x58] sm:$0xff]
      %v3220 = vld [vmem:[%s15] sm:$0xff]
      %v3221 = vld [vmem:[%s15 + $0x8] sm:$0xff]
      %v3222 = vld [vmem:[%s15 + $0x10] sm:$0xff]
      %v3223 = vld [vmem:[%s15 + $0x18] sm:$0xff]
      %v3224 = vld [vmem:[%s15 + $0x20] sm:$0xff]
      %v3225 = vld [vmem:[%s15 + $0x28] sm:$0xff]
      %v3226 = vld [vmem:[%s15 + $0x30] sm:$0xff]
      %v3227 = vld [vmem:[%s15 + $0x38] sm:$0xff]
      %v3228 = vld [vmem:[%s15 + $0x40] sm:$0xff]
      %v3229 = vld [vmem:[%s15 + $0x48] sm:$0xff]
      %v3230 = vld [vmem:[%s15 + $0x50] sm:$0xff]
      %v3231 = vld [vmem:[%s15 + $0x58] sm:$0xff]
      %v3232 = vld [vmem:[%s16] sm:$0xf]
      %v3233 = vld [vmem:[%s17] sm:$0xf]
      %3238 = vrot.lane.b32.xlu0 %v3149, 4
      %v3239 = vpop.permute.xlu0 %3238
      %3240 = vrot.lane.b32.xlu0 %v3152, 4
      %v3241 = vpop.permute.xlu0 %3240
      %3242 = vrot.lane.b32.xlu0 %v3155, 4
      %v3243 = vpop.permute.xlu0 %3242
      %3244 = vrot.lane.b32.xlu0 %v3158, 4
      %v3245 = vpop.permute.xlu0 %3244
      %3250 = vst.msk [vmem:[#allocation2] sm:$0xff] %vm2230, %v3239
      %3251 = vst.msk [vmem:[#allocation2 + $0x8] sm:$0xff] %vm2230, %v3241
      %3252 = vst.msk [vmem:[#allocation2 + $0x10] sm:$0xff] %vm2230, %v3243
      %3253 = vst.msk [vmem:[#allocation2 + $0x18] sm:$0xff] %vm2230, %v3245
      %v3254 = vld [vmem:[#allocation2] sm:$0xff]
      %v3255 = vld [vmem:[#allocation2 + $0x8] sm:$0xff]
      %v3256 = vld [vmem:[#allocation2 + $0x10] sm:$0xff]
      %v3257 = vld [vmem:[#allocation2 + $0x18] sm:$0xff]
      %v3259 = vsel %vm2239, %v3164, 0
      %v3262 = vsel %vm2239, %v3165, 0
      %v3265 = vsel %vm2239, %v3166, 0
      %v3268 = vsel %vm2239, %v3167, 0
      %3270 = vmatpush.msra.mxu0 0.0
      %3271 = vmatpush.msra.mxu0 0.0
      %3272 = vmatpush.msra.mxu0 0.0
      %3273 = vmatpush.msra.mxu0 0.0
      %3274 = vmatpush.msra.mxu0 0.0
      %3275 = vmatpush.msra.mxu0 0.0
      %3276 = vmatpush.msra.mxu0 0.0
      %3277 = vmatpush.msra.mxu0 0.0
      %3278 = vmatpush.msra.mxu0 0.0
      %3279 = vmatpush.msra.mxu0 0.0
      %3280 = vmatpush.msra.mxu0 0.0
      %3281 = vmatpush.msra.mxu0 0.0
      %3282 = vmatpush.msra.mxu0 %v3158
      %3283 = vmatpush.msra.mxu0 %v3155
      %3284 = vmatpush.msra.mxu0 %v3152
      %3285 = vmatpush.msra.mxu0 %v3149
      %3286 = vmatmul.f32.gmra.mxu0 %v3259
      %v3287 = vpop.f32.mrf.mxu0
      %v3288 = vadd.f32 0.0, %v3287
      %3289 = vmatmul.f32.gmra.mxu0 %v3262
      %v3290 = vpop.f32.mrf.mxu0
      %v3291 = vadd.f32 0.0, %v3290
      %3292 = vmatmul.f32.gmra.mxu0 %v3265
      %v3293 = vpop.f32.mrf.mxu0
      %v3294 = vadd.f32 0.0, %v3293
      %3295 = vmatmul.f32.gmra.mxu0 %v3268
      %v3296 = vpop.f32.mrf.mxu0
      %v3297 = vadd.f32 0.0, %v3296
      %3298 = vdwg.mxu0
      %3303 = vrot.lane.b32.xlu0 %v3254, 125
      %v3304 = vpop.permute.xlu0 %3303
      %3305 = vrot.lane.b32.xlu0 %v3255, 125
      %v3306 = vpop.permute.xlu0 %3305
      %3307 = vrot.lane.b32.xlu0 %v3256, 125
      %v3308 = vpop.permute.xlu0 %3307
      %3309 = vrot.lane.b32.xlu0 %v3257, 125
      %v3310 = vpop.permute.xlu0 %3309
      %v3316 = vsel %vm2239, %v3160, 0
      %v3319 = vsel %vm2239, %v3161, 0
      %v3322 = vsel %vm2239, %v3162, 0
      %v3325 = vsel %vm2239, %v3163, 0
      %3327 = vmatpush.msra.mxu0 0.0
      %3328 = vmatpush.msra.mxu0 0.0
      %3329 = vmatpush.msra.mxu0 0.0
      %3330 = vmatpush.msra.mxu0 0.0
      %3331 = vmatpush.msra.mxu0 0.0
      %3332 = vmatpush.msra.mxu0 0.0
      %3333 = vmatpush.msra.mxu0 0.0
      %3334 = vmatpush.msra.mxu0 0.0
      %3335 = vmatpush.msra.mxu0 0.0
      %3336 = vmatpush.msra.mxu0 0.0
      %3337 = vmatpush.msra.mxu0 0.0
      %3338 = vmatpush.msra.mxu0 0.0
      %3339 = vmatpush.msra.mxu0 %v3310
      %3340 = vmatpush.msra.mxu0 %v3308
      %3341 = vmatpush.msra.mxu0 %v3306
      %3342 = vmatpush.msra.mxu0 %v3304
      %3343 = vmatmul.f32.gmra.mxu0 %v3316
      %v3344 = vpop.f32.mrf.mxu0
      %v3345 = vadd.f32 %v3288, %v3344
      %3346 = vmatmul.f32.gmra.mxu0 %v3319
      %v3347 = vpop.f32.mrf.mxu0
      %v3348 = vadd.f32 %v3291, %v3347
      %3349 = vmatmul.f32.gmra.mxu0 %v3322
      %v3350 = vpop.f32.mrf.mxu0
      %v3351 = vadd.f32 %v3294, %v3350
      %3352 = vmatmul.f32.gmra.mxu0 %v3325
      %v3353 = vpop.f32.mrf.mxu0
      %v3354 = vadd.f32 %v3297, %v3353
      %3355 = vdwg.mxu0
      %3356 = vrot.lane.b32.xlu0 %v3254, 123
      %v3357 = vpop.permute.xlu0 %3356
      %3358 = vrot.lane.b32.xlu0 %v3255, 123
      %v3359 = vpop.permute.xlu0 %3358
      %3360 = vrot.lane.b32.xlu0 %v3256, 123
      %v3361 = vpop.permute.xlu0 %3360
      %3362 = vrot.lane.b32.xlu0 %v3257, 123
      %v3363 = vpop.permute.xlu0 %3362
      %v3369 = vsel %vm2239, %v3168, 0
      %v3372 = vsel %vm2239, %v3169, 0
      %v3375 = vsel %vm2239, %v3170, 0
      %v3378 = vsel %vm2239, %v3171, 0
      %3380 = vmatpush.msra.mxu0 0.0
      %3381 = vmatpush.msra.mxu0 0.0
      %3382 = vmatpush.msra.mxu0 0.0
      %3383 = vmatpush.msra.mxu0 0.0
      %3384 = vmatpush.msra.mxu0 0.0
      %3385 = vmatpush.msra.mxu0 0.0
      %3386 = vmatpush.msra.mxu0 0.0
      %3387 = vmatpush.msra.mxu0 0.0
      %3388 = vmatpush.msra.mxu0 0.0
      %3389 = vmatpush.msra.mxu0 0.0
      %3390 = vmatpush.msra.mxu0 0.0
      %3391 = vmatpush.msra.mxu0 0.0
      %3392 = vmatpush.msra.mxu0 %v3363
      %3393 = vmatpush.msra.mxu0 %v3361
      %3394 = vmatpush.msra.mxu0 %v3359
      %3395 = vmatpush.msra.mxu0 %v3357
      %3396 = vmatmul.f32.gmra.mxu0 %v3369
      %v3397 = vpop.f32.mrf.mxu0
      %v3398 = vadd.f32 0.0, %v3397
      %3399 = vmatmul.f32.gmra.mxu0 %v3372
      %v3400 = vpop.f32.mrf.mxu0
      %v3401 = vadd.f32 0.0, %v3400
      %3402 = vmatmul.f32.gmra.mxu0 %v3375
      %v3403 = vpop.f32.mrf.mxu0
      %v3404 = vadd.f32 0.0, %v3403
      %3405 = vmatmul.f32.gmra.mxu0 %v3378
      %v3406 = vpop.f32.mrf.mxu0
      %v3407 = vadd.f32 0.0, %v3406
      %3408 = vdwg.mxu0
      %v3409 = vadd.f32 %v3345, %v3398
      %v3410 = vadd.f32 %v3348, %v3401
      %v3411 = vadd.f32 %v3351, %v3404
      %v3412 = vadd.f32 %v3354, %v3407
      %3414 = vset.pattern.permute.xlu0 0
      %3415 = vperm.xlu0 %3414, %v3196
      %v3416 = vpop.permute.xlu0 %3415
      %3419 = vset.pattern.permute.xlu0 0
      %3420 = vperm.xlu0 %3419, %v3197
      %v3421 = vpop.permute.xlu0 %3420
      %3424 = vset.pattern.permute.xlu0 0
      %3425 = vperm.xlu0 %3424, %v3198
      %v3426 = vpop.permute.xlu0 %3425
      %3429 = vset.pattern.permute.xlu0 0
      %3430 = vperm.xlu0 %3429, %v3199
      %v3431 = vpop.permute.xlu0 %3430
      %v3433 = vadd.f32 %v3409, %v3416
      %v3434 = vadd.f32 %v3410, %v3421
      %v3435 = vadd.f32 %v3411, %v3426
      %v3436 = vadd.f32 %v3412, %v3431
      %v3437 = vmax.f32 %v3433, 0.0
      %v3438 = vmax.f32 %v3434, 0.0
      %v3439 = vmax.f32 %v3435, 0.0
      %v3440 = vmax.f32 %v3436, 0.0
      %3442 = vset.pattern.permute.xlu0 0
      %3443 = vperm.xlu0 %3442, %v3220
      %v3444 = vpop.permute.xlu0 %3443
      %3447 = vset.pattern.permute.xlu0 0
      %3448 = vperm.xlu0 %3447, %v3221
      %v3449 = vpop.permute.xlu0 %3448
      %3452 = vset.pattern.permute.xlu0 0
      %3453 = vperm.xlu0 %3452, %v3222
      %v3454 = vpop.permute.xlu0 %3453
      %3457 = vset.pattern.permute.xlu0 0
      %3458 = vperm.xlu0 %3457, %v3223
      %v3459 = vpop.permute.xlu0 %3458
      %v3462 = vsel %vm2239, %v3208, 0
      %v3465 = vsel %vm2239, %v3209, 0
      %v3468 = vsel %vm2239, %v3210, 0
      %v3471 = vsel %vm2239, %v3211, 0
      %3473 = vmatpush.msra.mxu0 0.0
      %3474 = vmatpush.msra.mxu0 0.0
      %3475 = vmatpush.msra.mxu0 0.0
      %3476 = vmatpush.msra.mxu0 0.0
      %3477 = vmatpush.msra.mxu0 0.0
      %3478 = vmatpush.msra.mxu0 0.0
      %3479 = vmatpush.msra.mxu0 0.0
      %3480 = vmatpush.msra.mxu0 0.0
      %3481 = vmatpush.msra.mxu0 0.0
      %3482 = vmatpush.msra.mxu0 0.0
      %3483 = vmatpush.msra.mxu0 0.0
      %3484 = vmatpush.msra.mxu0 0.0
      %3485 = vmatpush.msra.mxu0 %v3440
      %3486 = vmatpush.msra.mxu0 %v3439
      %3487 = vmatpush.msra.mxu0 %v3438
      %3488 = vmatpush.msra.mxu0 %v3437
      %3489 = vmatmul.f32.gmra.mxu0 %v3462
      %v3490 = vpop.f32.mrf.mxu0
      %v3491 = vadd.f32 %v3444, %v3490
      %3492 = vmatmul.f32.gmra.mxu0 %v3465
      %v3493 = vpop.f32.mrf.mxu0
      %v3494 = vadd.f32 %v3449, %v3493
      %3495 = vmatmul.f32.gmra.mxu0 %v3468
      %v3496 = vpop.f32.mrf.mxu0
      %v3497 = vadd.f32 %v3454, %v3496
      %3498 = vmatmul.f32.gmra.mxu0 %v3471
      %v3499 = vpop.f32.mrf.mxu0
      %v3500 = vadd.f32 %v3459, %v3499
      %3501 = vdwg.mxu0
      %v3502 = vadd.f32 %v3149, %v3491
      %v3503 = vadd.f32 %v3152, %v3494
      %v3504 = vadd.f32 %v3155, %v3497
      %v3505 = vadd.f32 %v3158, %v3500
      %v3506 = vmul.f32 %v3502, %v2489
      %v3507 = vmul.f32 %v3503, %v2489
      %v3508 = vmul.f32 %v3504, %v2489
      %v3509 = vmul.f32 %v3505, %v2489
      %3514 = vrot.lane.b32.xlu0 %v3506, 4
      %v3515 = vpop.permute.xlu0 %3514
      %3516 = vrot.lane.b32.xlu0 %v3507, 4
      %v3517 = vpop.permute.xlu0 %3516
      %3518 = vrot.lane.b32.xlu0 %v3508, 4
      %v3519 = vpop.permute.xlu0 %3518
      %3520 = vrot.lane.b32.xlu0 %v3509, 4
      %v3521 = vpop.permute.xlu0 %3520
      %3526 = vst.msk [vmem:[#allocation2] sm:$0xff] %vm2230, %v3515
      %3527 = vst.msk [vmem:[#allocation2 + $0x8] sm:$0xff] %vm2230, %v3517
      %3528 = vst.msk [vmem:[#allocation2 + $0x10] sm:$0xff] %vm2230, %v3519
      %3529 = vst.msk [vmem:[#allocation2 + $0x18] sm:$0xff] %vm2230, %v3521
      %v3530 = vld [vmem:[#allocation2] sm:$0xff]
      %v3531 = vld [vmem:[#allocation2 + $0x8] sm:$0xff]
      %v3532 = vld [vmem:[#allocation2 + $0x10] sm:$0xff]
      %v3533 = vld [vmem:[#allocation2 + $0x18] sm:$0xff]
      %v3535 = vsel %vm2239, %v3176, 0
      %v3538 = vsel %vm2239, %v3177, 0
      %v3541 = vsel %vm2239, %v3178, 0
      %v3544 = vsel %vm2239, %v3179, 0
      %3546 = vmatpush.msra.mxu0 0.0
      %3547 = vmatpush.msra.mxu0 0.0
      %3548 = vmatpush.msra.mxu0 0.0
      %3549 = vmatpush.msra.mxu0 0.0
      %3550 = vmatpush.msra.mxu0 0.0
      %3551 = vmatpush.msra.mxu0 0.0
      %3552 = vmatpush.msra.mxu0 0.0
      %3553 = vmatpush.msra.mxu0 0.0
      %3554 = vmatpush.msra.mxu0 0.0
      %3555 = vmatpush.msra.mxu0 0.0
      %3556 = vmatpush.msra.mxu0 0.0
      %3557 = vmatpush.msra.mxu0 0.0
      %3558 = vmatpush.msra.mxu0 %v3509
      %3559 = vmatpush.msra.mxu0 %v3508
      %3560 = vmatpush.msra.mxu0 %v3507
      %3561 = vmatpush.msra.mxu0 %v3506
      %3562 = vmatmul.f32.gmra.mxu0 %v3535
      %v3563 = vpop.f32.mrf.mxu0
      %v3564 = vadd.f32 0.0, %v3563
      %3565 = vmatmul.f32.gmra.mxu0 %v3538
      %v3566 = vpop.f32.mrf.mxu0
      %v3567 = vadd.f32 0.0, %v3566
      %3568 = vmatmul.f32.gmra.mxu0 %v3541
      %v3569 = vpop.f32.mrf.mxu0
      %v3570 = vadd.f32 0.0, %v3569
      %3571 = vmatmul.f32.gmra.mxu0 %v3544
      %v3572 = vpop.f32.mrf.mxu0
      %v3573 = vadd.f32 0.0, %v3572
      %3574 = vdwg.mxu0
      %3579 = vrot.lane.b32.xlu0 %v3530, 126
      %v3580 = vpop.permute.xlu0 %3579
      %3581 = vrot.lane.b32.xlu0 %v3531, 126
      %v3582 = vpop.permute.xlu0 %3581
      %3583 = vrot.lane.b32.xlu0 %v3532, 126
      %v3584 = vpop.permute.xlu0 %3583
      %3585 = vrot.lane.b32.xlu0 %v3533, 126
      %v3586 = vpop.permute.xlu0 %3585
      %v3592 = vsel %vm2239, %v3172, 0
      %v3595 = vsel %vm2239, %v3173, 0
      %v3598 = vsel %vm2239, %v3174, 0
      %v3601 = vsel %vm2239, %v3175, 0
      %3603 = vmatpush.msra.mxu0 0.0
      %3604 = vmatpush.msra.mxu0 0.0
      %3605 = vmatpush.msra.mxu0 0.0
      %3606 = vmatpush.msra.mxu0 0.0
      %3607 = vmatpush.msra.mxu0 0.0
      %3608 = vmatpush.msra.mxu0 0.0
      %3609 = vmatpush.msra.mxu0 0.0
      %3610 = vmatpush.msra.mxu0 0.0
      %3611 = vmatpush.msra.mxu0 0.0
      %3612 = vmatpush.msra.mxu0 0.0
      %3613 = vmatpush.msra.mxu0 0.0
      %3614 = vmatpush.msra.mxu0 0.0
      %3615 = vmatpush.msra.mxu0 %v3586
      %3616 = vmatpush.msra.mxu0 %v3584
      %3617 = vmatpush.msra.mxu0 %v3582
      %3618 = vmatpush.msra.mxu0 %v3580
      %3619 = vmatmul.f32.gmra.mxu0 %v3592
      %v3620 = vpop.f32.mrf.mxu0
      %v3621 = vadd.f32 %v3564, %v3620
      %3622 = vmatmul.f32.gmra.mxu0 %v3595
      %v3623 = vpop.f32.mrf.mxu0
      %v3624 = vadd.f32 %v3567, %v3623
      %3625 = vmatmul.f32.gmra.mxu0 %v3598
      %v3626 = vpop.f32.mrf.mxu0
      %v3627 = vadd.f32 %v3570, %v3626
      %3628 = vmatmul.f32.gmra.mxu0 %v3601
      %v3629 = vpop.f32.mrf.mxu0
      %v3630 = vadd.f32 %v3573, %v3629
      %3631 = vdwg.mxu0
      %3632 = vrot.lane.b32.xlu0 %v3530, 122
      %v3633 = vpop.permute.xlu0 %3632
      %3634 = vrot.lane.b32.xlu0 %v3531, 122
      %v3635 = vpop.permute.xlu0 %3634
      %3636 = vrot.lane.b32.xlu0 %v3532, 122
      %v3637 = vpop.permute.xlu0 %3636
      %3638 = vrot.lane.b32.xlu0 %v3533, 122
      %v3639 = vpop.permute.xlu0 %3638
      %v3645 = vsel %vm2239, %v3180, 0
      %v3648 = vsel %vm2239, %v3181, 0
      %v3651 = vsel %vm2239, %v3182, 0
      %v3654 = vsel %vm2239, %v3183, 0
      %3656 = vmatpush.msra.mxu0 0.0
      %3657 = vmatpush.msra.mxu0 0.0
      %3658 = vmatpush.msra.mxu0 0.0
      %3659 = vmatpush.msra.mxu0 0.0
      %3660 = vmatpush.msra.mxu0 0.0
      %3661 = vmatpush.msra.mxu0 0.0
      %3662 = vmatpush.msra.mxu0 0.0
      %3663 = vmatpush.msra.mxu0 0.0
      %3664 = vmatpush.msra.mxu0 0.0
      %3665 = vmatpush.msra.mxu0 0.0
      %3666 = vmatpush.msra.mxu0 0.0
      %3667 = vmatpush.msra.mxu0 0.0
      %3668 = vmatpush.msra.mxu0 %v3639
      %3669 = vmatpush.msra.mxu0 %v3637
      %3670 = vmatpush.msra.mxu0 %v3635
      %3671 = vmatpush.msra.mxu0 %v3633
      %3672 = vmatmul.f32.gmra.mxu0 %v3645
      %v3673 = vpop.f32.mrf.mxu0
      %v3674 = vadd.f32 0.0, %v3673
      %3675 = vmatmul.f32.gmra.mxu0 %v3648
      %v3676 = vpop.f32.mrf.mxu0
      %v3677 = vadd.f32 0.0, %v3676
      %3678 = vmatmul.f32.gmra.mxu0 %v3651
      %v3679 = vpop.f32.mrf.mxu0
      %v3680 = vadd.f32 0.0, %v3679
      %3681 = vmatmul.f32.gmra.mxu0 %v3654
      %v3682 = vpop.f32.mrf.mxu0
      %v3683 = vadd.f32 0.0, %v3682
      %3684 = vdwg.mxu0
      %v3685 = vadd.f32 %v3621, %v3674
      %v3686 = vadd.f32 %v3624, %v3677
      %v3687 = vadd.f32 %v3627, %v3680
      %v3688 = vadd.f32 %v3630, %v3683
      %3690 = vset.pattern.permute.xlu0 0
      %3691 = vperm.xlu0 %3690, %v3200
      %v3692 = vpop.permute.xlu0 %3691
      %3695 = vset.pattern.permute.xlu0 0
      %3696 = vperm.xlu0 %3695, %v3201
      %v3697 = vpop.permute.xlu0 %3696
      %3700 = vset.pattern.permute.xlu0 0
      %3701 = vperm.xlu0 %3700, %v3202
      %v3702 = vpop.permute.xlu0 %3701
      %3705 = vset.pattern.permute.xlu0 0
      %3706 = vperm.xlu0 %3705, %v3203
      %v3707 = vpop.permute.xlu0 %3706
      %v3709 = vadd.f32 %v3685, %v3692
      %v3710 = vadd.f32 %v3686, %v3697
      %v3711 = vadd.f32 %v3687, %v3702
      %v3712 = vadd.f32 %v3688, %v3707
      %v3713 = vmax.f32 %v3709, 0.0
      %v3714 = vmax.f32 %v3710, 0.0
      %v3715 = vmax.f32 %v3711, 0.0
      %v3716 = vmax.f32 %v3712, 0.0
      %3718 = vset.pattern.permute.xlu0 0
      %3719 = vperm.xlu0 %3718, %v3224
      %v3720 = vpop.permute.xlu0 %3719
      %3723 = vset.pattern.permute.xlu0 0
      %3724 = vperm.xlu0 %3723, %v3225
      %v3725 = vpop.permute.xlu0 %3724
      %3728 = vset.pattern.permute.xlu0 0
      %3729 = vperm.xlu0 %3728, %v3226
      %v3730 = vpop.permute.xlu0 %3729
      %3733 = vset.pattern.permute.xlu0 0
      %3734 = vperm.xlu0 %3733, %v3227
      %v3735 = vpop.permute.xlu0 %3734
      %v3738 = vsel %vm2239, %v3212, 0
      %v3741 = vsel %vm2239, %v3213, 0
      %v3744 = vsel %vm2239, %v3214, 0
      %v3747 = vsel %vm2239, %v3215, 0
      %3749 = vmatpush.msra.mxu0 0.0
      %3750 = vmatpush.msra.mxu0 0.0
      %3751 = vmatpush.msra.mxu0 0.0
      %3752 = vmatpush.msra.mxu0 0.0
      %3753 = vmatpush.msra.mxu0 0.0
      %3754 = vmatpush.msra.mxu0 0.0
      %3755 = vmatpush.msra.mxu0 0.0
      %3756 = vmatpush.msra.mxu0 0.0
      %3757 = vmatpush.msra.mxu0 0.0
      %3758 = vmatpush.msra.mxu0 0.0
      %3759 = vmatpush.msra.mxu0 0.0
      %3760 = vmatpush.msra.mxu0 0.0
      %3761 = vmatpush.msra.mxu0 %v3716
      %3762 = vmatpush.msra.mxu0 %v3715
      %3763 = vmatpush.msra.mxu0 %v3714
      %3764 = vmatpush.msra.mxu0 %v3713
      %3765 = vmatmul.f32.gmra.mxu0 %v3738
      %v3766 = vpop.f32.mrf.mxu0
      %v3767 = vadd.f32 %v3720, %v3766
      %3768 = vmatmul.f32.gmra.mxu0 %v3741
      %v3769 = vpop.f32.mrf.mxu0
      %v3770 = vadd.f32 %v3725, %v3769
      %3771 = vmatmul.f32.gmra.mxu0 %v3744
      %v3772 = vpop.f32.mrf.mxu0
      %v3773 = vadd.f32 %v3730, %v3772
      %3774 = vmatmul.f32.gmra.mxu0 %v3747
      %v3775 = vpop.f32.mrf.mxu0
      %v3776 = vadd.f32 %v3735, %v3775
      %3777 = vdwg.mxu0
      %v3778 = vadd.f32 %v3506, %v3767
      %v3779 = vadd.f32 %v3507, %v3770
      %v3780 = vadd.f32 %v3508, %v3773
      %v3781 = vadd.f32 %v3509, %v3776
      %v3782 = vmul.f32 %v3778, %v2489
      %v3783 = vmul.f32 %v3779, %v2489
      %v3784 = vmul.f32 %v3780, %v2489
      %v3785 = vmul.f32 %v3781, %v2489
      %3790 = vrot.lane.b32.xlu0 %v3782, 4
      %v3791 = vpop.permute.xlu0 %3790
      %3792 = vrot.lane.b32.xlu0 %v3783, 4
      %v3793 = vpop.permute.xlu0 %3792
      %3794 = vrot.lane.b32.xlu0 %v3784, 4
      %v3795 = vpop.permute.xlu0 %3794
      %3796 = vrot.lane.b32.xlu0 %v3785, 4
      %v3797 = vpop.permute.xlu0 %3796
      %3802 = vst.msk [vmem:[#allocation2] sm:$0xff] %vm2230, %v3791
      %3803 = vst.msk [vmem:[#allocation2 + $0x8] sm:$0xff] %vm2230, %v3793
      %3804 = vst.msk [vmem:[#allocation2 + $0x10] sm:$0xff] %vm2230, %v3795
      %3805 = vst.msk [vmem:[#allocation2 + $0x18] sm:$0xff] %vm2230, %v3797
      %v3806 = vld [vmem:[#allocation2] sm:$0xff]
      %v3807 = vld [vmem:[#allocation2 + $0x8] sm:$0xff]
      %v3808 = vld [vmem:[#allocation2 + $0x10] sm:$0xff]
      %v3809 = vld [vmem:[#allocation2 + $0x18] sm:$0xff]
      %v3811 = vsel %vm2239, %v3188, 0
      %v3814 = vsel %vm2239, %v3189, 0
      %v3817 = vsel %vm2239, %v3190, 0
      %v3820 = vsel %vm2239, %v3191, 0
      %3822 = vmatpush.msra.mxu0 0.0
      %3823 = vmatpush.msra.mxu0 0.0
      %3824 = vmatpush.msra.mxu0 0.0
      %3825 = vmatpush.msra.mxu0 0.0
      %3826 = vmatpush.msra.mxu0 0.0
      %3827 = vmatpush.msra.mxu0 0.0
      %3828 = vmatpush.msra.mxu0 0.0
      %3829 = vmatpush.msra.mxu0 0.0
      %3830 = vmatpush.msra.mxu0 0.0
      %3831 = vmatpush.msra.mxu0 0.0
      %3832 = vmatpush.msra.mxu0 0.0
      %3833 = vmatpush.msra.mxu0 0.0
      %3834 = vmatpush.msra.mxu0 %v3785
      %3835 = vmatpush.msra.mxu0 %v3784
      %3836 = vmatpush.msra.mxu0 %v3783
      %3837 = vmatpush.msra.mxu0 %v3782
      %3838 = vmatmul.f32.gmra.mxu0 %v3811
      %v3839 = vpop.f32.mrf.mxu0
      %v3840 = vadd.f32 0.0, %v3839
      %3841 = vmatmul.f32.gmra.mxu0 %v3814
      %v3842 = vpop.f32.mrf.mxu0
      %v3843 = vadd.f32 0.0, %v3842
      %3844 = vmatmul.f32.gmra.mxu0 %v3817
      %v3845 = vpop.f32.mrf.mxu0
      %v3846 = vadd.f32 0.0, %v3845
      %3847 = vmatmul.f32.gmra.mxu0 %v3820
      %v3848 = vpop.f32.mrf.mxu0
      %v3849 = vadd.f32 0.0, %v3848
      %3850 = vdwg.mxu0
      %v3852 = vsel %vm2239, %v3184, 0
      %v3855 = vsel %vm2239, %v3185, 0
      %v3858 = vsel %vm2239, %v3186, 0
      %v3861 = vsel %vm2239, %v3187, 0
      %3863 = vmatpush.msra.mxu0 0.0
      %3864 = vmatpush.msra.mxu0 0.0
      %3865 = vmatpush.msra.mxu0 0.0
      %3866 = vmatpush.msra.mxu0 0.0
      %3867 = vmatpush.msra.mxu0 0.0
      %3868 = vmatpush.msra.mxu0 0.0
      %3869 = vmatpush.msra.mxu0 0.0
      %3870 = vmatpush.msra.mxu0 0.0
      %3871 = vmatpush.msra.mxu0 0.0
      %3872 = vmatpush.msra.mxu0 0.0
      %3873 = vmatpush.msra.mxu0 0.0
      %3874 = vmatpush.msra.mxu0 0.0
      %3875 = vmatpush.msra.mxu0 %v3809
      %3876 = vmatpush.msra.mxu0 %v3808
      %3877 = vmatpush.msra.mxu0 %v3807
      %3878 = vmatpush.msra.mxu0 %v3806
      %3879 = vmatmul.f32.gmra.mxu0 %v3852
      %v3880 = vpop.f32.mrf.mxu0
      %v3881 = vadd.f32 %v3840, %v3880
      %3882 = vmatmul.f32.gmra.mxu0 %v3855
      %v3883 = vpop.f32.mrf.mxu0
      %v3884 = vadd.f32 %v3843, %v3883
      %3885 = vmatmul.f32.gmra.mxu0 %v3858
      %v3886 = vpop.f32.mrf.mxu0
      %v3887 = vadd.f32 %v3846, %v3886
      %3888 = vmatmul.f32.gmra.mxu0 %v3861
      %v3889 = vpop.f32.mrf.mxu0
      %v3890 = vadd.f32 %v3849, %v3889
      %3891 = vdwg.mxu0
      %3896 = vrot.lane.b32.xlu0 %v3806, 120
      %v3897 = vpop.permute.xlu0 %3896
      %3898 = vrot.lane.b32.xlu0 %v3807, 120
      %v3899 = vpop.permute.xlu0 %3898
      %3900 = vrot.lane.b32.xlu0 %v3808, 120
      %v3901 = vpop.permute.xlu0 %3900
      %3902 = vrot.lane.b32.xlu0 %v3809, 120
      %v3903 = vpop.permute.xlu0 %3902
      %v3909 = vsel %vm2239, %v3192, 0
      %v3912 = vsel %vm2239, %v3193, 0
      %v3915 = vsel %vm2239, %v3194, 0
      %v3918 = vsel %vm2239, %v3195, 0
      %3920 = vmatpush.msra.mxu0 0.0
      %3921 = vmatpush.msra.mxu0 0.0
      %3922 = vmatpush.msra.mxu0 0.0
      %3923 = vmatpush.msra.mxu0 0.0
      %3924 = vmatpush.msra.mxu0 0.0
      %3925 = vmatpush.msra.mxu0 0.0
      %3926 = vmatpush.msra.mxu0 0.0
      %3927 = vmatpush.msra.mxu0 0.0
      %3928 = vmatpush.msra.mxu0 0.0
      %3929 = vmatpush.msra.mxu0 0.0
      %3930 = vmatpush.msra.mxu0 0.0
      %3931 = vmatpush.msra.mxu0 0.0
      %3932 = vmatpush.msra.mxu0 %v3903
      %3933 = vmatpush.msra.mxu0 %v3901
      %3934 = vmatpush.msra.mxu0 %v3899
      %3935 = vmatpush.msra.mxu0 %v3897
      %3936 = vmatmul.f32.gmra.mxu0 %v3909
      %v3937 = vpop.f32.mrf.mxu0
      %v3938 = vadd.f32 0.0, %v3937
      %3939 = vmatmul.f32.gmra.mxu0 %v3912
      %v3940 = vpop.f32.mrf.mxu0
      %v3941 = vadd.f32 0.0, %v3940
      %3942 = vmatmul.f32.gmra.mxu0 %v3915
      %v3943 = vpop.f32.mrf.mxu0
      %v3944 = vadd.f32 0.0, %v3943
      %3945 = vmatmul.f32.gmra.mxu0 %v3918
      %v3946 = vpop.f32.mrf.mxu0
      %v3947 = vadd.f32 0.0, %v3946
      %3948 = vdwg.mxu0
      %v3949 = vadd.f32 %v3881, %v3938
      %v3950 = vadd.f32 %v3884, %v3941
      %v3951 = vadd.f32 %v3887, %v3944
      %v3952 = vadd.f32 %v3890, %v3947
      %3954 = vset.pattern.permute.xlu0 0
      %3955 = vperm.xlu0 %3954, %v3204
      %v3956 = vpop.permute.xlu0 %3955
      %3959 = vset.pattern.permute.xlu0 0
      %3960 = vperm.xlu0 %3959, %v3205
      %v3961 = vpop.permute.xlu0 %3960
      %3964 = vset.pattern.permute.xlu0 0
      %3965 = vperm.xlu0 %3964, %v3206
      %v3966 = vpop.permute.xlu0 %3965
      %3969 = vset.pattern.permute.xlu0 0
      %3970 = vperm.xlu0 %3969, %v3207
      %v3971 = vpop.permute.xlu0 %3970
      %v3973 = vadd.f32 %v3949, %v3956
      %v3974 = vadd.f32 %v3950, %v3961
      %v3975 = vadd.f32 %v3951, %v3966
      %v3976 = vadd.f32 %v3952, %v3971
      %v3977 = vmax.f32 %v3973, 0.0
      %v3978 = vmax.f32 %v3974, 0.0
      %v3979 = vmax.f32 %v3975, 0.0
      %v3980 = vmax.f32 %v3976, 0.0
      %3982 = vset.pattern.permute.xlu0 0
      %3983 = vperm.xlu0 %3982, %v3228
      %v3984 = vpop.permute.xlu0 %3983
      %3987 = vset.pattern.permute.xlu0 0
      %3988 = vperm.xlu0 %3987, %v3229
      %v3989 = vpop.permute.xlu0 %3988
      %3992 = vset.pattern.permute.xlu0 0
      %3993 = vperm.xlu0 %3992, %v3230
      %v3994 = vpop.permute.xlu0 %3993
      %3997 = vset.pattern.permute.xlu0 0
      %3998 = vperm.xlu0 %3997, %v3231
      %v3999 = vpop.permute.xlu0 %3998
      %v4002 = vsel %vm2239, %v3216, 0
      %v4005 = vsel %vm2239, %v3217, 0
      %v4008 = vsel %vm2239, %v3218, 0
      %v4011 = vsel %vm2239, %v3219, 0
      %4013 = vmatpush.msra.mxu0 0.0
      %4014 = vmatpush.msra.mxu0 0.0
      %4015 = vmatpush.msra.mxu0 0.0
      %4016 = vmatpush.msra.mxu0 0.0
      %4017 = vmatpush.msra.mxu0 0.0
      %4018 = vmatpush.msra.mxu0 0.0
      %4019 = vmatpush.msra.mxu0 0.0
      %4020 = vmatpush.msra.mxu0 0.0
      %4021 = vmatpush.msra.mxu0 0.0
      %4022 = vmatpush.msra.mxu0 0.0
      %4023 = vmatpush.msra.mxu0 0.0
      %4024 = vmatpush.msra.mxu0 0.0
      %4025 = vmatpush.msra.mxu0 %v3980
      %4026 = vmatpush.msra.mxu0 %v3979
      %4027 = vmatpush.msra.mxu0 %v3978
      %4028 = vmatpush.msra.mxu0 %v3977
      %4029 = vmatmul.f32.gmra.mxu0 %v4002
      %v4030 = vpop.f32.mrf.mxu0
      %v4031 = vadd.f32 %v3984, %v4030
      %4032 = vmatmul.f32.gmra.mxu0 %v4005
      %v4033 = vpop.f32.mrf.mxu0
      %v4034 = vadd.f32 %v3989, %v4033
      %4035 = vmatmul.f32.gmra.mxu0 %v4008
      %v4036 = vpop.f32.mrf.mxu0
      %v4037 = vadd.f32 %v3994, %v4036
      %4038 = vmatmul.f32.gmra.mxu0 %v4011
      %v4039 = vpop.f32.mrf.mxu0
      %v4040 = vadd.f32 %v3999, %v4039
      %4041 = vdwg.mxu0
      %v4042 = vadd.f32 %v3782, %v4031
      %v4043 = vadd.f32 %v3783, %v4034
      %v4044 = vadd.f32 %v3784, %v4037
      %v4045 = vadd.f32 %v3785, %v4040
      %v4046 = vmul.f32 %v4042, %v2489
      %v4047 = vmul.f32 %v4043, %v2489
      %v4048 = vmul.f32 %v4044, %v2489
      %v4049 = vmul.f32 %v4045, %v2489
      %4051 = vset.pattern.permute.xlu0 0
      %4052 = vperm.xlu0 %4051, %v3233
      %v4053 = vpop.permute.xlu0 %4052
      %v4056 = vsel %vm2239, %v3232, 0
      %4058 = vmatpush.msra.mxu0 0.0
      %4059 = vmatpush.msra.mxu0 0.0
      %4060 = vmatpush.msra.mxu0 0.0
      %4061 = vmatpush.msra.mxu0 0.0
      %4062 = vmatpush.msra.mxu0 0.0
      %4063 = vmatpush.msra.mxu0 0.0
      %4064 = vmatpush.msra.mxu0 0.0
      %4065 = vmatpush.msra.mxu0 0.0
      %4066 = vmatpush.msra.mxu0 0.0
      %4067 = vmatpush.msra.mxu0 0.0
      %4068 = vmatpush.msra.mxu0 0.0
      %4069 = vmatpush.msra.mxu0 0.0
      %4070 = vmatpush.msra.mxu0 %v4049
      %4071 = vmatpush.msra.mxu0 %v4048
      %4072 = vmatpush.msra.mxu0 %v4047
      %4073 = vmatpush.msra.mxu0 %v4046
      %4074 = vmatmul.f32.gmra.mxu0 %v4056
      %v4075 = vpop.f32.mrf.mxu0
      %v4076 = vadd.f32 %v4053, %v4075
      %4077 = vdwg.mxu0
      %v4078 = vmul.f32 %v4076, %v2489
      %s4079 = scalar_lea.vmem %s589, 4
      %4080 = vst.msk [vmem:[%s4079] sm:$0xf] %vm3064, %v4078
      %v4081 = vsel %vm3064, %v4078, -inf
      %v4082 = vrot.slane %v4081, 4
      %v4083 = vmax.f32 %v4081, %v4082
      %v4084 = vrot.slane %v4083, 2
      %v4085 = vmax.f32 %v4083, %v4084
      %v4086 = vrot.slane %v4085, 1
      %v4087 = vmax.f32 %v4085, %v4086
      %v4088 = vsub.f32 %v4078, %v4087
      %v4089 = vmul.f32 %v4088, 1.442695
      %v4090 = vpow.pop %v4089
      %v4091 = vsel %vm3064, %v4090, 0.0
      %v4092 = vrot.slane %v4091, 4
      %v4093 = vadd.f32 %v4091, %v4092
      %v4094 = vrot.slane %v4093, 2
      %v4095 = vadd.f32 %v4093, %v4094
      %v4096 = vrot.slane %v4095, 1
      %v4097 = vadd.f32 %v4095, %v4096
      %v4098 = vrcp.pop %v4097
      %v4099 = vmul.f32 %v4090, %v4098
      %s4100 = scalar_lea.vmem %s10, 32
      %v4101 = vld [vmem:[%s4100] sm:$0xff]
      %v4102 = vld [vmem:[%s4100 + $0x8] sm:$0xff]
      %v4103 = vld [vmem:[%s4100 + $0x10] sm:$0xff]
      %v4104 = vld [vmem:[%s4100 + $0x18] sm:$0xff]
      %v4105 = vmul.f32 %v4099, %v2489
      %s4106 = scalar_lea.vmem %s11, 32
      %v4107 = vld [vmem:[%s4106] sm:$0xff]
      %v4108 = vld [vmem:[%s4106 + $0x8] sm:$0xff]
      %v4109 = vld [vmem:[%s4106 + $0x10] sm:$0xff]
      %v4110 = vld [vmem:[%s4106 + $0x18] sm:$0xff]
      %4112 = vset.pattern.permute.xlu0 0
      %4113 = vperm.xlu0 %4112, %v4107
      %v4114 = vpop.permute.xlu0 %4113
      %4117 = vset.pattern.permute.xlu0 0
      %4118 = vperm.xlu0 %4117, %v4108
      %v4119 = vpop.permute.xlu0 %4118
      %4122 = vset.pattern.permute.xlu0 0
      %4123 = vperm.xlu0 %4122, %v4109
      %v4124 = vpop.permute.xlu0 %4123
      %4127 = vset.pattern.permute.xlu0 0
      %4128 = vperm.xlu0 %4127, %v4110
      %v4129 = vpop.permute.xlu0 %4128
      %v4132 = vsel %vm3114, %v4101, 0
      %v4135 = vsel %vm3114, %v4102, 0
      %v4138 = vsel %vm3114, %v4103, 0
      %v4141 = vsel %vm3114, %v4104, 0
      %v4144 = vsel %vm3127, %v4105, 0
      %4146 = vmatpush.msra.mxu0 0.0
      %4147 = vmatpush.msra.mxu0 0.0
      %4148 = vmatpush.msra.mxu0 0.0
      %4149 = vmatpush.msra.mxu0 0.0
      %4150 = vmatpush.msra.mxu0 0.0
      %4151 = vmatpush.msra.mxu0 0.0
      %4152 = vmatpush.msra.mxu0 0.0
      %4153 = vmatpush.msra.mxu0 0.0
      %4154 = vmatpush.msra.mxu0 0.0
      %4155 = vmatpush.msra.mxu0 0.0
      %4156 = vmatpush.msra.mxu0 0.0
      %4157 = vmatpush.msra.mxu0 0.0
      %4158 = vmatpush.msra.mxu0 0.0
      %4159 = vmatpush.msra.mxu0 0.0
      %4160 = vmatpush.msra.mxu0 0.0
      %4161 = vmatpush.msra.mxu0 %v4144
      %4162 = vmatmul.f32.gmra.mxu0 %v4132
      %v4163 = vpop.f32.mrf.mxu0
      %v4164 = vadd.f32 %v4114, %v4163
      %4165 = vmatmul.f32.gmra.mxu0 %v4135
      %v4166 = vpop.f32.mrf.mxu0
      %v4167 = vadd.f32 %v4119, %v4166
      %4168 = vmatmul.f32.gmra.mxu0 %v4138
      %v4169 = vpop.f32.mrf.mxu0
      %v4170 = vadd.f32 %v4124, %v4169
      %4171 = vmatmul.f32.gmra.mxu0 %v4141
      %v4172 = vpop.f32.mrf.mxu0
      %v4173 = vadd.f32 %v4129, %v4172
      %4174 = vdwg.mxu0
      %s4175 = scalar_lea.vmem %s12, 288
      %v4176 = vld [vmem:[%s4175] sm:$0xff]
      %v4177 = vld [vmem:[%s4175 + $0x8] sm:$0xff]
      %v4178 = vld [vmem:[%s4175 + $0x10] sm:$0xff]
      %v4179 = vld [vmem:[%s4175 + $0x18] sm:$0xff]
      %v4180 = vld [vmem:[%s4175 + $0x20] sm:$0xff]
      %v4181 = vld [vmem:[%s4175 + $0x28] sm:$0xff]
      %v4182 = vld [vmem:[%s4175 + $0x30] sm:$0xff]
      %v4183 = vld [vmem:[%s4175 + $0x38] sm:$0xff]
      %v4184 = vld [vmem:[%s4175 + $0x40] sm:$0xff]
      %v4185 = vld [vmem:[%s4175 + $0x48] sm:$0xff]
      %v4186 = vld [vmem:[%s4175 + $0x50] sm:$0xff]
      %v4187 = vld [vmem:[%s4175 + $0x58] sm:$0xff]
      %v4188 = vld [vmem:[%s4175 + $0x60] sm:$0xff]
      %v4189 = vld [vmem:[%s4175 + $0x68] sm:$0xff]
      %v4190 = vld [vmem:[%s4175 + $0x70] sm:$0xff]
      %v4191 = vld [vmem:[%s4175 + $0x78] sm:$0xff]
      %v4192 = vld [vmem:[%s4175 + $0x80] sm:$0xff]
      %v4193 = vld [vmem:[%s4175 + $0x88] sm:$0xff]
      %v4194 = vld [vmem:[%s4175 + $0x90] sm:$0xff]
      %v4195 = vld [vmem:[%s4175 + $0x98] sm:$0xff]
      %v4196 = vld [vmem:[%s4175 + $0xa0] sm:$0xff]
      %v4197 = vld [vmem:[%s4175 + $0xa8] sm:$0xff]
      %v4198 = vld [vmem:[%s4175 + $0xb0] sm:$0xff]
      %v4199 = vld [vmem:[%s4175 + $0xb8] sm:$0xff]
      %v4200 = vld [vmem:[%s4175 + $0xc0] sm:$0xff]
      %v4201 = vld [vmem:[%s4175 + $0xc8] sm:$0xff]
      %v4202 = vld [vmem:[%s4175 + $0xd0] sm:$0xff]
      %v4203 = vld [vmem:[%s4175 + $0xd8] sm:$0xff]
      %v4204 = vld [vmem:[%s4175 + $0xe0] sm:$0xff]
      %v4205 = vld [vmem:[%s4175 + $0xe8] sm:$0xff]
      %v4206 = vld [vmem:[%s4175 + $0xf0] sm:$0xff]
      %v4207 = vld [vmem:[%s4175 + $0xf8] sm:$0xff]
      %v4208 = vld [vmem:[%s4175 + $0x100] sm:$0xff]
      %v4209 = vld [vmem:[%s4175 + $0x108] sm:$0xff]
      %v4210 = vld [vmem:[%s4175 + $0x110] sm:$0xff]
      %v4211 = vld [vmem:[%s4175 + $0x118] sm:$0xff]
      %s4212 = scalar_lea.vmem %s13, 96
      %v4213 = vld [vmem:[%s4212] sm:$0xff]
      %v4214 = vld [vmem:[%s4212 + $0x8] sm:$0xff]
      %v4215 = vld [vmem:[%s4212 + $0x10] sm:$0xff]
      %v4216 = vld [vmem:[%s4212 + $0x18] sm:$0xff]
      %v4217 = vld [vmem:[%s4212 + $0x20] sm:$0xff]
      %v4218 = vld [vmem:[%s4212 + $0x28] sm:$0xff]
      %v4219 = vld [vmem:[%s4212 + $0x30] sm:$0xff]
      %v4220 = vld [vmem:[%s4212 + $0x38] sm:$0xff]
      %v4221 = vld [vmem:[%s4212 + $0x40] sm:$0xff]
      %v4222 = vld [vmem:[%s4212 + $0x48] sm:$0xff]
      %v4223 = vld [vmem:[%s4212 + $0x50] sm:$0xff]
      %v4224 = vld [vmem:[%s4212 + $0x58] sm:$0xff]
      %s4225 = scalar_lea.vmem %s14, 96
      %v4226 = vld [vmem:[%s4225] sm:$0xff]
      %v4227 = vld [vmem:[%s4225 + $0x8] sm:$0xff]
      %v4228 = vld [vmem:[%s4225 + $0x10] sm:$0xff]
      %v4229 = vld [vmem:[%s4225 + $0x18] sm:$0xff]
      %v4230 = vld [vmem:[%s4225 + $0x20] sm:$0xff]
      %v4231 = vld [vmem:[%s4225 + $0x28] sm:$0xff]
      %v4232 = vld [vmem:[%s4225 + $0x30] sm:$0xff]
      %v4233 = vld [vmem:[%s4225 + $0x38] sm:$0xff]
      %v4234 = vld [vmem:[%s4225 + $0x40] sm:$0xff]
      %v4235 = vld [vmem:[%s4225 + $0x48] sm:$0xff]
      %v4236 = vld [vmem:[%s4225 + $0x50] sm:$0xff]
      %v4237 = vld [vmem:[%s4225 + $0x58] sm:$0xff]
      %s4238 = scalar_lea.vmem %s15, 96
      %v4239 = vld [vmem:[%s4238] sm:$0xff]
      %v4240 = vld [vmem:[%s4238 + $0x8] sm:$0xff]
      %v4241 = vld [vmem:[%s4238 + $0x10] sm:$0xff]
      %v4242 = vld [vmem:[%s4238 + $0x18] sm:$0xff]
      %v4243 = vld [vmem:[%s4238 + $0x20] sm:$0xff]
      %v4244 = vld [vmem:[%s4238 + $0x28] sm:$0xff]
      %v4245 = vld [vmem:[%s4238 + $0x30] sm:$0xff]
      %v4246 = vld [vmem:[%s4238 + $0x38] sm:$0xff]
      %v4247 = vld [vmem:[%s4238 + $0x40] sm:$0xff]
      %v4248 = vld [vmem:[%s4238 + $0x48] sm:$0xff]
      %v4249 = vld [vmem:[%s4238 + $0x50] sm:$0xff]
      %v4250 = vld [vmem:[%s4238 + $0x58] sm:$0xff]
      %s4251 = scalar_lea.vmem %s16, 4
      %v4252 = vld [vmem:[%s4251] sm:$0xf]
      %s4253 = scalar_lea.vmem %s17, 4
      %v4254 = vld [vmem:[%s4253] sm:$0xf]
      %4259 = vrot.lane.b32.xlu0 %v4164, 4
      %v4260 = vpop.permute.xlu0 %4259
      %4261 = vrot.lane.b32.xlu0 %v4167, 4
      %v4262 = vpop.permute.xlu0 %4261
      %4263 = vrot.lane.b32.xlu0 %v4170, 4
      %v4264 = vpop.permute.xlu0 %4263
      %4265 = vrot.lane.b32.xlu0 %v4173, 4
      %v4266 = vpop.permute.xlu0 %4265
      %4271 = vst.msk [vmem:[#allocation2] sm:$0xff] %vm2230, %v4260
      %4272 = vst.msk [vmem:[#allocation2 + $0x8] sm:$0xff] %vm2230, %v4262
      %4273 = vst.msk [vmem:[#allocation2 + $0x10] sm:$0xff] %vm2230, %v4264
      %4274 = vst.msk [vmem:[#allocation2 + $0x18] sm:$0xff] %vm2230, %v4266
      %v4275 = vld [vmem:[#allocation2] sm:$0xff]
      %v4276 = vld [vmem:[#allocation2 + $0x8] sm:$0xff]
      %v4277 = vld [vmem:[#allocation2 + $0x10] sm:$0xff]
      %v4278 = vld [vmem:[#allocation2 + $0x18] sm:$0xff]
      %v4280 = vsel %vm2239, %v4180, 0
      %v4283 = vsel %vm2239, %v4181, 0
      %v4286 = vsel %vm2239, %v4182, 0
      %v4289 = vsel %vm2239, %v4183, 0
      %4291 = vmatpush.msra.mxu0 0.0
      %4292 = vmatpush.msra.mxu0 0.0
      %4293 = vmatpush.msra.mxu0 0.0
      %4294 = vmatpush.msra.mxu0 0.0
      %4295 = vmatpush.msra.mxu0 0.0
      %4296 = vmatpush.msra.mxu0 0.0
      %4297 = vmatpush.msra.mxu0 0.0
      %4298 = vmatpush.msra.mxu0 0.0
      %4299 = vmatpush.msra.mxu0 0.0
      %4300 = vmatpush.msra.mxu0 0.0
      %4301 = vmatpush.msra.mxu0 0.0
      %4302 = vmatpush.msra.mxu0 0.0
      %4303 = vmatpush.msra.mxu0 %v4173
      %4304 = vmatpush.msra.mxu0 %v4170
      %4305 = vmatpush.msra.mxu0 %v4167
      %4306 = vmatpush.msra.mxu0 %v4164
      %4307 = vmatmul.f32.gmra.mxu0 %v4280
      %v4308 = vpop.f32.mrf.mxu0
      %v4309 = vadd.f32 0.0, %v4308
      %4310 = vmatmul.f32.gmra.mxu0 %v4283
      %v4311 = vpop.f32.mrf.mxu0
      %v4312 = vadd.f32 0.0, %v4311
      %4313 = vmatmul.f32.gmra.mxu0 %v4286
      %v4314 = vpop.f32.mrf.mxu0
      %v4315 = vadd.f32 0.0, %v4314
      %4316 = vmatmul.f32.gmra.mxu0 %v4289
      %v4317 = vpop.f32.mrf.mxu0
      %v4318 = vadd.f32 0.0, %v4317
      %4319 = vdwg.mxu0
      %4324 = vrot.lane.b32.xlu0 %v4275, 125
      %v4325 = vpop.permute.xlu0 %4324
      %4326 = vrot.lane.b32.xlu0 %v4276, 125
      %v4327 = vpop.permute.xlu0 %4326
      %4328 = vrot.lane.b32.xlu0 %v4277, 125
      %v4329 = vpop.permute.xlu0 %4328
      %4330 = vrot.lane.b32.xlu0 %v4278, 125
      %v4331 = vpop.permute.xlu0 %4330
      %v4337 = vsel %vm2239, %v4176, 0
      %v4340 = vsel %vm2239, %v4177, 0
      %v4343 = vsel %vm2239, %v4178, 0
      %v4346 = vsel %vm2239, %v4179, 0
      %4348 = vmatpush.msra.mxu0 0.0
      %4349 = vmatpush.msra.mxu0 0.0
      %4350 = vmatpush.msra.mxu0 0.0
      %4351 = vmatpush.msra.mxu0 0.0
      %4352 = vmatpush.msra.mxu0 0.0
      %4353 = vmatpush.msra.mxu0 0.0
      %4354 = vmatpush.msra.mxu0 0.0
      %4355 = vmatpush.msra.mxu0 0.0
      %4356 = vmatpush.msra.mxu0 0.0
      %4357 = vmatpush.msra.mxu0 0.0
      %4358 = vmatpush.msra.mxu0 0.0
      %4359 = vmatpush.msra.mxu0 0.0
      %4360 = vmatpush.msra.mxu0 %v4331
      %4361 = vmatpush.msra.mxu0 %v4329
      %4362 = vmatpush.msra.mxu0 %v4327
      %4363 = vmatpush.msra.mxu0 %v4325
      %4364 = vmatmul.f32.gmra.mxu0 %v4337
      %v4365 = vpop.f32.mrf.mxu0
      %v4366 = vadd.f32 %v4309, %v4365
      %4367 = vmatmul.f32.gmra.mxu0 %v4340
      %v4368 = vpop.f32.mrf.mxu0
      %v4369 = vadd.f32 %v4312, %v4368
      %4370 = vmatmul.f32.gmra.mxu0 %v4343
      %v4371 = vpop.f32.mrf.mxu0
      %v4372 = vadd.f32 %v4315, %v4371
      %4373 = vmatmul.f32.gmra.mxu0 %v4346
      %v4374 = vpop.f32.mrf.mxu0
      %v4375 = vadd.f32 %v4318, %v4374
      %4376 = vdwg.mxu0
      %4377 = vrot.lane.b32.xlu0 %v4275, 123
      %v4378 = vpop.permute.xlu0 %4377
      %4379 = vrot.lane.b32.xlu0 %v4276, 123
      %v4380 = vpop.permute.xlu0 %4379
      %4381 = vrot.lane.b32.xlu0 %v4277, 123
      %v4382 = vpop.permute.xlu0 %4381
      %4383 = vrot.lane.b32.xlu0 %v4278, 123
      %v4384 = vpop.permute.xlu0 %4383
      %v4390 = vsel %vm2239, %v4184, 0
      %v4393 = vsel %vm2239, %v4185, 0
      %v4396 = vsel %vm2239, %v4186, 0
      %v4399 = vsel %vm2239, %v4187, 0
      %4401 = vmatpush.msra.mxu0 0.0
      %4402 = vmatpush.msra.mxu0 0.0
      %4403 = vmatpush.msra.mxu0 0.0
      %4404 = vmatpush.msra.mxu0 0.0
      %4405 = vmatpush.msra.mxu0 0.0
      %4406 = vmatpush.msra.mxu0 0.0
      %4407 = vmatpush.msra.mxu0 0.0
      %4408 = vmatpush.msra.mxu0 0.0
      %4409 = vmatpush.msra.mxu0 0.0
      %4410 = vmatpush.msra.mxu0 0.0
      %4411 = vmatpush.msra.mxu0 0.0
      %4412 = vmatpush.msra.mxu0 0.0
      %4413 = vmatpush.msra.mxu0 %v4384
      %4414 = vmatpush.msra.mxu0 %v4382
      %4415 = vmatpush.msra.mxu0 %v4380
      %4416 = vmatpush.msra.mxu0 %v4378
      %4417 = vmatmul.f32.gmra.mxu0 %v4390
      %v4418 = vpop.f32.mrf.mxu0
      %v4419 = vadd.f32 0.0, %v4418
      %4420 = vmatmul.f32.gmra.mxu0 %v4393
      %v4421 = vpop.f32.mrf.mxu0
      %v4422 = vadd.f32 0.0, %v4421
      %4423 = vmatmul.f32.gmra.mxu0 %v4396
      %v4424 = vpop.f32.mrf.mxu0
      %v4425 = vadd.f32 0.0, %v4424
      %4426 = vmatmul.f32.gmra.mxu0 %v4399
      %v4427 = vpop.f32.mrf.mxu0
      %v4428 = vadd.f32 0.0, %v4427
      %4429 = vdwg.mxu0
      %v4430 = vadd.f32 %v4366, %v4419
      %v4431 = vadd.f32 %v4369, %v4422
      %v4432 = vadd.f32 %v4372, %v4425
      %v4433 = vadd.f32 %v4375, %v4428
      %4435 = vset.pattern.permute.xlu0 0
      %4436 = vperm.xlu0 %4435, %v4213
      %v4437 = vpop.permute.xlu0 %4436
      %4440 = vset.pattern.permute.xlu0 0
      %4441 = vperm.xlu0 %4440, %v4214
      %v4442 = vpop.permute.xlu0 %4441
      %4445 = vset.pattern.permute.xlu0 0
      %4446 = vperm.xlu0 %4445, %v4215
      %v4447 = vpop.permute.xlu0 %4446
      %4450 = vset.pattern.permute.xlu0 0
      %4451 = vperm.xlu0 %4450, %v4216
      %v4452 = vpop.permute.xlu0 %4451
      %v4454 = vadd.f32 %v4430, %v4437
      %v4455 = vadd.f32 %v4431, %v4442
      %v4456 = vadd.f32 %v4432, %v4447
      %v4457 = vadd.f32 %v4433, %v4452
      %v4458 = vmax.f32 %v4454, 0.0
      %v4459 = vmax.f32 %v4455, 0.0
      %v4460 = vmax.f32 %v4456, 0.0
      %v4461 = vmax.f32 %v4457, 0.0
      %4463 = vset.pattern.permute.xlu0 0
      %4464 = vperm.xlu0 %4463, %v4239
      %v4465 = vpop.permute.xlu0 %4464
      %4468 = vset.pattern.permute.xlu0 0
      %4469 = vperm.xlu0 %4468, %v4240
      %v4470 = vpop.permute.xlu0 %4469
      %4473 = vset.pattern.permute.xlu0 0
      %4474 = vperm.xlu0 %4473, %v4241
      %v4475 = vpop.permute.xlu0 %4474
      %4478 = vset.pattern.permute.xlu0 0
      %4479 = vperm.xlu0 %4478, %v4242
      %v4480 = vpop.permute.xlu0 %4479
      %v4483 = vsel %vm2239, %v4226, 0
      %v4486 = vsel %vm2239, %v4227, 0
      %v4489 = vsel %vm2239, %v4228, 0
      %v4492 = vsel %vm2239, %v4229, 0
      %4494 = vmatpush.msra.mxu0 0.0
      %4495 = vmatpush.msra.mxu0 0.0
      %4496 = vmatpush.msra.mxu0 0.0
      %4497 = vmatpush.msra.mxu0 0.0
      %4498 = vmatpush.msra.mxu0 0.0
      %4499 = vmatpush.msra.mxu0 0.0
      %4500 = vmatpush.msra.mxu0 0.0
      %4501 = vmatpush.msra.mxu0 0.0
      %4502 = vmatpush.msra.mxu0 0.0
      %4503 = vmatpush.msra.mxu0 0.0
      %4504 = vmatpush.msra.mxu0 0.0
      %4505 = vmatpush.msra.mxu0 0.0
      %4506 = vmatpush.msra.mxu0 %v4461
      %4507 = vmatpush.msra.mxu0 %v4460
      %4508 = vmatpush.msra.mxu0 %v4459
      %4509 = vmatpush.msra.mxu0 %v4458
      %4510 = vmatmul.f32.gmra.mxu0 %v4483
      %v4511 = vpop.f32.mrf.mxu0
      %v4512 = vadd.f32 %v4465, %v4511
      %4513 = vmatmul.f32.gmra.mxu0 %v4486
      %v4514 = vpop.f32.mrf.mxu0
      %v4515 = vadd.f32 %v4470, %v4514
      %4516 = vmatmul.f32.gmra.mxu0 %v4489
      %v4517 = vpop.f32.mrf.mxu0
      %v4518 = vadd.f32 %v4475, %v4517
      %4519 = vmatmul.f32.gmra.mxu0 %v4492
      %v4520 = vpop.f32.mrf.mxu0
      %v4521 = vadd.f32 %v4480, %v4520
      %4522 = vdwg.mxu0
      %v4523 = vadd.f32 %v4164, %v4512
      %v4524 = vadd.f32 %v4167, %v4515
      %v4525 = vadd.f32 %v4170, %v4518
      %v4526 = vadd.f32 %v4173, %v4521
      %v4527 = vmul.f32 %v4523, %v2489
      %v4528 = vmul.f32 %v4524, %v2489
      %v4529 = vmul.f32 %v4525, %v2489
      %v4530 = vmul.f32 %v4526, %v2489
      %4535 = vrot.lane.b32.xlu0 %v4527, 4
      %v4536 = vpop.permute.xlu0 %4535
      %4537 = vrot.lane.b32.xlu0 %v4528, 4
      %v4538 = vpop.permute.xlu0 %4537
      %4539 = vrot.lane.b32.xlu0 %v4529, 4
      %v4540 = vpop.permute.xlu0 %4539
      %4541 = vrot.lane.b32.xlu0 %v4530, 4
      %v4542 = vpop.permute.xlu0 %4541
      %4547 = vst.msk [vmem:[#allocation2] sm:$0xff] %vm2230, %v4536
      %4548 = vst.msk [vmem:[#allocation2 + $0x8] sm:$0xff] %vm2230, %v4538
      %4549 = vst.msk [vmem:[#allocation2 + $0x10] sm:$0xff] %vm2230, %v4540
      %4550 = vst.msk [vmem:[#allocation2 + $0x18] sm:$0xff] %vm2230, %v4542
      %v4551 = vld [vmem:[#allocation2] sm:$0xff]
      %v4552 = vld [vmem:[#allocation2 + $0x8] sm:$0xff]
      %v4553 = vld [vmem:[#allocation2 + $0x10] sm:$0xff]
      %v4554 = vld [vmem:[#allocation2 + $0x18] sm:$0xff]
      %v4556 = vsel %vm2239, %v4192, 0
      %v4559 = vsel %vm2239, %v4193, 0
      %v4562 = vsel %vm2239, %v4194, 0
      %v4565 = vsel %vm2239, %v4195, 0
      %4567 = vmatpush.msra.mxu0 0.0
      %4568 = vmatpush.msra.mxu0 0.0
      %4569 = vmatpush.msra.mxu0 0.0
      %4570 = vmatpush.msra.mxu0 0.0
      %4571 = vmatpush.msra.mxu0 0.0
      %4572 = vmatpush.msra.mxu0 0.0
      %4573 = vmatpush.msra.mxu0 0.0
      %4574 = vmatpush.msra.mxu0 0.0
      %4575 = vmatpush.msra.mxu0 0.0
      %4576 = vmatpush.msra.mxu0 0.0
      %4577 = vmatpush.msra.mxu0 0.0
      %4578 = vmatpush.msra.mxu0 0.0
      %4579 = vmatpush.msra.mxu0 %v4530
      %4580 = vmatpush.msra.mxu0 %v4529
      %4581 = vmatpush.msra.mxu0 %v4528
      %4582 = vmatpush.msra.mxu0 %v4527
      %4583 = vmatmul.f32.gmra.mxu0 %v4556
      %v4584 = vpop.f32.mrf.mxu0
      %v4585 = vadd.f32 0.0, %v4584
      %4586 = vmatmul.f32.gmra.mxu0 %v4559
      %v4587 = vpop.f32.mrf.mxu0
      %v4588 = vadd.f32 0.0, %v4587
      %4589 = vmatmul.f32.gmra.mxu0 %v4562
      %v4590 = vpop.f32.mrf.mxu0
      %v4591 = vadd.f32 0.0, %v4590
      %4592 = vmatmul.f32.gmra.mxu0 %v4565
      %v4593 = vpop.f32.mrf.mxu0
      %v4594 = vadd.f32 0.0, %v4593
      %4595 = vdwg.mxu0
      %4600 = vrot.lane.b32.xlu0 %v4551, 126
      %v4601 = vpop.permute.xlu0 %4600
      %4602 = vrot.lane.b32.xlu0 %v4552, 126
      %v4603 = vpop.permute.xlu0 %4602
      %4604 = vrot.lane.b32.xlu0 %v4553, 126
      %v4605 = vpop.permute.xlu0 %4604
      %4606 = vrot.lane.b32.xlu0 %v4554, 126
      %v4607 = vpop.permute.xlu0 %4606
      %v4613 = vsel %vm2239, %v4188, 0
      %v4616 = vsel %vm2239, %v4189, 0
      %v4619 = vsel %vm2239, %v4190, 0
      %v4622 = vsel %vm2239, %v4191, 0
      %4624 = vmatpush.msra.mxu0 0.0
      %4625 = vmatpush.msra.mxu0 0.0
      %4626 = vmatpush.msra.mxu0 0.0
      %4627 = vmatpush.msra.mxu0 0.0
      %4628 = vmatpush.msra.mxu0 0.0
      %4629 = vmatpush.msra.mxu0 0.0
      %4630 = vmatpush.msra.mxu0 0.0
      %4631 = vmatpush.msra.mxu0 0.0
      %4632 = vmatpush.msra.mxu0 0.0
      %4633 = vmatpush.msra.mxu0 0.0
      %4634 = vmatpush.msra.mxu0 0.0
      %4635 = vmatpush.msra.mxu0 0.0
      %4636 = vmatpush.msra.mxu0 %v4607
      %4637 = vmatpush.msra.mxu0 %v4605
      %4638 = vmatpush.msra.mxu0 %v4603
      %4639 = vmatpush.msra.mxu0 %v4601
      %4640 = vmatmul.f32.gmra.mxu0 %v4613
      %v4641 = vpop.f32.mrf.mxu0
      %v4642 = vadd.f32 %v4585, %v4641
      %4643 = vmatmul.f32.gmra.mxu0 %v4616
      %v4644 = vpop.f32.mrf.mxu0
      %v4645 = vadd.f32 %v4588, %v4644
      %4646 = vmatmul.f32.gmra.mxu0 %v4619
      %v4647 = vpop.f32.mrf.mxu0
      %v4648 = vadd.f32 %v4591, %v4647
      %4649 = vmatmul.f32.gmra.mxu0 %v4622
      %v4650 = vpop.f32.mrf.mxu0
      %v4651 = vadd.f32 %v4594, %v4650
      %4652 = vdwg.mxu0
      %4653 = vrot.lane.b32.xlu0 %v4551, 122
      %v4654 = vpop.permute.xlu0 %4653
      %4655 = vrot.lane.b32.xlu0 %v4552, 122
      %v4656 = vpop.permute.xlu0 %4655
      %4657 = vrot.lane.b32.xlu0 %v4553, 122
      %v4658 = vpop.permute.xlu0 %4657
      %4659 = vrot.lane.b32.xlu0 %v4554, 122
      %v4660 = vpop.permute.xlu0 %4659
      %v4666 = vsel %vm2239, %v4196, 0
      %v4669 = vsel %vm2239, %v4197, 0
      %v4672 = vsel %vm2239, %v4198, 0
      %v4675 = vsel %vm2239, %v4199, 0
      %4677 = vmatpush.msra.mxu0 0.0
      %4678 = vmatpush.msra.mxu0 0.0
      %4679 = vmatpush.msra.mxu0 0.0
      %4680 = vmatpush.msra.mxu0 0.0
      %4681 = vmatpush.msra.mxu0 0.0
      %4682 = vmatpush.msra.mxu0 0.0
      %4683 = vmatpush.msra.mxu0 0.0
      %4684 = vmatpush.msra.mxu0 0.0
      %4685 = vmatpush.msra.mxu0 0.0
      %4686 = vmatpush.msra.mxu0 0.0
      %4687 = vmatpush.msra.mxu0 0.0
      %4688 = vmatpush.msra.mxu0 0.0
      %4689 = vmatpush.msra.mxu0 %v4660
      %4690 = vmatpush.msra.mxu0 %v4658
      %4691 = vmatpush.msra.mxu0 %v4656
      %4692 = vmatpush.msra.mxu0 %v4654
      %4693 = vmatmul.f32.gmra.mxu0 %v4666
      %v4694 = vpop.f32.mrf.mxu0
      %v4695 = vadd.f32 0.0, %v4694
      %4696 = vmatmul.f32.gmra.mxu0 %v4669
      %v4697 = vpop.f32.mrf.mxu0
      %v4698 = vadd.f32 0.0, %v4697
      %4699 = vmatmul.f32.gmra.mxu0 %v4672
      %v4700 = vpop.f32.mrf.mxu0
      %v4701 = vadd.f32 0.0, %v4700
      %4702 = vmatmul.f32.gmra.mxu0 %v4675
      %v4703 = vpop.f32.mrf.mxu0
      %v4704 = vadd.f32 0.0, %v4703
      %4705 = vdwg.mxu0
      %v4706 = vadd.f32 %v4642, %v4695
      %v4707 = vadd.f32 %v4645, %v4698
      %v4708 = vadd.f32 %v4648, %v4701
      %v4709 = vadd.f32 %v4651, %v4704
      %4711 = vset.pattern.permute.xlu0 0
      %4712 = vperm.xlu0 %4711, %v4217
      %v4713 = vpop.permute.xlu0 %4712
      %4716 = vset.pattern.permute.xlu0 0
      %4717 = vperm.xlu0 %4716, %v4218
      %v4718 = vpop.permute.xlu0 %4717
      %4721 = vset.pattern.permute.xlu0 0
      %4722 = vperm.xlu0 %4721, %v4219
      %v4723 = vpop.permute.xlu0 %4722
      %4726 = vset.pattern.permute.xlu0 0
      %4727 = vperm.xlu0 %4726, %v4220
      %v4728 = vpop.permute.xlu0 %4727
      %v4730 = vadd.f32 %v4706, %v4713
      %v4731 = vadd.f32 %v4707, %v4718
      %v4732 = vadd.f32 %v4708, %v4723
      %v4733 = vadd.f32 %v4709, %v4728
      %v4734 = vmax.f32 %v4730, 0.0
      %v4735 = vmax.f32 %v4731, 0.0
      %v4736 = vmax.f32 %v4732, 0.0
      %v4737 = vmax.f32 %v4733, 0.0
      %4739 = vset.pattern.permute.xlu0 0
      %4740 = vperm.xlu0 %4739, %v4243
      %v4741 = vpop.permute.xlu0 %4740
      %4744 = vset.pattern.permute.xlu0 0
      %4745 = vperm.xlu0 %4744, %v4244
      %v4746 = vpop.permute.xlu0 %4745
      %4749 = vset.pattern.permute.xlu0 0
      %4750 = vperm.xlu0 %4749, %v4245
      %v4751 = vpop.permute.xlu0 %4750
      %4754 = vset.pattern.permute.xlu0 0
      %4755 = vperm.xlu0 %4754, %v4246
      %v4756 = vpop.permute.xlu0 %4755
      %v4759 = vsel %vm2239, %v4230, 0
      %v4762 = vsel %vm2239, %v4231, 0
      %v4765 = vsel %vm2239, %v4232, 0
      %v4768 = vsel %vm2239, %v4233, 0
      %4770 = vmatpush.msra.mxu0 0.0
      %4771 = vmatpush.msra.mxu0 0.0
      %4772 = vmatpush.msra.mxu0 0.0
      %4773 = vmatpush.msra.mxu0 0.0
      %4774 = vmatpush.msra.mxu0 0.0
      %4775 = vmatpush.msra.mxu0 0.0
      %4776 = vmatpush.msra.mxu0 0.0
      %4777 = vmatpush.msra.mxu0 0.0
      %4778 = vmatpush.msra.mxu0 0.0
      %4779 = vmatpush.msra.mxu0 0.0
      %4780 = vmatpush.msra.mxu0 0.0
      %4781 = vmatpush.msra.mxu0 0.0
      %4782 = vmatpush.msra.mxu0 %v4737
      %4783 = vmatpush.msra.mxu0 %v4736
      %4784 = vmatpush.msra.mxu0 %v4735
      %4785 = vmatpush.msra.mxu0 %v4734
      %4786 = vmatmul.f32.gmra.mxu0 %v4759
      %v4787 = vpop.f32.mrf.mxu0
      %v4788 = vadd.f32 %v4741, %v4787
      %4789 = vmatmul.f32.gmra.mxu0 %v4762
      %v4790 = vpop.f32.mrf.mxu0
      %v4791 = vadd.f32 %v4746, %v4790
      %4792 = vmatmul.f32.gmra.mxu0 %v4765
      %v4793 = vpop.f32.mrf.mxu0
      %v4794 = vadd.f32 %v4751, %v4793
      %4795 = vmatmul.f32.gmra.mxu0 %v4768
      %v4796 = vpop.f32.mrf.mxu0
      %v4797 = vadd.f32 %v4756, %v4796
      %4798 = vdwg.mxu0
      %v4799 = vadd.f32 %v4527, %v4788
      %v4800 = vadd.f32 %v4528, %v4791
      %v4801 = vadd.f32 %v4529, %v4794
      %v4802 = vadd.f32 %v4530, %v4797
      %v4803 = vmul.f32 %v4799, %v2489
      %v4804 = vmul.f32 %v4800, %v2489
      %v4805 = vmul.f32 %v4801, %v2489
      %v4806 = vmul.f32 %v4802, %v2489
      %4811 = vrot.lane.b32.xlu0 %v4803, 4
      %v4812 = vpop.permute.xlu0 %4811
      %4813 = vrot.lane.b32.xlu0 %v4804, 4
      %v4814 = vpop.permute.xlu0 %4813
      %4815 = vrot.lane.b32.xlu0 %v4805, 4
      %v4816 = vpop.permute.xlu0 %4815
      %4817 = vrot.lane.b32.xlu0 %v4806, 4
      %v4818 = vpop.permute.xlu0 %4817
      %4823 = vst.msk [vmem:[#allocation2] sm:$0xff] %vm2230, %v4812
      %4824 = vst.msk [vmem:[#allocation2 + $0x8] sm:$0xff] %vm2230, %v4814
      %4825 = vst.msk [vmem:[#allocation2 + $0x10] sm:$0xff] %vm2230, %v4816
      %4826 = vst.msk [vmem:[#allocation2 + $0x18] sm:$0xff] %vm2230, %v4818
      %v4827 = vld [vmem:[#allocation2] sm:$0xff]
      %v4828 = vld [vmem:[#allocation2 + $0x8] sm:$0xff]
      %v4829 = vld [vmem:[#allocation2 + $0x10] sm:$0xff]
      %v4830 = vld [vmem:[#allocation2 + $0x18] sm:$0xff]
      %v4832 = vsel %vm2239, %v4204, 0
      %v4835 = vsel %vm2239, %v4205, 0
      %v4838 = vsel %vm2239, %v4206, 0
      %v4841 = vsel %vm2239, %v4207, 0
      %4843 = vmatpush.msra.mxu0 0.0
      %4844 = vmatpush.msra.mxu0 0.0
      %4845 = vmatpush.msra.mxu0 0.0
      %4846 = vmatpush.msra.mxu0 0.0
      %4847 = vmatpush.msra.mxu0 0.0
      %4848 = vmatpush.msra.mxu0 0.0
      %4849 = vmatpush.msra.mxu0 0.0
      %4850 = vmatpush.msra.mxu0 0.0
      %4851 = vmatpush.msra.mxu0 0.0
      %4852 = vmatpush.msra.mxu0 0.0
      %4853 = vmatpush.msra.mxu0 0.0
      %4854 = vmatpush.msra.mxu0 0.0
      %4855 = vmatpush.msra.mxu0 %v4806
      %4856 = vmatpush.msra.mxu0 %v4805
      %4857 = vmatpush.msra.mxu0 %v4804
      %4858 = vmatpush.msra.mxu0 %v4803
      %4859 = vmatmul.f32.gmra.mxu0 %v4832
      %v4860 = vpop.f32.mrf.mxu0
      %v4861 = vadd.f32 0.0, %v4860
      %4862 = vmatmul.f32.gmra.mxu0 %v4835
      %v4863 = vpop.f32.mrf.mxu0
      %v4864 = vadd.f32 0.0, %v4863
      %4865 = vmatmul.f32.gmra.mxu0 %v4838
      %v4866 = vpop.f32.mrf.mxu0
      %v4867 = vadd.f32 0.0, %v4866
      %4868 = vmatmul.f32.gmra.mxu0 %v4841
      %v4869 = vpop.f32.mrf.mxu0
      %v4870 = vadd.f32 0.0, %v4869
      %4871 = vdwg.mxu0
      %v4873 = vsel %vm2239, %v4200, 0
      %v4876 = vsel %vm2239, %v4201, 0
      %v4879 = vsel %vm2239, %v4202, 0
      %v4882 = vsel %vm2239, %v4203, 0
      %4884 = vmatpush.msra.mxu0 0.0
      %4885 = vmatpush.msra.mxu0 0.0
      %4886 = vmatpush.msra.mxu0 0.0
      %4887 = vmatpush.msra.mxu0 0.0
      %4888 = vmatpush.msra.mxu0 0.0
      %4889 = vmatpush.msra.mxu0 0.0
      %4890 = vmatpush.msra.mxu0 0.0
      %4891 = vmatpush.msra.mxu0 0.0
      %4892 = vmatpush.msra.mxu0 0.0
      %4893 = vmatpush.msra.mxu0 0.0
      %4894 = vmatpush.msra.mxu0 0.0
      %4895 = vmatpush.msra.mxu0 0.0
      %4896 = vmatpush.msra.mxu0 %v4830
      %4897 = vmatpush.msra.mxu0 %v4829
      %4898 = vmatpush.msra.mxu0 %v4828
      %4899 = vmatpush.msra.mxu0 %v4827
      %4900 = vmatmul.f32.gmra.mxu0 %v4873
      %v4901 = vpop.f32.mrf.mxu0
      %v4902 = vadd.f32 %v4861, %v4901
      %4903 = vmatmul.f32.gmra.mxu0 %v4876
      %v4904 = vpop.f32.mrf.mxu0
      %v4905 = vadd.f32 %v4864, %v4904
      %4906 = vmatmul.f32.gmra.mxu0 %v4879
      %v4907 = vpop.f32.mrf.mxu0
      %v4908 = vadd.f32 %v4867, %v4907
      %4909 = vmatmul.f32.gmra.mxu0 %v4882
      %v4910 = vpop.f32.mrf.mxu0
      %v4911 = vadd.f32 %v4870, %v4910
      %4912 = vdwg.mxu0
      %4917 = vrot.lane.b32.xlu0 %v4827, 120
      %v4918 = vpop.permute.xlu0 %4917
      %4919 = vrot.lane.b32.xlu0 %v4828, 120
      %v4920 = vpop.permute.xlu0 %4919
      %4921 = vrot.lane.b32.xlu0 %v4829, 120
      %v4922 = vpop.permute.xlu0 %4921
      %4923 = vrot.lane.b32.xlu0 %v4830, 120
      %v4924 = vpop.permute.xlu0 %4923
      %v4930 = vsel %vm2239, %v4208, 0
      %v4933 = vsel %vm2239, %v4209, 0
      %v4936 = vsel %vm2239, %v4210, 0
      %v4939 = vsel %vm2239, %v4211, 0
      %4941 = vmatpush.msra.mxu0 0.0
      %4942 = vmatpush.msra.mxu0 0.0
      %4943 = vmatpush.msra.mxu0 0.0
      %4944 = vmatpush.msra.mxu0 0.0
      %4945 = vmatpush.msra.mxu0 0.0
      %4946 = vmatpush.msra.mxu0 0.0
      %4947 = vmatpush.msra.mxu0 0.0
      %4948 = vmatpush.msra.mxu0 0.0
      %4949 = vmatpush.msra.mxu0 0.0
      %4950 = vmatpush.msra.mxu0 0.0
      %4951 = vmatpush.msra.mxu0 0.0
      %4952 = vmatpush.msra.mxu0 0.0
      %4953 = vmatpush.msra.mxu0 %v4924
      %4954 = vmatpush.msra.mxu0 %v4922
      %4955 = vmatpush.msra.mxu0 %v4920
      %4956 = vmatpush.msra.mxu0 %v4918
      %4957 = vmatmul.f32.gmra.mxu0 %v4930
      %v4958 = vpop.f32.mrf.mxu0
      %v4959 = vadd.f32 0.0, %v4958
      %4960 = vmatmul.f32.gmra.mxu0 %v4933
      %v4961 = vpop.f32.mrf.mxu0
      %v4962 = vadd.f32 0.0, %v4961
      %4963 = vmatmul.f32.gmra.mxu0 %v4936
      %v4964 = vpop.f32.mrf.mxu0
      %v4965 = vadd.f32 0.0, %v4964
      %4966 = vmatmul.f32.gmra.mxu0 %v4939
      %v4967 = vpop.f32.mrf.mxu0
      %v4968 = vadd.f32 0.0, %v4967
      %4969 = vdwg.mxu0
      %v4970 = vadd.f32 %v4902, %v4959
      %v4971 = vadd.f32 %v4905, %v4962
      %v4972 = vadd.f32 %v4908, %v4965
      %v4973 = vadd.f32 %v4911, %v4968
      %4975 = vset.pattern.permute.xlu0 0
      %4976 = vperm.xlu0 %4975, %v4221
      %v4977 = vpop.permute.xlu0 %4976
      %4980 = vset.pattern.permute.xlu0 0
      %4981 = vperm.xlu0 %4980, %v4222
      %v4982 = vpop.permute.xlu0 %4981
      %4985 = vset.pattern.permute.xlu0 0
      %4986 = vperm.xlu0 %4985, %v4223
      %v4987 = vpop.permute.xlu0 %4986
      %4990 = vset.pattern.permute.xlu0 0
      %4991 = vperm.xlu0 %4990, %v4224
      %v4992 = vpop.permute.xlu0 %4991
      %v4994 = vadd.f32 %v4970, %v4977
      %v4995 = vadd.f32 %v4971, %v4982
      %v4996 = vadd.f32 %v4972, %v4987
      %v4997 = vadd.f32 %v4973, %v4992
      %v4998 = vmax.f32 %v4994, 0.0
      %v4999 = vmax.f32 %v4995, 0.0
      %v5000 = vmax.f32 %v4996, 0.0
      %v5001 = vmax.f32 %v4997, 0.0
      %5003 = vset.pattern.permute.xlu0 0
      %5004 = vperm.xlu0 %5003, %v4247
      %v5005 = vpop.permute.xlu0 %5004
      %5008 = vset.pattern.permute.xlu0 0
      %5009 = vperm.xlu0 %5008, %v4248
      %v5010 = vpop.permute.xlu0 %5009
      %5013 = vset.pattern.permute.xlu0 0
      %5014 = vperm.xlu0 %5013, %v4249
      %v5015 = vpop.permute.xlu0 %5014
      %5018 = vset.pattern.permute.xlu0 0
      %5019 = vperm.xlu0 %5018, %v4250
      %v5020 = vpop.permute.xlu0 %5019
      %v5023 = vsel %vm2239, %v4234, 0
      %v5026 = vsel %vm2239, %v4235, 0
      %v5029 = vsel %vm2239, %v4236, 0
      %v5032 = vsel %vm2239, %v4237, 0
      %5034 = vmatpush.msra.mxu0 0.0
      %5035 = vmatpush.msra.mxu0 0.0
      %5036 = vmatpush.msra.mxu0 0.0
      %5037 = vmatpush.msra.mxu0 0.0
      %5038 = vmatpush.msra.mxu0 0.0
      %5039 = vmatpush.msra.mxu0 0.0
      %5040 = vmatpush.msra.mxu0 0.0
      %5041 = vmatpush.msra.mxu0 0.0
      %5042 = vmatpush.msra.mxu0 0.0
      %5043 = vmatpush.msra.mxu0 0.0
      %5044 = vmatpush.msra.mxu0 0.0
      %5045 = vmatpush.msra.mxu0 0.0
      %5046 = vmatpush.msra.mxu0 %v5001
      %5047 = vmatpush.msra.mxu0 %v5000
      %5048 = vmatpush.msra.mxu0 %v4999
      %5049 = vmatpush.msra.mxu0 %v4998
      %5050 = vmatmul.f32.gmra.mxu0 %v5023
      %v5051 = vpop.f32.mrf.mxu0
      %v5052 = vadd.f32 %v5005, %v5051
      %5053 = vmatmul.f32.gmra.mxu0 %v5026
      %v5054 = vpop.f32.mrf.mxu0
      %v5055 = vadd.f32 %v5010, %v5054
      %5056 = vmatmul.f32.gmra.mxu0 %v5029
      %v5057 = vpop.f32.mrf.mxu0
      %v5058 = vadd.f32 %v5015, %v5057
      %5059 = vmatmul.f32.gmra.mxu0 %v5032
      %v5060 = vpop.f32.mrf.mxu0
      %v5061 = vadd.f32 %v5020, %v5060
      %5062 = vdwg.mxu0
      %v5063 = vadd.f32 %v4803, %v5052
      %v5064 = vadd.f32 %v4804, %v5055
      %v5065 = vadd.f32 %v4805, %v5058
      %v5066 = vadd.f32 %v4806, %v5061
      %v5067 = vmul.f32 %v5063, %v2489
      %v5068 = vmul.f32 %v5064, %v2489
      %v5069 = vmul.f32 %v5065, %v2489
      %v5070 = vmul.f32 %v5066, %v2489
      %5072 = vset.pattern.permute.xlu0 0
      %5073 = vperm.xlu0 %5072, %v4254
      %v5074 = vpop.permute.xlu0 %5073
      %v5077 = vsel %vm2239, %v4252, 0
      %5079 = vmatpush.msra.mxu0 0.0
      %5080 = vmatpush.msra.mxu0 0.0
      %5081 = vmatpush.msra.mxu0 0.0
      %5082 = vmatpush.msra.mxu0 0.0
      %5083 = vmatpush.msra.mxu0 0.0
      %5084 = vmatpush.msra.mxu0 0.0
      %5085 = vmatpush.msra.mxu0 0.0
      %5086 = vmatpush.msra.mxu0 0.0
      %5087 = vmatpush.msra.mxu0 0.0
      %5088 = vmatpush.msra.mxu0 0.0
      %5089 = vmatpush.msra.mxu0 0.0
      %5090 = vmatpush.msra.mxu0 0.0
      %5091 = vmatpush.msra.mxu0 %v5070
      %5092 = vmatpush.msra.mxu0 %v5069
      %5093 = vmatpush.msra.mxu0 %v5068
      %5094 = vmatpush.msra.mxu0 %v5067
      %5095 = vmatmul.f32.gmra.mxu0 %v5077
      %v5096 = vpop.f32.mrf.mxu0
      %v5097 = vadd.f32 %v5074, %v5096
      %5098 = vdwg.mxu0
      %v5099 = vmul.f32 %v5097, %v2489
      %s5100 = scalar_lea.vmem %s589, 8
      %5101 = vst.msk [vmem:[%s5100] sm:$0xf] %vm3064, %v5099
      %p5102 = scmp.lt.s32.totalorder %s29, 1
      %s5103 = scalar_select %p5102, %s29, 1
      %s5104 = smul.addr %s5103, 3
      %s5105 = smul.addr %s5104, 4
      %s5106 = scalar_lea.vmem %s18, %s5105
      // Predicated region
      $region93: #{multi_stage_forward.1} parent=91 // pred_check
        %p5107 = pneg %p435
      $region94: #{multi_stage_forward.1} parent=91 // pred_check_branch
        %5109 = sbr.rel (%p5107) target = $region96
      $region95: #{multi_stage_forward.1} parent=91 // pred_region
        _
      $region96: #{multi_stage_forward.1} parent=91 // pred_fallthru
        _
    $region92: #{multi_stage_forward.1} parent=5 // pred_fallthru
      _
    %p5110 = scmp.le.s32.totalorder 2, %s24
    // Predicated region
    $region97: #{multi_stage_forward.1} parent=5 // pred_check
      %p5111 = pneg %p5110
    $region98: #{multi_stage_forward.1} parent=5 // pred_check_branch
      %5113 = sbr.rel (%p5111) target = $region100
    $region99: #{multi_stage_forward.1} parent=5 // pred_region
      %s5114 = ssub.s32 %s24, 2
      // Predicated region
      $region101: #{multi_stage_forward.1} parent=99 // pred_check
        %p5115 = pneg %p441
      $region102: #{multi_stage_forward.1} parent=99 // pred_check_branch
        %5117 = sbr.rel (%p5115) target = $region104
      $region103: #{multi_stage_forward.1} parent=99 // pred_region
        %p5118 = scmp.lt.s32.totalorder %s30, 1
        %s5119 = scalar_select %p5118, %s30, 1
        %s5120 = smul.addr %s5119, 3
        %s5121 = smul.addr %s5120, 4
        %s5122 = scalar_lea.vmem %s18, %s5121
      $region104: #{multi_stage_forward.1} parent=99 // pred_fallthru
        _
    $region100: #{multi_stage_forward.1} parent=5 // pred_fallthru
      _
  $region6: #{multi_stage_forward.1} parent=0 // loop_footer
    %s28 = sadd.s32 1, %s24
  $region7: #{multi_stage_forward.1} parent=0 // loop_footer_branch
    %23 = sbr.rel target = $region3
  $region8: #{multi_stage_forward.1} parent=0 // loop_exit
    _

</llo_original>
